<compile_context>
chip_gen: v7x
topology: tpu7x:2x2x1
jax: 0.10.0
libtpu: 0.0.40
codegen_flags: <defaults>
</compile_context>

<pallas_src>
import functools
import math

import jax
import jax.numpy as jnp
from jax.experimental import pallas as pl
from jax.experimental.pallas import tpu as pltpu

_LANE = 128   # lane width -> alignment target for every big store
_SUB = 8      # f32 sublane granularity (input-channel padding)
_OFF = 128    # lane-aligned column where conv1's activation lands in `mid`


def _round_up(x, m):
    return (x + m - 1) // m * m


def _derive_dims(N, H, W):
    """Static geometry shared by the wrapper and the kernel."""
    Hp, Wp = H + 2, W + 2
    P = Hp * Wp                                    # padded pixels per image
    Mq = (N - 1) * P + (H - 1) * Wp + W            # span holding all real output cols
    n1 = _round_up(Mq, _LANE)                      # conv1 columns computed / stored
    lout = _round_up((N - 1) * P + (H - 2) * Wp + (W - 2) + 1, _LANE)  # sliding-max cols
    n2 = lout + Wp + 1                             # conv2 columns computed
    xw = max(_round_up(n1 + 2 * Wp + 2, _LANE),    # padded-input slab width
             _round_up(N * P, _LANE))
    mw = _round_up(_OFF + max(n1, n2 + Wp + 1), _LANE)   # mid scratch width
    return Hp, Wp, P, Mq, n1, n2, lout, xw, mw


# ----------------------------------------------------------------------------
# Fused kernel: conv+BN+GELU, conv+BN+GELU, sliding 2x2 max
# ----------------------------------------------------------------------------
def _unet_down_kernel(x_ref, w1_ref, w2_ref, mask_ref, o_ref, mid_ref, *,
                      N, H, W, eps, approximate_gelu):
    """x_ref:   (Cin_p, xw) f32   zero-padded input, col = n*P + hp*Wp + wp
       w*_ref:  (9, Cout, Cin_p) f32  tap-leading 3x3 weights, t = kh*3 + kw
       mask_ref:(1, n2) f32       1.0 on columns that are real output pixels
       o_ref:   (C2, lout) f32    sliding 2x2 max of the conv2 activation
       mid_ref: (C1_p, mw) f32    conv1 activation re-emitted in padded layout
    """
    Hp, Wp, P, Mq, n1, n2, lout, xw, mw = _derive_dims(N, H, W)
    inv_m = 1.0 / float(N * H * W)                 # BN population = real pixels

    def gelu(x):
        if approximate_gelu:
            # tanh approximation -> routes through the (otherwise idle) EUP slot
            c = math.sqrt(2.0 / math.pi)
            return 0.5 * x * (1.0 + jnp.tanh(c * (x + 0.044715 * x * x * x)))
        # exact erf GELU (nn.GELU() default semantics)
        return 0.5 * x * (1.0 + jax.lax.erf(x * (1.0 / math.sqrt(2.0))))

    def conv_bn_gelu(src_ref, w_ref, base, ncols, mask):
        # 3x3 conv = 9 accumulating MXU matmuls over lane-shifted views of the
        # zero-padded input.  No im2col scratch, no tap stores.
        acc = None
        for t in range(9):
            kh, kw = divmod(t, 3)
            off = base + kh * Wp + kw
            part = jax.lax.dot_general(
                w_ref[t], src_ref[:, off:off + ncols],
                dimension_numbers=(((1,), (0,)), ((), ())),
                preferred_element_type=jnp.float32)
            acc = part if acc is None else acc + part
        # Training-mode BatchNorm2d stats in ONE pass over the real pixels:
        # sum and sum-of-squares from the same acc, var = E[x^2] - mean^2.
        am = acc * mask
        s1 = jnp.sum(am, axis=1, keepdims=True)
        s2 = jnp.sum(am * acc, axis=1, keepdims=True)
        mean = s1 * inv_m
        var = jnp.maximum(s2 * inv_m - mean * mean, 0.0)   # clamp for stability
        xn = (acc - mean) * jax.lax.rsqrt(var + eps)
        return gelu(xn)

    c1 = w1_ref.shape[1]
    mask2 = mask_ref[...]               # (1, n2)
    mask1 = mask2[:, 0:n1]              # prefix view, same validity function

    # ---- conv1 -> BN -> GELU ------------------------------------------------
    g1 = conv_bn_gelu(x_ref, w1_ref, 0, n1, mask1)          # (C1, n1) f32

    # Re-emit g1 into the zero-padded layout conv2 consumes.  The main store
    # starts at lane column _OFF (multiple of 128) and spans n1 (multiple of
    # 128) columns -> one unmasked, lane-aligned slab store.  Only the small
    # prefix / suffix the conv2 taps can reach is zero-filled.
    mid_ref[:, 0:_OFF] = jnp.zeros((mid_ref.shape[0], _OFF), mid_ref.dtype)
    mid_ref[0:c1, _OFF:_OFF + n1] = (g1 * mask1).astype(mid_ref.dtype)
    if mw > _OFF + n1:
        mid_ref[:, _OFF + n1:] = jnp.zeros(
            (mid_ref.shape[0], mw - _OFF - n1), mid_ref.dtype)
    if mid_ref.shape[0] > c1:           # zero sublane-padding rows (if any)
        mid_ref[c1:, _OFF:_OFF + n1] = jnp.zeros(
            (mid_ref.shape[0] - c1, n1), mid_ref.dtype)

    # ---- conv2 -> BN -> GELU ------------------------------------------------
    base2 = _OFF - (Wp + 1)             # padded-layout origin inside mid
    g2 = conv_bn_gelu(mid_ref, w2_ref, base2, n2, mask2)    # (C2, n2) f32

    # ---- fused MaxPool2d(2) compute: sliding 2x2 max, lane-dense single store.
    #      The stride-2 column subsample is a tiny gather in the wrapper. ------
    m01 = jnp.maximum(g2[:, 0:lout], g2[:, 1:1 + lout])
    m23 = jnp.maximum(g2[:, Wp:Wp + lout], g2[:, Wp + 1:Wp + 1 + lout])
    o_ref[...] = jnp.maximum(m01, m23).astype(o_ref.dtype)


# ----------------------------------------------------------------------------
# Wrapper
# ----------------------------------------------------------------------------
_VMEM_SPEC = pl.BlockSpec(memory_space=pltpu.MemorySpace.VMEM)


def _tt_full_kernel(cores0, cores1, cores2):
    # kernel[o,i,kh,kw] = sum_{r,s} cores0[o,i,r] * cores1[r,kh,s] * cores2[s,kw]
    return jnp.einsum("oir,rhs,sw->oihw", cores0, cores1, cores2)


def _tap_leading(w_oihw, cin_pad):
    cout, cin = w_oihw.shape[0], w_oihw.shape[1]
    w = jnp.transpose(w_oihw, (2, 3, 0, 1)).reshape(9, cout, cin)
    if cin_pad > cin:
        w = jnp.pad(w, ((0, 0), (0, 0), (0, cin_pad - cin)))
    return w.astype(jnp.float32)


def student_unet_down(x_nchw, params, *, eps=1e-5, approximate_gelu=False):
    (c10, c11, c12, _b1), (c20, c21, c22, _b2) = params
    N, cin, H, W = x_nchw.shape
    assert H % 2 == 0 and W % 2 == 0, "MaxPool2d(2) expects even spatial dims"
    Hp, Wp, P, Mq, n1, n2, lout, xw, mw = _derive_dims(N, H, W)

    # TT cores -> full 3x3 kernels (tiny einsum, once), tap-leading, f32.
    w1_full = _tt_full_kernel(c10, c11, c12)       # (C1, Cin, 3, 3)
    w2_full = _tt_full_kernel(c20, c21, c22)       # (C2, C1, 3, 3)
    c1, c2 = w1_full.shape[0], w2_full.shape[0]
    cin_p = _round_up(cin, _SUB)
    c1_p = _round_up(c1, _SUB)
    w1 = _tap_leading(w1_full, cin_p)              # (9, C1, Cin_p)
    w2 = _tap_leading(w2_full, c1_p)               # (9, C2, C1_p)
    # ttconv biases cancel exactly against training-mode BN mean subtraction.
    # TODO(synk): plumb biases through if eval-mode BN (running stats) is needed.

    # Channels-leading, zero-padded spatial, flattened so n*Hp*Wp sits on the
    # lane axis; extra zero lanes so conv1 can compute a multiple-of-128 span
    # without reading out of bounds.
    xp = jnp.pad(jnp.transpose(x_nchw, (1, 0, 2, 3)).astype(jnp.float32),
                 ((0, cin_p - cin), (0, 0), (1, 1), (1, 1)))   # (Cin_p, N, Hp, Wp)
    x2d = jnp.pad(xp.reshape(cin_p, N * P), ((0, 0), (0, xw - N * P)))

    # Validity mask of the computed columns (real output pixels only).
    q = jnp.arange(n2, dtype=jnp.int32)
    r = q % P
    mask = ((q < Mq) & ((r // Wp) < H) & ((r % Wp) < W)).astype(jnp.float32)
    mask = mask.reshape(1, n2)

    kernel = functools.partial(_unet_down_kernel, N=N, H=H, W=W, eps=eps,
                               approximate_gelu=approximate_gelu)
    out2d = pl.pallas_call(
        kernel,
        out_shape=jax.ShapeDtypeStruct((c2, lout), jnp.float32),
        in_specs=[_VMEM_SPEC] * 4,
        out_specs=_VMEM_SPEC,
        scratch_shapes=[pltpu.VMEM((c1_p, mw), jnp.float32)],  # conv1 act (padded)
    )(x2d, w1, w2, mask)

    # MaxPool2d(2): pick each window's top-left column of the sliding 2x2 max.
    Ho, Wo = H // 2, W // 2
    cols = (jnp.arange(N)[:, None, None] * P
            + 2 * jnp.arange(Ho)[None, :, None] * Wp
            + 2 * jnp.arange(Wo)[None, None, :])               # (N, Ho, Wo)
    y = out2d[:, cols]                                         # (C2, N, Ho, Wo)
    return jnp.transpose(y, (1, 0, 2, 3))                      # (N, C2, Ho, Wo)


# ----------------------------------------------------------------------------
# Pure-JAX reference (training-mode BN, exact GELU) for a tolerance check
# ----------------------------------------------------------------------------
def _reference_forward(x, params, eps=1e-5):
    def tt_conv(h, p):
        c0, cc1, cc2, b = p
        k = jnp.einsum("oir,rhs,sw->oihw", c0, cc1, cc2)
        y = jax.lax.conv_general_dilated(
            h, k, window_strides=(1, 1), padding=((1, 1), (1, 1)),
            dimension_numbers=("NCHW", "OIHW", "NCHW"))
        return y + b[None, :, None, None]

    def bn_gelu(y):
        mean = jnp.mean(y, axis=(0, 2, 3), keepdims=True)
        var = jnp.mean(jnp.square(y - mean), axis=(0, 2, 3), keepdims=True)
        yn = (y - mean) * jax.lax.rsqrt(var + eps)
        return 0.5 * yn * (1.0 + jax.lax.erf(yn / math.sqrt(2.0)))

    h = bn_gelu(tt_conv(x, params[0]))
    h = bn_gelu(tt_conv(h, params[1]))
    N, C, H, W = h.shape
    return h.reshape(N, C, H // 2, 2, W // 2, 2).max(axis=(3, 5))


# ----------------------------------------------------------------------------
# Deterministic parameter init mirroring the module's __init__
# ----------------------------------------------------------------------------
def xavier_uniform(key, shape, gain=1.0):
    receptive = 1
    for s in shape[2:]:
        receptive *= s
    fan_in = shape[1] * receptive
    fan_out = shape[0] * receptive
    bound = gain * math.sqrt(6.0 / (fan_in + fan_out))
    return jax.random.uniform(key, shape, jnp.float32, -bound, bound)


def make_ttconv_params(key, in_ch, out_ch, ranks=(3, 3)):
    k0, k1, k2, kb = jax.random.split(key, 4)
    cores0 = xavier_uniform(k0, (out_ch, in_ch, ranks[0]))    # (Cout, Cin, r0)
    cores1 = xavier_uniform(k1, (ranks[0], 3, ranks[1]))      # (r0, 3, r1)
    cores2 = xavier_uniform(k2, (ranks[1], 3))                # (r1, 3)
    bias = jax.random.uniform(kb, (out_ch,), jnp.float32, -1e-5, 1e-5)
    return cores0, cores1, cores2, bias


if __name__ == "__main__":
    key = jax.random.PRNGKey(0)
    kx, kp1, kp2 = jax.random.split(key, 3)

    N, Cin, Cout, H, W = 2, 4, 8, 16, 16
    x = jax.random.normal(kx, (N, Cin, H, W), jnp.float32)
    params = (
        make_ttconv_params(kp1, Cin, Cout),
        make_ttconv_params(kp2, Cout, Cout),
    )

    y = jax.jit(student_unet_down)(x, params)
    jax.block_until_ready(y)
    assert y.shape == (N, Cout, H // 2, W // 2), y.shape
    assert bool(jnp.all(jnp.isfinite(y)))

    y_ref = jax.jit(_reference_forward)(x, params)
    jax.block_until_ready(y_ref)
    assert bool(jnp.allclose(y, y_ref, atol=5e-2, rtol=5e-2)), (
        "max abs err = %f" % float(jnp.max(jnp.abs(y - y_ref))))

    print("KERNEL_OK")
</pallas_src>

<mosaic_0001>
module attributes {stable_mosaic.version = 11 : i64} {
  func.func @_unet_down_kernel(%arg0: memref<8x768xf32, #tpu.memory_space<vmem>>, %arg1: memref<9x8x8xf32, #tpu.memory_space<vmem>>, %arg2: memref<9x8x8xf32, #tpu.memory_space<vmem>>, %arg3: memref<1x659xf32, #tpu.memory_space<vmem>>, %arg4: memref<8x640xf32, #tpu.memory_space<vmem>>, %arg5: memref<8x896xf32, #tpu.memory_space<vmem>>) attributes {dimension_semantics = [], scalar_prefetch = 0 : i64, scratch_operands = 1 : i64, tpu.core_type = #tpu.core_type<tc>} {
    %c0 = arith.constant 0 : index
    %c0_0 = arith.constant 0 : index
    %0 = vector.load %arg3[%c0, %c0_0] : memref<1x659xf32, #tpu.memory_space<vmem>>, vector<1x659xf32>
    %1 = vector.extract_strided_slice %0 {offsets = [0, 0], sizes = [1, 640], strides = [1, 1]} : vector<1x659xf32> to vector<1x640xf32>
    %c0_1 = arith.constant 0 : index
    %c0_2 = arith.constant 0 : index
    %c0_3 = arith.constant 0 : index
    %2 = vector.load %arg1[%c0_1, %c0_2, %c0_3] : memref<9x8x8xf32, #tpu.memory_space<vmem>>, vector<1x8x8xf32>
    %3 = vector.shape_cast %2 : vector<1x8x8xf32> to vector<8x8xf32>
    %c0_4 = arith.constant 0 : index
    %c0_5 = arith.constant 0 : index
    %4 = vector.load %arg0[%c0_4, %c0_5] : memref<8x768xf32, #tpu.memory_space<vmem>>, vector<8x640xf32>
    %cst = arith.constant dense<0.000000e+00> : vector<8x640xf32>
    %5 = tpu.matmul %3, %4, %cst {dimension_numbers = #tpu.dot_dimension_numbers<[1], [0], [0], [1], [0, 0, 1, 1], [], []>} : vector<8x8xf32>, vector<8x640xf32>, vector<8x640xf32> -> vector<8x640xf32>
    %c1 = arith.constant 1 : index
    %c0_6 = arith.constant 0 : index
    %c0_7 = arith.constant 0 : index
    %6 = vector.load %arg1[%c1, %c0_6, %c0_7] : memref<9x8x8xf32, #tpu.memory_space<vmem>>, vector<1x8x8xf32>
    %7 = vector.shape_cast %6 : vector<1x8x8xf32> to vector<8x8xf32>
    %c0_8 = arith.constant 0 : index
    %c1_9 = arith.constant 1 : index
    %8 = vector.load %arg0[%c0_8, %c1_9] : memref<8x768xf32, #tpu.memory_space<vmem>>, vector<8x640xf32>
    %cst_10 = arith.constant dense<0.000000e+00> : vector<8x640xf32>
    %9 = tpu.matmul %7, %8, %cst_10 {dimension_numbers = #tpu.dot_dimension_numbers<[1], [0], [0], [1], [0, 0, 1, 1], [], []>} : vector<8x8xf32>, vector<8x640xf32>, vector<8x640xf32> -> vector<8x640xf32>
    %10 = arith.addf %5, %9 : vector<8x640xf32>
    %c2 = arith.constant 2 : index
    %c0_11 = arith.constant 0 : index
    %c0_12 = arith.constant 0 : index
    %11 = vector.load %arg1[%c2, %c0_11, %c0_12] : memref<9x8x8xf32, #tpu.memory_space<vmem>>, vector<1x8x8xf32>
    %12 = vector.shape_cast %11 : vector<1x8x8xf32> to vector<8x8xf32>
    %c0_13 = arith.constant 0 : index
    %c2_14 = arith.constant 2 : index
    %13 = vector.load %arg0[%c0_13, %c2_14] : memref<8x768xf32, #tpu.memory_space<vmem>>, vector<8x640xf32>
    %cst_15 = arith.constant dense<0.000000e+00> : vector<8x640xf32>
    %14 = tpu.matmul %12, %13, %cst_15 {dimension_numbers = #tpu.dot_dimension_numbers<[1], [0], [0], [1], [0, 0, 1, 1], [], []>} : vector<8x8xf32>, vector<8x640xf32>, vector<8x640xf32> -> vector<8x640xf32>
    %15 = arith.addf %10, %14 : vector<8x640xf32>
    %c3 = arith.constant 3 : index
    %c0_16 = arith.constant 0 : index
    %c0_17 = arith.constant 0 : index
    %16 = vector.load %arg1[%c3, %c0_16, %c0_17] : memref<9x8x8xf32, #tpu.memory_space<vmem>>, vector<1x8x8xf32>
    %17 = vector.shape_cast %16 : vector<1x8x8xf32> to vector<8x8xf32>
    %c0_18 = arith.constant 0 : index
    %c18 = arith.constant 18 : index
    %18 = vector.load %arg0[%c0_18, %c18] : memref<8x768xf32, #tpu.memory_space<vmem>>, vector<8x640xf32>
    %cst_19 = arith.constant dense<0.000000e+00> : vector<8x640xf32>
    %19 = tpu.matmul %17, %18, %cst_19 {dimension_numbers = #tpu.dot_dimension_numbers<[1], [0], [0], [1], [0, 0, 1, 1], [], []>} : vector<8x8xf32>, vector<8x640xf32>, vector<8x640xf32> -> vector<8x640xf32>
    %20 = arith.addf %15, %19 : vector<8x640xf32>
    %c4 = arith.constant 4 : index
    %c0_20 = arith.constant 0 : index
    %c0_21 = arith.constant 0 : index
    %21 = vector.load %arg1[%c4, %c0_20, %c0_21] : memref<9x8x8xf32, #tpu.memory_space<vmem>>, vector<1x8x8xf32>
    %22 = vector.shape_cast %21 : vector<1x8x8xf32> to vector<8x8xf32>
    %c0_22 = arith.constant 0 : index
    %c19 = arith.constant 19 : index
    %23 = vector.load %arg0[%c0_22, %c19] : memref<8x768xf32, #tpu.memory_space<vmem>>, vector<8x640xf32>
    %cst_23 = arith.constant dense<0.000000e+00> : vector<8x640xf32>
    %24 = tpu.matmul %22, %23, %cst_23 {dimension_numbers = #tpu.dot_dimension_numbers<[1], [0], [0], [1], [0, 0, 1, 1], [], []>} : vector<8x8xf32>, vector<8x640xf32>, vector<8x640xf32> -> vector<8x640xf32>
    %25 = arith.addf %20, %24 : vector<8x640xf32>
    %c5 = arith.constant 5 : index
    %c0_24 = arith.constant 0 : index
    %c0_25 = arith.constant 0 : index
    %26 = vector.load %arg1[%c5, %c0_24, %c0_25] : memref<9x8x8xf32, #tpu.memory_space<vmem>>, vector<1x8x8xf32>
    %27 = vector.shape_cast %26 : vector<1x8x8xf32> to vector<8x8xf32>
    %c0_26 = arith.constant 0 : index
    %c20 = arith.constant 20 : index
    %28 = vector.load %arg0[%c0_26, %c20] : memref<8x768xf32, #tpu.memory_space<vmem>>, vector<8x640xf32>
    %cst_27 = arith.constant dense<0.000000e+00> : vector<8x640xf32>
    %29 = tpu.matmul %27, %28, %cst_27 {dimension_numbers = #tpu.dot_dimension_numbers<[1], [0], [0], [1], [0, 0, 1, 1], [], []>} : vector<8x8xf32>, vector<8x640xf32>, vector<8x640xf32> -> vector<8x640xf32>
    %30 = arith.addf %25, %29 : vector<8x640xf32>
    %c6 = arith.constant 6 : index
    %c0_28 = arith.constant 0 : index
    %c0_29 = arith.constant 0 : index
    %31 = vector.load %arg1[%c6, %c0_28, %c0_29] : memref<9x8x8xf32, #tpu.memory_space<vmem>>, vector<1x8x8xf32>
    %32 = vector.shape_cast %31 : vector<1x8x8xf32> to vector<8x8xf32>
    %c0_30 = arith.constant 0 : index
    %c36 = arith.constant 36 : index
    %33 = vector.load %arg0[%c0_30, %c36] : memref<8x768xf32, #tpu.memory_space<vmem>>, vector<8x640xf32>
    %cst_31 = arith.constant dense<0.000000e+00> : vector<8x640xf32>
    %34 = tpu.matmul %32, %33, %cst_31 {dimension_numbers = #tpu.dot_dimension_numbers<[1], [0], [0], [1], [0, 0, 1, 1], [], []>} : vector<8x8xf32>, vector<8x640xf32>, vector<8x640xf32> -> vector<8x640xf32>
    %35 = arith.addf %30, %34 : vector<8x640xf32>
    %c7 = arith.constant 7 : index
    %c0_32 = arith.constant 0 : index
    %c0_33 = arith.constant 0 : index
    %36 = vector.load %arg1[%c7, %c0_32, %c0_33] : memref<9x8x8xf32, #tpu.memory_space<vmem>>, vector<1x8x8xf32>
    %37 = vector.shape_cast %36 : vector<1x8x8xf32> to vector<8x8xf32>
    %c0_34 = arith.constant 0 : index
    %c37 = arith.constant 37 : index
    %38 = vector.load %arg0[%c0_34, %c37] : memref<8x768xf32, #tpu.memory_space<vmem>>, vector<8x640xf32>
    %cst_35 = arith.constant dense<0.000000e+00> : vector<8x640xf32>
    %39 = tpu.matmul %37, %38, %cst_35 {dimension_numbers = #tpu.dot_dimension_numbers<[1], [0], [0], [1], [0, 0, 1, 1], [], []>} : vector<8x8xf32>, vector<8x640xf32>, vector<8x640xf32> -> vector<8x640xf32>
    %40 = arith.addf %35, %39 : vector<8x640xf32>
    %c8 = arith.constant 8 : index
    %c0_36 = arith.constant 0 : index
    %c0_37 = arith.constant 0 : index
    %41 = vector.load %arg1[%c8, %c0_36, %c0_37] : memref<9x8x8xf32, #tpu.memory_space<vmem>>, vector<1x8x8xf32>
    %42 = vector.shape_cast %41 : vector<1x8x8xf32> to vector<8x8xf32>
    %c0_38 = arith.constant 0 : index
    %c38 = arith.constant 38 : index
    %43 = vector.load %arg0[%c0_38, %c38] : memref<8x768xf32, #tpu.memory_space<vmem>>, vector<8x640xf32>
    %cst_39 = arith.constant dense<0.000000e+00> : vector<8x640xf32>
    %44 = tpu.matmul %42, %43, %cst_39 {dimension_numbers = #tpu.dot_dimension_numbers<[1], [0], [0], [1], [0, 0, 1, 1], [], []>} : vector<8x8xf32>, vector<8x640xf32>, vector<8x640xf32> -> vector<8x640xf32>
    %45 = arith.addf %40, %44 : vector<8x640xf32>
    %46 = vector.broadcast %1 : vector<1x640xf32> to vector<8x640xf32>
    %47 = arith.mulf %45, %46 : vector<8x640xf32>
    %cst_40 = arith.constant dense<0.000000e+00> : vector<8xf32>
    %48 = vector.multi_reduction <add>, %47, %cst_40 [1] : vector<8x640xf32> to vector<8xf32>
    %49 = vector.shape_cast %48 : vector<8xf32> to vector<8x1xf32>
    %50 = arith.mulf %47, %45 : vector<8x640xf32>
    %cst_41 = arith.constant dense<0.000000e+00> : vector<8xf32>
    %51 = vector.multi_reduction <add>, %50, %cst_41 [1] : vector<8x640xf32> to vector<8xf32>
    %52 = vector.shape_cast %51 : vector<8xf32> to vector<8x1xf32>
    %cst_42 = arith.constant 0.001953125 : f32
    %53 = vector.broadcast %cst_42 : f32 to vector<8x1xf32>
    %54 = arith.mulf %49, %53 : vector<8x1xf32>
    %cst_43 = arith.constant 0.001953125 : f32
    %55 = vector.broadcast %cst_43 : f32 to vector<8x1xf32>
    %56 = arith.mulf %52, %55 : vector<8x1xf32>
    %57 = arith.mulf %54, %54 : vector<8x1xf32>
    %58 = arith.subf %56, %57 : vector<8x1xf32>
    %cst_44 = arith.constant 0.000000e+00 : f32
    %59 = vector.broadcast %cst_44 : f32 to vector<8x1xf32>
    %60 = arith.maximumf %58, %59 : vector<8x1xf32>
    %61 = vector.broadcast %54 : vector<8x1xf32> to vector<8x640xf32>
    %62 = arith.subf %45, %61 : vector<8x640xf32>
    %cst_45 = arith.constant 9.99999974E-6 : f32
    %63 = vector.broadcast %cst_45 : f32 to vector<8x1xf32>
    %64 = arith.addf %60, %63 : vector<8x1xf32>
    %65 = math.rsqrt %64 : vector<8x1xf32>
    %66 = vector.broadcast %65 : vector<8x1xf32> to vector<8x640xf32>
    %67 = arith.mulf %62, %66 : vector<8x640xf32>
    %cst_46 = arith.constant 5.000000e-01 : f32
    %68 = vector.broadcast %cst_46 : f32 to vector<8x640xf32>
    %69 = arith.mulf %68, %67 : vector<8x640xf32>
    %cst_47 = arith.constant 0.707106769 : f32
    %70 = vector.broadcast %cst_47 : f32 to vector<8x640xf32>
    %71 = arith.mulf %67, %70 : vector<8x640xf32>
    %72 = math.erf %71 : vector<8x640xf32>
    %cst_48 = arith.constant 1.000000e+00 : f32
    %73 = vector.broadcast %cst_48 : f32 to vector<8x640xf32>
    %74 = arith.addf %73, %72 : vector<8x640xf32>
    %75 = arith.mulf %69, %74 : vector<8x640xf32>
    %cst_49 = arith.constant 0.000000e+00 : f32
    %76 = vector.broadcast %cst_49 : f32 to vector<8x128xf32>
    %c0_50 = arith.constant 0 : index
    %c0_51 = arith.constant 0 : index
    %77 = vector.load %arg5[%c0_50, %c0_51] : memref<8x896xf32, #tpu.memory_space<vmem>>, vector<8x128xf32>
    tpu.vector_store %arg5[%c0_50, %c0_51], %76 {strides = array<i32>} : memref<8x896xf32, #tpu.memory_space<vmem>>, vector<8x128xf32>,
    %78 = vector.broadcast %1 : vector<1x640xf32> to vector<8x640xf32>
    %79 = arith.mulf %75, %78 : vector<8x640xf32>
    %c0_52 = arith.constant 0 : index
    %c128 = arith.constant 128 : index
    %80 = vector.load %arg5[%c0_52, %c128] : memref<8x896xf32, #tpu.memory_space<vmem>>, vector<8x640xf32>
    tpu.vector_store %arg5[%c0_52, %c128], %79 {strides = array<i32>} : memref<8x896xf32, #tpu.memory_space<vmem>>, vector<8x640xf32>,
    %cst_53 = arith.constant 0.000000e+00 : f32
    %81 = vector.broadcast %cst_53 : f32 to vector<8x128xf32>
    %c0_54 = arith.constant 0 : index
    %c768 = arith.constant 768 : index
    %82 = vector.load %arg5[%c0_54, %c768] : memref<8x896xf32, #tpu.memory_space<vmem>>, vector<8x128xf32>
    tpu.vector_store %arg5[%c0_54, %c768], %81 {strides = array<i32>} : memref<8x896xf32, #tpu.memory_space<vmem>>, vector<8x128xf32>,
    %c0_55 = arith.constant 0 : index
    %c0_56 = arith.constant 0 : index
    %c0_57 = arith.constant 0 : index
    %83 = vector.load %arg2[%c0_55, %c0_56, %c0_57] : memref<9x8x8xf32, #tpu.memory_space<vmem>>, vector<1x8x8xf32>
    %84 = vector.shape_cast %83 : vector<1x8x8xf32> to vector<8x8xf32>
    %c0_58 = arith.constant 0 : index
    %c109 = arith.constant 109 : index
    %85 = vector.load %arg5[%c0_58, %c109] : memref<8x896xf32, #tpu.memory_space<vmem>>, vector<8x659xf32>
    %cst_59 = arith.constant dense<0.000000e+00> : vector<8x659xf32>
    %86 = tpu.matmul %84, %85, %cst_59 {dimension_numbers = #tpu.dot_dimension_numbers<[1], [0], [0], [1], [0, 0, 1, 1], [], []>} : vector<8x8xf32>, vector<8x659xf32>, vector<8x659xf32> -> vector<8x659xf32>
    %c1_60 = arith.constant 1 : index
    %c0_61 = arith.constant 0 : index
    %c0_62 = arith.constant 0 : index
    %87 = vector.load %arg2[%c1_60, %c0_61, %c0_62] : memref<9x8x8xf32, #tpu.memory_space<vmem>>, vector<1x8x8xf32>
    %88 = vector.shape_cast %87 : vector<1x8x8xf32> to vector<8x8xf32>
    %c0_63 = arith.constant 0 : index
    %c110 = arith.constant 110 : index
    %89 = vector.load %arg5[%c0_63, %c110] : memref<8x896xf32, #tpu.memory_space<vmem>>, vector<8x659xf32>
    %cst_64 = arith.constant dense<0.000000e+00> : vector<8x659xf32>
    %90 = tpu.matmul %88, %89, %cst_64 {dimension_numbers = #tpu.dot_dimension_numbers<[1], [0], [0], [1], [0, 0, 1, 1], [], []>} : vector<8x8xf32>, vector<8x659xf32>, vector<8x659xf32> -> vector<8x659xf32>
    %91 = arith.addf %86, %90 : vector<8x659xf32>
    %c2_65 = arith.constant 2 : index
    %c0_66 = arith.constant 0 : index
    %c0_67 = arith.constant 0 : index
    %92 = vector.load %arg2[%c2_65, %c0_66, %c0_67] : memref<9x8x8xf32, #tpu.memory_space<vmem>>, vector<1x8x8xf32>
    %93 = vector.shape_cast %92 : vector<1x8x8xf32> to vector<8x8xf32>
    %c0_68 = arith.constant 0 : index
    %c111 = arith.constant 111 : index
    %94 = vector.load %arg5[%c0_68, %c111] : memref<8x896xf32, #tpu.memory_space<vmem>>, vector<8x659xf32>
    %cst_69 = arith.constant dense<0.000000e+00> : vector<8x659xf32>
    %95 = tpu.matmul %93, %94, %cst_69 {dimension_numbers = #tpu.dot_dimension_numbers<[1], [0], [0], [1], [0, 0, 1, 1], [], []>} : vector<8x8xf32>, vector<8x659xf32>, vector<8x659xf32> -> vector<8x659xf32>
    %96 = arith.addf %91, %95 : vector<8x659xf32>
    %c3_70 = arith.constant 3 : index
    %c0_71 = arith.constant 0 : index
    %c0_72 = arith.constant 0 : index
    %97 = vector.load %arg2[%c3_70, %c0_71, %c0_72] : memref<9x8x8xf32, #tpu.memory_space<vmem>>, vector<1x8x8xf32>
    %98 = vector.shape_cast %97 : vector<1x8x8xf32> to vector<8x8xf32>
    %c0_73 = arith.constant 0 : index
    %c127 = arith.constant 127 : index
    %99 = vector.load %arg5[%c0_73, %c127] : memref<8x896xf32, #tpu.memory_space<vmem>>, vector<8x659xf32>
    %cst_74 = arith.constant dense<0.000000e+00> : vector<8x659xf32>
    %100 = tpu.matmul %98, %99, %cst_74 {dimension_numbers = #tpu.dot_dimension_numbers<[1], [0], [0], [1], [0, 0, 1, 1], [], []>} : vector<8x8xf32>, vector<8x659xf32>, vector<8x659xf32> -> vector<8x659xf32>
    %101 = arith.addf %96, %100 : vector<8x659xf32>
    %c4_75 = arith.constant 4 : index
    %c0_76 = arith.constant 0 : index
    %c0_77 = arith.constant 0 : index
    %102 = vector.load %arg2[%c4_75, %c0_76, %c0_77] : memref<9x8x8xf32, #tpu.memory_space<vmem>>, vector<1x8x8xf32>
    %103 = vector.shape_cast %102 : vector<1x8x8xf32> to vector<8x8xf32>
    %c0_78 = arith.constant 0 : index
    %c128_79 = arith.constant 128 : index
    %104 = vector.load %arg5[%c0_78, %c128_79] : memref<8x896xf32, #tpu.memory_space<vmem>>, vector<8x659xf32>
    %cst_80 = arith.constant dense<0.000000e+00> : vector<8x659xf32>
    %105 = tpu.matmul %103, %104, %cst_80 {dimension_numbers = #tpu.dot_dimension_numbers<[1], [0], [0], [1], [0, 0, 1, 1], [], []>} : vector<8x8xf32>, vector<8x659xf32>, vector<8x659xf32> -> vector<8x659xf32>
    %106 = arith.addf %101, %105 : vector<8x659xf32>
    %c5_81 = arith.constant 5 : index
    %c0_82 = arith.constant 0 : index
    %c0_83 = arith.constant 0 : index
    %107 = vector.load %arg2[%c5_81, %c0_82, %c0_83] : memref<9x8x8xf32, #tpu.memory_space<vmem>>, vector<1x8x8xf32>
    %108 = vector.shape_cast %107 : vector<1x8x8xf32> to vector<8x8xf32>
    %c0_84 = arith.constant 0 : index
    %c129 = arith.constant 129 : index
    %109 = vector.load %arg5[%c0_84, %c129] : memref<8x896xf32, #tpu.memory_space<vmem>>, vector<8x659xf32>
    %cst_85 = arith.constant dense<0.000000e+00> : vector<8x659xf32>
    %110 = tpu.matmul %108, %109, %cst_85 {dimension_numbers = #tpu.dot_dimension_numbers<[1], [0], [0], [1], [0, 0, 1, 1], [], []>} : vector<8x8xf32>, vector<8x659xf32>, vector<8x659xf32> -> vector<8x659xf32>
    %111 = arith.addf %106, %110 : vector<8x659xf32>
    %c6_86 = arith.constant 6 : index
    %c0_87 = arith.constant 0 : index
    %c0_88 = arith.constant 0 : index
    %112 = vector.load %arg2[%c6_86, %c0_87, %c0_88] : memref<9x8x8xf32, #tpu.memory_space<vmem>>, vector<1x8x8xf32>
    %113 = vector.shape_cast %112 : vector<1x8x8xf32> to vector<8x8xf32>
    %c0_89 = arith.constant 0 : index
    %c145 = arith.constant 145 : index
    %114 = vector.load %arg5[%c0_89, %c145] : memref<8x896xf32, #tpu.memory_space<vmem>>, vector<8x659xf32>
    %cst_90 = arith.constant dense<0.000000e+00> : vector<8x659xf32>
    %115 = tpu.matmul %113, %114, %cst_90 {dimension_numbers = #tpu.dot_dimension_numbers<[1], [0], [0], [1], [0, 0, 1, 1], [], []>} : vector<8x8xf32>, vector<8x659xf32>, vector<8x659xf32> -> vector<8x659xf32>
    %116 = arith.addf %111, %115 : vector<8x659xf32>
    %c7_91 = arith.constant 7 : index
    %c0_92 = arith.constant 0 : index
    %c0_93 = arith.constant 0 : index
    %117 = vector.load %arg2[%c7_91, %c0_92, %c0_93] : memref<9x8x8xf32, #tpu.memory_space<vmem>>, vector<1x8x8xf32>
    %118 = vector.shape_cast %117 : vector<1x8x8xf32> to vector<8x8xf32>
    %c0_94 = arith.constant 0 : index
    %c146 = arith.constant 146 : index
    %119 = vector.load %arg5[%c0_94, %c146] : memref<8x896xf32, #tpu.memory_space<vmem>>, vector<8x659xf32>
    %cst_95 = arith.constant dense<0.000000e+00> : vector<8x659xf32>
    %120 = tpu.matmul %118, %119, %cst_95 {dimension_numbers = #tpu.dot_dimension_numbers<[1], [0], [0], [1], [0, 0, 1, 1], [], []>} : vector<8x8xf32>, vector<8x659xf32>, vector<8x659xf32> -> vector<8x659xf32>
    %121 = arith.addf %116, %120 : vector<8x659xf32>
    %c8_96 = arith.constant 8 : index
    %c0_97 = arith.constant 0 : index
    %c0_98 = arith.constant 0 : index
    %122 = vector.load %arg2[%c8_96, %c0_97, %c0_98] : memref<9x8x8xf32, #tpu.memory_space<vmem>>, vector<1x8x8xf32>
    %123 = vector.shape_cast %122 : vector<1x8x8xf32> to vector<8x8xf32>
    %c0_99 = arith.constant 0 : index
    %c147 = arith.constant 147 : index
    %124 = vector.load %arg5[%c0_99, %c147] : memref<8x896xf32, #tpu.memory_space<vmem>>, vector<8x659xf32>
    %cst_100 = arith.constant dense<0.000000e+00> : vector<8x659xf32>
    %125 = tpu.matmul %123, %124, %cst_100 {dimension_numbers = #tpu.dot_dimension_numbers<[1], [0], [0], [1], [0, 0, 1, 1], [], []>} : vector<8x8xf32>, vector<8x659xf32>, vector<8x659xf32> -> vector<8x659xf32>
    %126 = arith.addf %121, %125 : vector<8x659xf32>
    %127 = vector.broadcast %0 : vector<1x659xf32> to vector<8x659xf32>
    %128 = arith.mulf %126, %127 : vector<8x659xf32>
    %cst_101 = arith.constant dense<0.000000e+00> : vector<8xf32>
    %129 = vector.multi_reduction <add>, %128, %cst_101 [1] : vector<8x659xf32> to vector<8xf32>
    %130 = vector.shape_cast %129 : vector<8xf32> to vector<8x1xf32>
    %131 = arith.mulf %128, %126 : vector<8x659xf32>
    %cst_102 = arith.constant dense<0.000000e+00> : vector<8xf32>
    %132 = vector.multi_reduction <add>, %131, %cst_102 [1] : vector<8x659xf32> to vector<8xf32>
    %133 = vector.shape_cast %132 : vector<8xf32> to vector<8x1xf32>
    %cst_103 = arith.constant 0.001953125 : f32
    %134 = vector.broadcast %cst_103 : f32 to vector<8x1xf32>
    %135 = arith.mulf %130, %134 : vector<8x1xf32>
    %cst_104 = arith.constant 0.001953125 : f32
    %136 = vector.broadcast %cst_104 : f32 to vector<8x1xf32>
    %137 = arith.mulf %133, %136 : vector<8x1xf32>
    %138 = arith.mulf %135, %135 : vector<8x1xf32>
    %139 = arith.subf %137, %138 : vector<8x1xf32>
    %cst_105 = arith.constant 0.000000e+00 : f32
    %140 = vector.broadcast %cst_105 : f32 to vector<8x1xf32>
    %141 = arith.maximumf %139, %140 : vector<8x1xf32>
    %142 = vector.broadcast %135 : vector<8x1xf32> to vector<8x659xf32>
    %143 = arith.subf %126, %142 : vector<8x659xf32>
    %cst_106 = arith.constant 9.99999974E-6 : f32
    %144 = vector.broadcast %cst_106 : f32 to vector<8x1xf32>
    %145 = arith.addf %141, %144 : vector<8x1xf32>
    %146 = math.rsqrt %145 : vector<8x1xf32>
    %147 = vector.broadcast %146 : vector<8x1xf32> to vector<8x659xf32>
    %148 = arith.mulf %143, %147 : vector<8x659xf32>
    %cst_107 = arith.constant 5.000000e-01 : f32
    %149 = vector.broadcast %cst_107 : f32 to vector<8x659xf32>
    %150 = arith.mulf %149, %148 : vector<8x659xf32>
    %cst_108 = arith.constant 0.707106769 : f32
    %151 = vector.broadcast %cst_108 : f32 to vector<8x659xf32>
    %152 = arith.mulf %148, %151 : vector<8x659xf32>
    %153 = math.erf %152 : vector<8x659xf32>
    %cst_109 = arith.constant 1.000000e+00 : f32
    %154 = vector.broadcast %cst_109 : f32 to vector<8x659xf32>
    %155 = arith.addf %154, %153 : vector<8x659xf32>
    %156 = arith.mulf %150, %155 : vector<8x659xf32>
    %157 = vector.extract_strided_slice %156 {offsets = [0, 0], sizes = [8, 640], strides = [1, 1]} : vector<8x659xf32> to vector<8x640xf32>
    %158 = vector.extract_strided_slice %156 {offsets = [0, 1], sizes = [8, 640], strides = [1, 1]} : vector<8x659xf32> to vector<8x640xf32>
    %159 = arith.maximumf %157, %158 : vector<8x640xf32>
    %160 = vector.extract_strided_slice %156 {offsets = [0, 18], sizes = [8, 640], strides = [1, 1]} : vector<8x659xf32> to vector<8x640xf32>
    %161 = vector.extract_strided_slice %156 {offsets = [0, 19], sizes = [8, 640], strides = [1, 1]} : vector<8x659xf32> to vector<8x640xf32>
    %162 = arith.maximumf %160, %161 : vector<8x640xf32>
    %163 = arith.maximumf %159, %162 : vector<8x640xf32>
    %c0_110 = arith.constant 0 : index
    %c0_111 = arith.constant 0 : index
    %164 = vector.load %arg4[%c0_110, %c0_111] : memref<8x640xf32, #tpu.memory_space<vmem>>, vector<8x640xf32>
    tpu.vector_store %arg4[%c0_110, %c0_111], %163 {strides = array<i32>} : memref<8x640xf32, #tpu.memory_space<vmem>>, vector<8x640xf32>,
    return
  }
}

</mosaic_0001>

<llo_original>
// kernel: student_unet_down.1
$region0: #{student_unet_down.1}
  #allocation0 [shape = 'u32[]', space=smem, size = 0x4, offset = 0x4, fixed_abs, tag = 'smem constant byte address 0x4 - core index']
  #allocation1 [shape = 'u32[144,128]{1,0:T(1,128)}', space=vmem, size = 0x12000, scoped, tag = 'internal scratch']
  #allocation2 [shape = 'f32[8,896]{1,0:T(8,128)}', space=vmem, size = 0x7000, scoped, tag = 'scratch operand']
  %s0 = inlined_call_operand.vmem [shape: f32[8,768], index: 0, kind: input, shape index: {}]
  %s1 = inlined_call_operand.vmem [shape: f32[9,8,8], index: 1, kind: input, shape index: {}]
  %s2 = inlined_call_operand.vmem [shape: f32[9,8,8], index: 2, kind: input, shape index: {}]
  %s3 = inlined_call_operand.vmem [shape: f32[1,659], index: 3, kind: input, shape index: {}]
  %s4 = inlined_call_operand.vmem [shape: f32[8,640], index: 4, kind: output, shape index: {}]
  %s5 = sld [smem:[#allocation0]]
  $region26: #{student_unet_down.1} parent=0
    _
  %s7 = ssub.s32 1, %s5
  %s8 = scalar_select 0, %s7, %s5
  // Predicated region
  $region2: #{student_unet_down.1} parent=0 // pred_check
    _
  $region3: #{student_unet_down.1} parent=0 // pred_check_branch
    %10 = sbr.rel (0) target = $region5
  $region4: #{student_unet_down.1} parent=0 // pred_region
    _
  $region5: #{student_unet_down.1} parent=0 // pred_fallthru
    _
  // Predicated region
  $region6: #{student_unet_down.1} parent=0 // pred_check
    _
  $region7: #{student_unet_down.1} parent=0 // pred_check_branch
    %12 = sbr.rel (0) target = $region9
  $region8: #{student_unet_down.1} parent=0 // pred_region
    _
  $region9: #{student_unet_down.1} parent=0 // pred_fallthru
    _
  // Predicated region
  $region10: #{student_unet_down.1} parent=0 // pred_check
    _
  $region11: #{student_unet_down.1} parent=0 // pred_check_branch
    %14 = sbr.rel (0) target = $region13
  $region12: #{student_unet_down.1} parent=0 // pred_region
    _
  $region13: #{student_unet_down.1} parent=0 // pred_fallthru
    _
  // Predicated region
  $region14: #{student_unet_down.1} parent=0 // pred_check
    _
  $region15: #{student_unet_down.1} parent=0 // pred_check_branch
    %16 = sbr.rel (0) target = $region17
  $region16: #{student_unet_down.1} parent=0 // pred_region
    _
  $region17: #{student_unet_down.1} parent=0 // pred_fallthru
    _
  %v17 = vld [vmem:[%s3] sm:$0x3f]
  %v18 = vld [vmem:[%s1] sm:$0xff]
  %v19 = vld [vmem:[%s0] sm:$0xff]
  %v20 = vld [vmem:[%s0 + $0x8] sm:$0xff]
  %v21 = vld [vmem:[%s0 + $0x10] sm:$0xff]
  %v22 = vld [vmem:[%s0 + $0x18] sm:$0xff]
  %v23 = vld [vmem:[%s0 + $0x20] sm:$0xff]
  %s24 = scalar_lea.vmem %s1, 8
  %v25 = vld [vmem:[%s24] sm:$0xff]
  %v26 = vld [vmem:[%s0] sm:$0xff]
  %v27 = vld [vmem:[%s0 + $0x8] sm:$0xff]
  %v28 = vld [vmem:[%s0 + $0x10] sm:$0xff]
  %v29 = vld [vmem:[%s0 + $0x18] sm:$0xff]
  %v30 = vld [vmem:[%s0 + $0x20] sm:$0xff]
  %v31 = vld [vmem:[%s0 + $0x28] sm:$0xff]
  %38 = vrot.lane.b32.xlu0 %v26, 127
  %v39 = vpop.permute.xlu0 %38
  %40 = vrot.lane.b32.xlu0 %v27, 127
  %v41 = vpop.permute.xlu0 %40
  %42 = vrot.lane.b32.xlu0 %v28, 127
  %v43 = vpop.permute.xlu0 %42
  %44 = vrot.lane.b32.xlu0 %v29, 127
  %v45 = vpop.permute.xlu0 %44
  %46 = vrot.lane.b32.xlu0 %v30, 127
  %v47 = vpop.permute.xlu0 %46
  %48 = vrot.lane.b32.xlu0 %v31, 127
  %v49 = vpop.permute.xlu0 %48
  %vm50 = vcmask 1039360
  %v51 = vsel %vm50, %v39, %v41
  %v52 = vsel %vm50, %v41, %v43
  %v53 = vsel %vm50, %v43, %v45
  %v54 = vsel %vm50, %v45, %v47
  %v55 = vsel %vm50, %v47, %v49
  %vm61 = vcmask 64512
  %v63 = vsel %vm61, %v25, 0
  %65 = vmatprep.subr.mxu0 %v52
  %66 = vmatpush1.msra.mxu0 %v51
  %67 = vmatprep.subr.mxu0 0.0
  %68 = vmatpush1.msra.mxu0 0.0
  %69 = vmatprep.subr.mxu0 0.0
  %70 = vmatpush1.msra.mxu0 0.0
  %71 = vmatprep.subr.mxu0 0.0
  %72 = vmatpush1.msra.mxu0 0.0
  %73 = vmatprep.subr.mxu0 0.0
  %74 = vmatpush1.msra.mxu0 0.0
  %75 = vmatprep.subr.mxu0 0.0
  %76 = vmatpush1.msra.mxu0 0.0
  %77 = vmatprep.subr.mxu0 0.0
  %78 = vmatpush1.msra.mxu0 0.0
  %79 = vmatprep.subr.mxu0 0.0
  %80 = vmatpush1.msra.mxu0 0.0
  %81 = vmatprep.subr.mxu0 0.0
  %82 = vmatpush1.msra.mxu0 0.0
  %83 = vmatprep.subr.mxu0 0.0
  %84 = vmatpush1.msra.mxu0 0.0
  %85 = vmatprep.subr.mxu0 0.0
  %86 = vmatpush1.msra.mxu0 0.0
  %87 = vmatprep.subr.mxu0 0.0
  %88 = vmatpush1.msra.mxu0 0.0
  %89 = vmatprep.subr.mxu0 0.0
  %90 = vmatpush1.msra.mxu0 0.0
  %91 = vmatprep.subr.mxu0 0.0
  %92 = vmatpush1.msra.mxu0 0.0
  %93 = vmatprep.subr.mxu0 0.0
  %94 = vmatpush1.msra.mxu0 0.0
  %95 = vmatprep.subr.mxu0 0.0
  %96 = vmatpush1.msra.mxu0 0.0
  %97 = vmatprep.subr.mxu0 0.0
  %98 = vmatpush1.msra.mxu0 0.0
  %99 = vmatprep.subr.mxu0 0.0
  %100 = vmatpush1.msra.mxu0 0.0
  %101 = vmatprep.subr.mxu0 0.0
  %102 = vmatpush1.msra.mxu0 0.0
  %103 = vmatprep.subr.mxu0 0.0
  %104 = vmatpush1.msra.mxu0 0.0
  %105 = vmatprep.subr.mxu0 0.0
  %106 = vmatpush1.msra.mxu0 0.0
  %107 = vmatprep.subr.mxu0 0.0
  %108 = vmatpush1.msra.mxu0 0.0
  %109 = vmatprep.subr.mxu0 0.0
  %110 = vmatpush1.msra.mxu0 0.0
  %111 = vmatprep.subr.mxu0 0.0
  %112 = vmatpush1.msra.mxu0 0.0
  %113 = vmatprep.subr.mxu0 0.0
  %114 = vmatpush1.msra.mxu0 0.0
  %115 = vmatprep.subr.mxu0 0.0
  %116 = vmatpush1.msra.mxu0 0.0
  %117 = vmatprep.subr.mxu0 0.0
  %118 = vmatpush1.msra.mxu0 0.0
  %119 = vmatprep.subr.mxu0 0.0
  %120 = vmatpush1.msra.mxu0 0.0
  %121 = vmatprep.subr.mxu0 0.0
  %122 = vmatpush1.msra.mxu0 0.0
  %123 = vmatprep.subr.mxu0 0.0
  %124 = vmatpush1.msra.mxu0 0.0
  %125 = vmatprep.subr.mxu0 0.0
  %126 = vmatpush1.msra.mxu0 0.0
  %127 = vmatprep.subr.mxu0 0.0
  %128 = vmatpush1.msra.mxu0 0.0
  %129 = vmatprep.mubr.f32.mxu0 0.0
  %130 = vmatmul.mubr.f32.gmra.mrb[0].mxu0 %v63
  %v131 = vpop.f32.mrb[0].mxu0
  %v132 = vadd.f32 0.0, %v131
  %v133 = vpop.f32.mrb[0].mxu0
  %v134 = vadd.f32 0.0, %v133
  %135 = vdwg.mxu0
  %136 = vmatprep.subr.mxu0 %v54
  %137 = vmatpush1.msra.mxu0 %v53
  %138 = vmatprep.subr.mxu0 0.0
  %139 = vmatpush1.msra.mxu0 0.0
  %140 = vmatprep.subr.mxu0 0.0
  %141 = vmatpush1.msra.mxu0 0.0
  %142 = vmatprep.subr.mxu0 0.0
  %143 = vmatpush1.msra.mxu0 0.0
  %144 = vmatprep.subr.mxu0 0.0
  %145 = vmatpush1.msra.mxu0 0.0
  %146 = vmatprep.subr.mxu0 0.0
  %147 = vmatpush1.msra.mxu0 0.0
  %148 = vmatprep.subr.mxu0 0.0
  %149 = vmatpush1.msra.mxu0 0.0
  %150 = vmatprep.subr.mxu0 0.0
  %151 = vmatpush1.msra.mxu0 0.0
  %152 = vmatprep.subr.mxu0 0.0
  %153 = vmatpush1.msra.mxu0 0.0
  %154 = vmatprep.subr.mxu0 0.0
  %155 = vmatpush1.msra.mxu0 0.0
  %156 = vmatprep.subr.mxu0 0.0
  %157 = vmatpush1.msra.mxu0 0.0
  %158 = vmatprep.subr.mxu0 0.0
  %159 = vmatpush1.msra.mxu0 0.0
  %160 = vmatprep.subr.mxu0 0.0
  %161 = vmatpush1.msra.mxu0 0.0
  %162 = vmatprep.subr.mxu0 0.0
  %163 = vmatpush1.msra.mxu0 0.0
  %164 = vmatprep.subr.mxu0 0.0
  %165 = vmatpush1.msra.mxu0 0.0
  %166 = vmatprep.subr.mxu0 0.0
  %167 = vmatpush1.msra.mxu0 0.0
  %168 = vmatprep.subr.mxu0 0.0
  %169 = vmatpush1.msra.mxu0 0.0
  %170 = vmatprep.subr.mxu0 0.0
  %171 = vmatpush1.msra.mxu0 0.0
  %172 = vmatprep.subr.mxu0 0.0
  %173 = vmatpush1.msra.mxu0 0.0
  %174 = vmatprep.subr.mxu0 0.0
  %175 = vmatpush1.msra.mxu0 0.0
  %176 = vmatprep.subr.mxu0 0.0
  %177 = vmatpush1.msra.mxu0 0.0
  %178 = vmatprep.subr.mxu0 0.0
  %179 = vmatpush1.msra.mxu0 0.0
  %180 = vmatprep.subr.mxu0 0.0
  %181 = vmatpush1.msra.mxu0 0.0
  %182 = vmatprep.subr.mxu0 0.0
  %183 = vmatpush1.msra.mxu0 0.0
  %184 = vmatprep.subr.mxu0 0.0
  %185 = vmatpush1.msra.mxu0 0.0
  %186 = vmatprep.subr.mxu0 0.0
  %187 = vmatpush1.msra.mxu0 0.0
  %188 = vmatprep.subr.mxu0 0.0
  %189 = vmatpush1.msra.mxu0 0.0
  %190 = vmatprep.subr.mxu0 0.0
  %191 = vmatpush1.msra.mxu0 0.0
  %192 = vmatprep.subr.mxu0 0.0
  %193 = vmatpush1.msra.mxu0 0.0
  %194 = vmatprep.subr.mxu0 0.0
  %195 = vmatpush1.msra.mxu0 0.0
  %196 = vmatprep.subr.mxu0 0.0
  %197 = vmatpush1.msra.mxu0 0.0
  %198 = vmatprep.subr.mxu0 0.0
  %199 = vmatpush1.msra.mxu0 0.0
  %200 = vmatprep.mubr.f32.mxu0 0.0
  %201 = vmatmul.mubr.f32.gmra.mrb[0].mxu0 %v63
  %v202 = vpop.f32.mrb[0].mxu0
  %v203 = vadd.f32 0.0, %v202
  %v204 = vpop.f32.mrb[0].mxu0
  %v205 = vadd.f32 0.0, %v204
  %206 = vdwg.mxu0
  %207 = vmatprep.subr.mxu0 0.0
  %208 = vmatpush1.msra.mxu0 %v55
  %209 = vmatprep.subr.mxu0 0.0
  %210 = vmatpush1.msra.mxu0 0.0
  %211 = vmatprep.subr.mxu0 0.0
  %212 = vmatpush1.msra.mxu0 0.0
  %213 = vmatprep.subr.mxu0 0.0
  %214 = vmatpush1.msra.mxu0 0.0
  %215 = vmatprep.subr.mxu0 0.0
  %216 = vmatpush1.msra.mxu0 0.0
  %217 = vmatprep.subr.mxu0 0.0
  %218 = vmatpush1.msra.mxu0 0.0
  %219 = vmatprep.subr.mxu0 0.0
  %220 = vmatpush1.msra.mxu0 0.0
  %221 = vmatprep.subr.mxu0 0.0
  %222 = vmatpush1.msra.mxu0 0.0
  %223 = vmatprep.subr.mxu0 0.0
  %224 = vmatpush1.msra.mxu0 0.0
  %225 = vmatprep.subr.mxu0 0.0
  %226 = vmatpush1.msra.mxu0 0.0
  %227 = vmatprep.subr.mxu0 0.0
  %228 = vmatpush1.msra.mxu0 0.0
  %229 = vmatprep.subr.mxu0 0.0
  %230 = vmatpush1.msra.mxu0 0.0
  %231 = vmatprep.subr.mxu0 0.0
  %232 = vmatpush1.msra.mxu0 0.0
  %233 = vmatprep.subr.mxu0 0.0
  %234 = vmatpush1.msra.mxu0 0.0
  %235 = vmatprep.subr.mxu0 0.0
  %236 = vmatpush1.msra.mxu0 0.0
  %237 = vmatprep.subr.mxu0 0.0
  %238 = vmatpush1.msra.mxu0 0.0
  %239 = vmatprep.subr.mxu0 0.0
  %240 = vmatpush1.msra.mxu0 0.0
  %241 = vmatprep.subr.mxu0 0.0
  %242 = vmatpush1.msra.mxu0 0.0
  %243 = vmatprep.subr.mxu0 0.0
  %244 = vmatpush1.msra.mxu0 0.0
  %245 = vmatprep.subr.mxu0 0.0
  %246 = vmatpush1.msra.mxu0 0.0
  %247 = vmatprep.subr.mxu0 0.0
  %248 = vmatpush1.msra.mxu0 0.0
  %249 = vmatprep.subr.mxu0 0.0
  %250 = vmatpush1.msra.mxu0 0.0
  %251 = vmatprep.subr.mxu0 0.0
  %252 = vmatpush1.msra.mxu0 0.0
  %253 = vmatprep.subr.mxu0 0.0
  %254 = vmatpush1.msra.mxu0 0.0
  %255 = vmatprep.subr.mxu0 0.0
  %256 = vmatpush1.msra.mxu0 0.0
  %257 = vmatprep.subr.mxu0 0.0
  %258 = vmatpush1.msra.mxu0 0.0
  %259 = vmatprep.subr.mxu0 0.0
  %260 = vmatpush1.msra.mxu0 0.0
  %261 = vmatprep.subr.mxu0 0.0
  %262 = vmatpush1.msra.mxu0 0.0
  %263 = vmatprep.subr.mxu0 0.0
  %264 = vmatpush1.msra.mxu0 0.0
  %265 = vmatprep.subr.mxu0 0.0
  %266 = vmatpush1.msra.mxu0 0.0
  %267 = vmatprep.subr.mxu0 0.0
  %268 = vmatpush1.msra.mxu0 0.0
  %269 = vmatprep.subr.mxu0 0.0
  %270 = vmatpush1.msra.mxu0 0.0
  %271 = vmatprep.mubr.f32.mxu0 0.0
  %272 = vmatmul.mubr.f32.gmra.mrb[0].mxu0 %v63
  %v273 = vpop.f32.mrb[0].mxu0
  %v274 = vadd.f32 0.0, %v273
  %v275 = vpop.f32.mrb[0].mxu0
  %276 = vdwg.mxu0
  %v278 = vsel %vm61, %v18, 0
  %280 = vmatprep.subr.mxu0 %v20
  %281 = vmatpush1.msra.mxu0 %v19
  %282 = vmatprep.subr.mxu0 0.0
  %283 = vmatpush1.msra.mxu0 0.0
  %284 = vmatprep.subr.mxu0 0.0
  %285 = vmatpush1.msra.mxu0 0.0
  %286 = vmatprep.subr.mxu0 0.0
  %287 = vmatpush1.msra.mxu0 0.0
  %288 = vmatprep.subr.mxu0 0.0
  %289 = vmatpush1.msra.mxu0 0.0
  %290 = vmatprep.subr.mxu0 0.0
  %291 = vmatpush1.msra.mxu0 0.0
  %292 = vmatprep.subr.mxu0 0.0
  %293 = vmatpush1.msra.mxu0 0.0
  %294 = vmatprep.subr.mxu0 0.0
  %295 = vmatpush1.msra.mxu0 0.0
  %296 = vmatprep.subr.mxu0 0.0
  %297 = vmatpush1.msra.mxu0 0.0
  %298 = vmatprep.subr.mxu0 0.0
  %299 = vmatpush1.msra.mxu0 0.0
  %300 = vmatprep.subr.mxu0 0.0
  %301 = vmatpush1.msra.mxu0 0.0
  %302 = vmatprep.subr.mxu0 0.0
  %303 = vmatpush1.msra.mxu0 0.0
  %304 = vmatprep.subr.mxu0 0.0
  %305 = vmatpush1.msra.mxu0 0.0
  %306 = vmatprep.subr.mxu0 0.0
  %307 = vmatpush1.msra.mxu0 0.0
  %308 = vmatprep.subr.mxu0 0.0
  %309 = vmatpush1.msra.mxu0 0.0
  %310 = vmatprep.subr.mxu0 0.0
  %311 = vmatpush1.msra.mxu0 0.0
  %312 = vmatprep.subr.mxu0 0.0
  %313 = vmatpush1.msra.mxu0 0.0
  %314 = vmatprep.subr.mxu0 0.0
  %315 = vmatpush1.msra.mxu0 0.0
  %316 = vmatprep.subr.mxu0 0.0
  %317 = vmatpush1.msra.mxu0 0.0
  %318 = vmatprep.subr.mxu0 0.0
  %319 = vmatpush1.msra.mxu0 0.0
  %320 = vmatprep.subr.mxu0 0.0
  %321 = vmatpush1.msra.mxu0 0.0
  %322 = vmatprep.subr.mxu0 0.0
  %323 = vmatpush1.msra.mxu0 0.0
  %324 = vmatprep.subr.mxu0 0.0
  %325 = vmatpush1.msra.mxu0 0.0
  %326 = vmatprep.subr.mxu0 0.0
  %327 = vmatpush1.msra.mxu0 0.0
  %328 = vmatprep.subr.mxu0 0.0
  %329 = vmatpush1.msra.mxu0 0.0
  %330 = vmatprep.subr.mxu0 0.0
  %331 = vmatpush1.msra.mxu0 0.0
  %332 = vmatprep.subr.mxu0 0.0
  %333 = vmatpush1.msra.mxu0 0.0
  %334 = vmatprep.subr.mxu0 0.0
  %335 = vmatpush1.msra.mxu0 0.0
  %336 = vmatprep.subr.mxu0 0.0
  %337 = vmatpush1.msra.mxu0 0.0
  %338 = vmatprep.subr.mxu0 0.0
  %339 = vmatpush1.msra.mxu0 0.0
  %340 = vmatprep.subr.mxu0 0.0
  %341 = vmatpush1.msra.mxu0 0.0
  %342 = vmatprep.subr.mxu0 0.0
  %343 = vmatpush1.msra.mxu0 0.0
  %344 = vmatprep.mubr.f32.mxu0 0.0
  %345 = vmatmul.mubr.f32.gmra.mrb[0].mxu0 %v278
  %v346 = vpop.f32.mrb[0].mxu0
  %v347 = vadd.f32 %v132, %v346
  %v348 = vpop.f32.mrb[0].mxu0
  %v349 = vadd.f32 %v134, %v348
  %350 = vdwg.mxu0
  %351 = vmatprep.subr.mxu0 %v22
  %352 = vmatpush1.msra.mxu0 %v21
  %353 = vmatprep.subr.mxu0 0.0
  %354 = vmatpush1.msra.mxu0 0.0
  %355 = vmatprep.subr.mxu0 0.0
  %356 = vmatpush1.msra.mxu0 0.0
  %357 = vmatprep.subr.mxu0 0.0
  %358 = vmatpush1.msra.mxu0 0.0
  %359 = vmatprep.subr.mxu0 0.0
  %360 = vmatpush1.msra.mxu0 0.0
  %361 = vmatprep.subr.mxu0 0.0
  %362 = vmatpush1.msra.mxu0 0.0
  %363 = vmatprep.subr.mxu0 0.0
  %364 = vmatpush1.msra.mxu0 0.0
  %365 = vmatprep.subr.mxu0 0.0
  %366 = vmatpush1.msra.mxu0 0.0
  %367 = vmatprep.subr.mxu0 0.0
  %368 = vmatpush1.msra.mxu0 0.0
  %369 = vmatprep.subr.mxu0 0.0
  %370 = vmatpush1.msra.mxu0 0.0
  %371 = vmatprep.subr.mxu0 0.0
  %372 = vmatpush1.msra.mxu0 0.0
  %373 = vmatprep.subr.mxu0 0.0
  %374 = vmatpush1.msra.mxu0 0.0
  %375 = vmatprep.subr.mxu0 0.0
  %376 = vmatpush1.msra.mxu0 0.0
  %377 = vmatprep.subr.mxu0 0.0
  %378 = vmatpush1.msra.mxu0 0.0
  %379 = vmatprep.subr.mxu0 0.0
  %380 = vmatpush1.msra.mxu0 0.0
  %381 = vmatprep.subr.mxu0 0.0
  %382 = vmatpush1.msra.mxu0 0.0
  %383 = vmatprep.subr.mxu0 0.0
  %384 = vmatpush1.msra.mxu0 0.0
  %385 = vmatprep.subr.mxu0 0.0
  %386 = vmatpush1.msra.mxu0 0.0
  %387 = vmatprep.subr.mxu0 0.0
  %388 = vmatpush1.msra.mxu0 0.0
  %389 = vmatprep.subr.mxu0 0.0
  %390 = vmatpush1.msra.mxu0 0.0
  %391 = vmatprep.subr.mxu0 0.0
  %392 = vmatpush1.msra.mxu0 0.0
  %393 = vmatprep.subr.mxu0 0.0
  %394 = vmatpush1.msra.mxu0 0.0
  %395 = vmatprep.subr.mxu0 0.0
  %396 = vmatpush1.msra.mxu0 0.0
  %397 = vmatprep.subr.mxu0 0.0
  %398 = vmatpush1.msra.mxu0 0.0
  %399 = vmatprep.subr.mxu0 0.0
  %400 = vmatpush1.msra.mxu0 0.0
  %401 = vmatprep.subr.mxu0 0.0
  %402 = vmatpush1.msra.mxu0 0.0
  %403 = vmatprep.subr.mxu0 0.0
  %404 = vmatpush1.msra.mxu0 0.0
  %405 = vmatprep.subr.mxu0 0.0
  %406 = vmatpush1.msra.mxu0 0.0
  %407 = vmatprep.subr.mxu0 0.0
  %408 = vmatpush1.msra.mxu0 0.0
  %409 = vmatprep.subr.mxu0 0.0
  %410 = vmatpush1.msra.mxu0 0.0
  %411 = vmatprep.subr.mxu0 0.0
  %412 = vmatpush1.msra.mxu0 0.0
  %413 = vmatprep.subr.mxu0 0.0
  %414 = vmatpush1.msra.mxu0 0.0
  %415 = vmatprep.mubr.f32.mxu0 0.0
  %416 = vmatmul.mubr.f32.gmra.mrb[0].mxu0 %v278
  %v417 = vpop.f32.mrb[0].mxu0
  %v418 = vadd.f32 %v203, %v417
  %v419 = vpop.f32.mrb[0].mxu0
  %v420 = vadd.f32 %v205, %v419
  %421 = vdwg.mxu0
  %422 = vmatprep.subr.mxu0 0.0
  %423 = vmatpush1.msra.mxu0 %v23
  %424 = vmatprep.subr.mxu0 0.0
  %425 = vmatpush1.msra.mxu0 0.0
  %426 = vmatprep.subr.mxu0 0.0
  %427 = vmatpush1.msra.mxu0 0.0
  %428 = vmatprep.subr.mxu0 0.0
  %429 = vmatpush1.msra.mxu0 0.0
  %430 = vmatprep.subr.mxu0 0.0
  %431 = vmatpush1.msra.mxu0 0.0
  %432 = vmatprep.subr.mxu0 0.0
  %433 = vmatpush1.msra.mxu0 0.0
  %434 = vmatprep.subr.mxu0 0.0
  %435 = vmatpush1.msra.mxu0 0.0
  %436 = vmatprep.subr.mxu0 0.0
  %437 = vmatpush1.msra.mxu0 0.0
  %438 = vmatprep.subr.mxu0 0.0
  %439 = vmatpush1.msra.mxu0 0.0
  %440 = vmatprep.subr.mxu0 0.0
  %441 = vmatpush1.msra.mxu0 0.0
  %442 = vmatprep.subr.mxu0 0.0
  %443 = vmatpush1.msra.mxu0 0.0
  %444 = vmatprep.subr.mxu0 0.0
  %445 = vmatpush1.msra.mxu0 0.0
  %446 = vmatprep.subr.mxu0 0.0
  %447 = vmatpush1.msra.mxu0 0.0
  %448 = vmatprep.subr.mxu0 0.0
  %449 = vmatpush1.msra.mxu0 0.0
  %450 = vmatprep.subr.mxu0 0.0
  %451 = vmatpush1.msra.mxu0 0.0
  %452 = vmatprep.subr.mxu0 0.0
  %453 = vmatpush1.msra.mxu0 0.0
  %454 = vmatprep.subr.mxu0 0.0
  %455 = vmatpush1.msra.mxu0 0.0
  %456 = vmatprep.subr.mxu0 0.0
  %457 = vmatpush1.msra.mxu0 0.0
  %458 = vmatprep.subr.mxu0 0.0
  %459 = vmatpush1.msra.mxu0 0.0
  %460 = vmatprep.subr.mxu0 0.0
  %461 = vmatpush1.msra.mxu0 0.0
  %462 = vmatprep.subr.mxu0 0.0
  %463 = vmatpush1.msra.mxu0 0.0
  %464 = vmatprep.subr.mxu0 0.0
  %465 = vmatpush1.msra.mxu0 0.0
  %466 = vmatprep.subr.mxu0 0.0
  %467 = vmatpush1.msra.mxu0 0.0
  %468 = vmatprep.subr.mxu0 0.0
  %469 = vmatpush1.msra.mxu0 0.0
  %470 = vmatprep.subr.mxu0 0.0
  %471 = vmatpush1.msra.mxu0 0.0
  %472 = vmatprep.subr.mxu0 0.0
  %473 = vmatpush1.msra.mxu0 0.0
  %474 = vmatprep.subr.mxu0 0.0
  %475 = vmatpush1.msra.mxu0 0.0
  %476 = vmatprep.subr.mxu0 0.0
  %477 = vmatpush1.msra.mxu0 0.0
  %478 = vmatprep.subr.mxu0 0.0
  %479 = vmatpush1.msra.mxu0 0.0
  %480 = vmatprep.subr.mxu0 0.0
  %481 = vmatpush1.msra.mxu0 0.0
  %482 = vmatprep.subr.mxu0 0.0
  %483 = vmatpush1.msra.mxu0 0.0
  %484 = vmatprep.subr.mxu0 0.0
  %485 = vmatpush1.msra.mxu0 0.0
  %486 = vmatprep.mubr.f32.mxu0 0.0
  %487 = vmatmul.mubr.f32.gmra.mrb[0].mxu0 %v278
  %v488 = vpop.f32.mrb[0].mxu0
  %v489 = vadd.f32 %v274, %v488
  %v490 = vpop.f32.mrb[0].mxu0
  %491 = vdwg.mxu0
  %s492 = scalar_lea.vmem %s1, 16
  %v493 = vld [vmem:[%s492] sm:$0xff]
  %494 = vrot.lane.b32.xlu0 %v26, 126
  %v495 = vpop.permute.xlu0 %494
  %496 = vrot.lane.b32.xlu0 %v27, 126
  %v497 = vpop.permute.xlu0 %496
  %498 = vrot.lane.b32.xlu0 %v28, 126
  %v499 = vpop.permute.xlu0 %498
  %500 = vrot.lane.b32.xlu0 %v29, 126
  %v501 = vpop.permute.xlu0 %500
  %502 = vrot.lane.b32.xlu0 %v30, 126
  %v503 = vpop.permute.xlu0 %502
  %504 = vrot.lane.b32.xlu0 %v31, 126
  %v505 = vpop.permute.xlu0 %504
  %vm506 = vcmask 1031168
  %v507 = vsel %vm506, %v495, %v497
  %v508 = vsel %vm506, %v497, %v499
  %v509 = vsel %vm506, %v499, %v501
  %v510 = vsel %vm506, %v501, %v503
  %v511 = vsel %vm506, %v503, %v505
  %v518 = vsel %vm61, %v493, 0
  %520 = vmatprep.subr.mxu0 %v508
  %521 = vmatpush1.msra.mxu0 %v507
  %522 = vmatprep.subr.mxu0 0.0
  %523 = vmatpush1.msra.mxu0 0.0
  %524 = vmatprep.subr.mxu0 0.0
  %525 = vmatpush1.msra.mxu0 0.0
  %526 = vmatprep.subr.mxu0 0.0
  %527 = vmatpush1.msra.mxu0 0.0
  %528 = vmatprep.subr.mxu0 0.0
  %529 = vmatpush1.msra.mxu0 0.0
  %530 = vmatprep.subr.mxu0 0.0
  %531 = vmatpush1.msra.mxu0 0.0
  %532 = vmatprep.subr.mxu0 0.0
  %533 = vmatpush1.msra.mxu0 0.0
  %534 = vmatprep.subr.mxu0 0.0
  %535 = vmatpush1.msra.mxu0 0.0
  %536 = vmatprep.subr.mxu0 0.0
  %537 = vmatpush1.msra.mxu0 0.0
  %538 = vmatprep.subr.mxu0 0.0
  %539 = vmatpush1.msra.mxu0 0.0
  %540 = vmatprep.subr.mxu0 0.0
  %541 = vmatpush1.msra.mxu0 0.0
  %542 = vmatprep.subr.mxu0 0.0
  %543 = vmatpush1.msra.mxu0 0.0
  %544 = vmatprep.subr.mxu0 0.0
  %545 = vmatpush1.msra.mxu0 0.0
  %546 = vmatprep.subr.mxu0 0.0
  %547 = vmatpush1.msra.mxu0 0.0
  %548 = vmatprep.subr.mxu0 0.0
  %549 = vmatpush1.msra.mxu0 0.0
  %550 = vmatprep.subr.mxu0 0.0
  %551 = vmatpush1.msra.mxu0 0.0
  %552 = vmatprep.subr.mxu0 0.0
  %553 = vmatpush1.msra.mxu0 0.0
  %554 = vmatprep.subr.mxu0 0.0
  %555 = vmatpush1.msra.mxu0 0.0
  %556 = vmatprep.subr.mxu0 0.0
  %557 = vmatpush1.msra.mxu0 0.0
  %558 = vmatprep.subr.mxu0 0.0
  %559 = vmatpush1.msra.mxu0 0.0
  %560 = vmatprep.subr.mxu0 0.0
  %561 = vmatpush1.msra.mxu0 0.0
  %562 = vmatprep.subr.mxu0 0.0
  %563 = vmatpush1.msra.mxu0 0.0
  %564 = vmatprep.subr.mxu0 0.0
  %565 = vmatpush1.msra.mxu0 0.0
  %566 = vmatprep.subr.mxu0 0.0
  %567 = vmatpush1.msra.mxu0 0.0
  %568 = vmatprep.subr.mxu0 0.0
  %569 = vmatpush1.msra.mxu0 0.0
  %570 = vmatprep.subr.mxu0 0.0
  %571 = vmatpush1.msra.mxu0 0.0
  %572 = vmatprep.subr.mxu0 0.0
  %573 = vmatpush1.msra.mxu0 0.0
  %574 = vmatprep.subr.mxu0 0.0
  %575 = vmatpush1.msra.mxu0 0.0
  %576 = vmatprep.subr.mxu0 0.0
  %577 = vmatpush1.msra.mxu0 0.0
  %578 = vmatprep.subr.mxu0 0.0
  %579 = vmatpush1.msra.mxu0 0.0
  %580 = vmatprep.subr.mxu0 0.0
  %581 = vmatpush1.msra.mxu0 0.0
  %582 = vmatprep.subr.mxu0 0.0
  %583 = vmatpush1.msra.mxu0 0.0
  %584 = vmatprep.mubr.f32.mxu0 0.0
  %585 = vmatmul.mubr.f32.gmra.mrb[0].mxu0 %v518
  %v586 = vpop.f32.mrb[0].mxu0
  %v587 = vadd.f32 0.0, %v586
  %v588 = vpop.f32.mrb[0].mxu0
  %v589 = vadd.f32 0.0, %v588
  %590 = vdwg.mxu0
  %591 = vmatprep.subr.mxu0 %v510
  %592 = vmatpush1.msra.mxu0 %v509
  %593 = vmatprep.subr.mxu0 0.0
  %594 = vmatpush1.msra.mxu0 0.0
  %595 = vmatprep.subr.mxu0 0.0
  %596 = vmatpush1.msra.mxu0 0.0
  %597 = vmatprep.subr.mxu0 0.0
  %598 = vmatpush1.msra.mxu0 0.0
  %599 = vmatprep.subr.mxu0 0.0
  %600 = vmatpush1.msra.mxu0 0.0
  %601 = vmatprep.subr.mxu0 0.0
  %602 = vmatpush1.msra.mxu0 0.0
  %603 = vmatprep.subr.mxu0 0.0
  %604 = vmatpush1.msra.mxu0 0.0
  %605 = vmatprep.subr.mxu0 0.0
  %606 = vmatpush1.msra.mxu0 0.0
  %607 = vmatprep.subr.mxu0 0.0
  %608 = vmatpush1.msra.mxu0 0.0
  %609 = vmatprep.subr.mxu0 0.0
  %610 = vmatpush1.msra.mxu0 0.0
  %611 = vmatprep.subr.mxu0 0.0
  %612 = vmatpush1.msra.mxu0 0.0
  %613 = vmatprep.subr.mxu0 0.0
  %614 = vmatpush1.msra.mxu0 0.0
  %615 = vmatprep.subr.mxu0 0.0
  %616 = vmatpush1.msra.mxu0 0.0
  %617 = vmatprep.subr.mxu0 0.0
  %618 = vmatpush1.msra.mxu0 0.0
  %619 = vmatprep.subr.mxu0 0.0
  %620 = vmatpush1.msra.mxu0 0.0
  %621 = vmatprep.subr.mxu0 0.0
  %622 = vmatpush1.msra.mxu0 0.0
  %623 = vmatprep.subr.mxu0 0.0
  %624 = vmatpush1.msra.mxu0 0.0
  %625 = vmatprep.subr.mxu0 0.0
  %626 = vmatpush1.msra.mxu0 0.0
  %627 = vmatprep.subr.mxu0 0.0
  %628 = vmatpush1.msra.mxu0 0.0
  %629 = vmatprep.subr.mxu0 0.0
  %630 = vmatpush1.msra.mxu0 0.0
  %631 = vmatprep.subr.mxu0 0.0
  %632 = vmatpush1.msra.mxu0 0.0
  %633 = vmatprep.subr.mxu0 0.0
  %634 = vmatpush1.msra.mxu0 0.0
  %635 = vmatprep.subr.mxu0 0.0
  %636 = vmatpush1.msra.mxu0 0.0
  %637 = vmatprep.subr.mxu0 0.0
  %638 = vmatpush1.msra.mxu0 0.0
  %639 = vmatprep.subr.mxu0 0.0
  %640 = vmatpush1.msra.mxu0 0.0
  %641 = vmatprep.subr.mxu0 0.0
  %642 = vmatpush1.msra.mxu0 0.0
  %643 = vmatprep.subr.mxu0 0.0
  %644 = vmatpush1.msra.mxu0 0.0
  %645 = vmatprep.subr.mxu0 0.0
  %646 = vmatpush1.msra.mxu0 0.0
  %647 = vmatprep.subr.mxu0 0.0
  %648 = vmatpush1.msra.mxu0 0.0
  %649 = vmatprep.subr.mxu0 0.0
  %650 = vmatpush1.msra.mxu0 0.0
  %651 = vmatprep.subr.mxu0 0.0
  %652 = vmatpush1.msra.mxu0 0.0
  %653 = vmatprep.subr.mxu0 0.0
  %654 = vmatpush1.msra.mxu0 0.0
  %655 = vmatprep.mubr.f32.mxu0 0.0
  %656 = vmatmul.mubr.f32.gmra.mrb[0].mxu0 %v518
  %v657 = vpop.f32.mrb[0].mxu0
  %v658 = vadd.f32 0.0, %v657
  %v659 = vpop.f32.mrb[0].mxu0
  %v660 = vadd.f32 0.0, %v659
  %661 = vdwg.mxu0
  %662 = vmatprep.subr.mxu0 0.0
  %663 = vmatpush1.msra.mxu0 %v511
  %664 = vmatprep.subr.mxu0 0.0
  %665 = vmatpush1.msra.mxu0 0.0
  %666 = vmatprep.subr.mxu0 0.0
  %667 = vmatpush1.msra.mxu0 0.0
  %668 = vmatprep.subr.mxu0 0.0
  %669 = vmatpush1.msra.mxu0 0.0
  %670 = vmatprep.subr.mxu0 0.0
  %671 = vmatpush1.msra.mxu0 0.0
  %672 = vmatprep.subr.mxu0 0.0
  %673 = vmatpush1.msra.mxu0 0.0
  %674 = vmatprep.subr.mxu0 0.0
  %675 = vmatpush1.msra.mxu0 0.0
  %676 = vmatprep.subr.mxu0 0.0
  %677 = vmatpush1.msra.mxu0 0.0
  %678 = vmatprep.subr.mxu0 0.0
  %679 = vmatpush1.msra.mxu0 0.0
  %680 = vmatprep.subr.mxu0 0.0
  %681 = vmatpush1.msra.mxu0 0.0
  %682 = vmatprep.subr.mxu0 0.0
  %683 = vmatpush1.msra.mxu0 0.0
  %684 = vmatprep.subr.mxu0 0.0
  %685 = vmatpush1.msra.mxu0 0.0
  %686 = vmatprep.subr.mxu0 0.0
  %687 = vmatpush1.msra.mxu0 0.0
  %688 = vmatprep.subr.mxu0 0.0
  %689 = vmatpush1.msra.mxu0 0.0
  %690 = vmatprep.subr.mxu0 0.0
  %691 = vmatpush1.msra.mxu0 0.0
  %692 = vmatprep.subr.mxu0 0.0
  %693 = vmatpush1.msra.mxu0 0.0
  %694 = vmatprep.subr.mxu0 0.0
  %695 = vmatpush1.msra.mxu0 0.0
  %696 = vmatprep.subr.mxu0 0.0
  %697 = vmatpush1.msra.mxu0 0.0
  %698 = vmatprep.subr.mxu0 0.0
  %699 = vmatpush1.msra.mxu0 0.0
  %700 = vmatprep.subr.mxu0 0.0
  %701 = vmatpush1.msra.mxu0 0.0
  %702 = vmatprep.subr.mxu0 0.0
  %703 = vmatpush1.msra.mxu0 0.0
  %704 = vmatprep.subr.mxu0 0.0
  %705 = vmatpush1.msra.mxu0 0.0
  %706 = vmatprep.subr.mxu0 0.0
  %707 = vmatpush1.msra.mxu0 0.0
  %708 = vmatprep.subr.mxu0 0.0
  %709 = vmatpush1.msra.mxu0 0.0
  %710 = vmatprep.subr.mxu0 0.0
  %711 = vmatpush1.msra.mxu0 0.0
  %712 = vmatprep.subr.mxu0 0.0
  %713 = vmatpush1.msra.mxu0 0.0
  %714 = vmatprep.subr.mxu0 0.0
  %715 = vmatpush1.msra.mxu0 0.0
  %716 = vmatprep.subr.mxu0 0.0
  %717 = vmatpush1.msra.mxu0 0.0
  %718 = vmatprep.subr.mxu0 0.0
  %719 = vmatpush1.msra.mxu0 0.0
  %720 = vmatprep.subr.mxu0 0.0
  %721 = vmatpush1.msra.mxu0 0.0
  %722 = vmatprep.subr.mxu0 0.0
  %723 = vmatpush1.msra.mxu0 0.0
  %724 = vmatprep.subr.mxu0 0.0
  %725 = vmatpush1.msra.mxu0 0.0
  %726 = vmatprep.mubr.f32.mxu0 0.0
  %727 = vmatmul.mubr.f32.gmra.mrb[0].mxu0 %v518
  %v728 = vpop.f32.mrb[0].mxu0
  %v729 = vadd.f32 0.0, %v728
  %v730 = vpop.f32.mrb[0].mxu0
  %731 = vdwg.mxu0
  %v732 = vadd.f32 %v347, %v587
  %v733 = vadd.f32 %v349, %v589
  %v734 = vadd.f32 %v418, %v658
  %v735 = vadd.f32 %v420, %v660
  %v736 = vadd.f32 %v489, %v729
  %s737 = scalar_lea.vmem %s1, 24
  %v738 = vld [vmem:[%s737] sm:$0xff]
  %739 = vrot.lane.b32.xlu0 %v26, 110
  %v740 = vpop.permute.xlu0 %739
  %741 = vrot.lane.b32.xlu0 %v27, 110
  %v742 = vpop.permute.xlu0 %741
  %743 = vrot.lane.b32.xlu0 %v28, 110
  %v744 = vpop.permute.xlu0 %743
  %745 = vrot.lane.b32.xlu0 %v29, 110
  %v746 = vpop.permute.xlu0 %745
  %747 = vrot.lane.b32.xlu0 %v30, 110
  %v748 = vpop.permute.xlu0 %747
  %749 = vrot.lane.b32.xlu0 %v31, 110
  %v750 = vpop.permute.xlu0 %749
  %vm751 = vcmask 900096
  %v752 = vsel %vm751, %v740, %v742
  %v753 = vsel %vm751, %v742, %v744
  %v754 = vsel %vm751, %v744, %v746
  %v755 = vsel %vm751, %v746, %v748
  %v756 = vsel %vm751, %v748, %v750
  %v763 = vsel %vm61, %v738, 0
  %765 = vmatprep.subr.mxu0 %v753
  %766 = vmatpush1.msra.mxu0 %v752
  %767 = vmatprep.subr.mxu0 0.0
  %768 = vmatpush1.msra.mxu0 0.0
  %769 = vmatprep.subr.mxu0 0.0
  %770 = vmatpush1.msra.mxu0 0.0
  %771 = vmatprep.subr.mxu0 0.0
  %772 = vmatpush1.msra.mxu0 0.0
  %773 = vmatprep.subr.mxu0 0.0
  %774 = vmatpush1.msra.mxu0 0.0
  %775 = vmatprep.subr.mxu0 0.0
  %776 = vmatpush1.msra.mxu0 0.0
  %777 = vmatprep.subr.mxu0 0.0
  %778 = vmatpush1.msra.mxu0 0.0
  %779 = vmatprep.subr.mxu0 0.0
  %780 = vmatpush1.msra.mxu0 0.0
  %781 = vmatprep.subr.mxu0 0.0
  %782 = vmatpush1.msra.mxu0 0.0
  %783 = vmatprep.subr.mxu0 0.0
  %784 = vmatpush1.msra.mxu0 0.0
  %785 = vmatprep.subr.mxu0 0.0
  %786 = vmatpush1.msra.mxu0 0.0
  %787 = vmatprep.subr.mxu0 0.0
  %788 = vmatpush1.msra.mxu0 0.0
  %789 = vmatprep.subr.mxu0 0.0
  %790 = vmatpush1.msra.mxu0 0.0
  %791 = vmatprep.subr.mxu0 0.0
  %792 = vmatpush1.msra.mxu0 0.0
  %793 = vmatprep.subr.mxu0 0.0
  %794 = vmatpush1.msra.mxu0 0.0
  %795 = vmatprep.subr.mxu0 0.0
  %796 = vmatpush1.msra.mxu0 0.0
  %797 = vmatprep.subr.mxu0 0.0
  %798 = vmatpush1.msra.mxu0 0.0
  %799 = vmatprep.subr.mxu0 0.0
  %800 = vmatpush1.msra.mxu0 0.0
  %801 = vmatprep.subr.mxu0 0.0
  %802 = vmatpush1.msra.mxu0 0.0
  %803 = vmatprep.subr.mxu0 0.0
  %804 = vmatpush1.msra.mxu0 0.0
  %805 = vmatprep.subr.mxu0 0.0
  %806 = vmatpush1.msra.mxu0 0.0
  %807 = vmatprep.subr.mxu0 0.0
  %808 = vmatpush1.msra.mxu0 0.0
  %809 = vmatprep.subr.mxu0 0.0
  %810 = vmatpush1.msra.mxu0 0.0
  %811 = vmatprep.subr.mxu0 0.0
  %812 = vmatpush1.msra.mxu0 0.0
  %813 = vmatprep.subr.mxu0 0.0
  %814 = vmatpush1.msra.mxu0 0.0
  %815 = vmatprep.subr.mxu0 0.0
  %816 = vmatpush1.msra.mxu0 0.0
  %817 = vmatprep.subr.mxu0 0.0
  %818 = vmatpush1.msra.mxu0 0.0
  %819 = vmatprep.subr.mxu0 0.0
  %820 = vmatpush1.msra.mxu0 0.0
  %821 = vmatprep.subr.mxu0 0.0
  %822 = vmatpush1.msra.mxu0 0.0
  %823 = vmatprep.subr.mxu0 0.0
  %824 = vmatpush1.msra.mxu0 0.0
  %825 = vmatprep.subr.mxu0 0.0
  %826 = vmatpush1.msra.mxu0 0.0
  %827 = vmatprep.subr.mxu0 0.0
  %828 = vmatpush1.msra.mxu0 0.0
  %829 = vmatprep.mubr.f32.mxu0 0.0
  %830 = vmatmul.mubr.f32.gmra.mrb[0].mxu0 %v763
  %v831 = vpop.f32.mrb[0].mxu0
  %v832 = vadd.f32 0.0, %v831
  %v833 = vpop.f32.mrb[0].mxu0
  %v834 = vadd.f32 0.0, %v833
  %835 = vdwg.mxu0
  %836 = vmatprep.subr.mxu0 %v755
  %837 = vmatpush1.msra.mxu0 %v754
  %838 = vmatprep.subr.mxu0 0.0
  %839 = vmatpush1.msra.mxu0 0.0
  %840 = vmatprep.subr.mxu0 0.0
  %841 = vmatpush1.msra.mxu0 0.0
  %842 = vmatprep.subr.mxu0 0.0
  %843 = vmatpush1.msra.mxu0 0.0
  %844 = vmatprep.subr.mxu0 0.0
  %845 = vmatpush1.msra.mxu0 0.0
  %846 = vmatprep.subr.mxu0 0.0
  %847 = vmatpush1.msra.mxu0 0.0
  %848 = vmatprep.subr.mxu0 0.0
  %849 = vmatpush1.msra.mxu0 0.0
  %850 = vmatprep.subr.mxu0 0.0
  %851 = vmatpush1.msra.mxu0 0.0
  %852 = vmatprep.subr.mxu0 0.0
  %853 = vmatpush1.msra.mxu0 0.0
  %854 = vmatprep.subr.mxu0 0.0
  %855 = vmatpush1.msra.mxu0 0.0
  %856 = vmatprep.subr.mxu0 0.0
  %857 = vmatpush1.msra.mxu0 0.0
  %858 = vmatprep.subr.mxu0 0.0
  %859 = vmatpush1.msra.mxu0 0.0
  %860 = vmatprep.subr.mxu0 0.0
  %861 = vmatpush1.msra.mxu0 0.0
  %862 = vmatprep.subr.mxu0 0.0
  %863 = vmatpush1.msra.mxu0 0.0
  %864 = vmatprep.subr.mxu0 0.0
  %865 = vmatpush1.msra.mxu0 0.0
  %866 = vmatprep.subr.mxu0 0.0
  %867 = vmatpush1.msra.mxu0 0.0
  %868 = vmatprep.subr.mxu0 0.0
  %869 = vmatpush1.msra.mxu0 0.0
  %870 = vmatprep.subr.mxu0 0.0
  %871 = vmatpush1.msra.mxu0 0.0
  %872 = vmatprep.subr.mxu0 0.0
  %873 = vmatpush1.msra.mxu0 0.0
  %874 = vmatprep.subr.mxu0 0.0
  %875 = vmatpush1.msra.mxu0 0.0
  %876 = vmatprep.subr.mxu0 0.0
  %877 = vmatpush1.msra.mxu0 0.0
  %878 = vmatprep.subr.mxu0 0.0
  %879 = vmatpush1.msra.mxu0 0.0
  %880 = vmatprep.subr.mxu0 0.0
  %881 = vmatpush1.msra.mxu0 0.0
  %882 = vmatprep.subr.mxu0 0.0
  %883 = vmatpush1.msra.mxu0 0.0
  %884 = vmatprep.subr.mxu0 0.0
  %885 = vmatpush1.msra.mxu0 0.0
  %886 = vmatprep.subr.mxu0 0.0
  %887 = vmatpush1.msra.mxu0 0.0
  %888 = vmatprep.subr.mxu0 0.0
  %889 = vmatpush1.msra.mxu0 0.0
  %890 = vmatprep.subr.mxu0 0.0
  %891 = vmatpush1.msra.mxu0 0.0
  %892 = vmatprep.subr.mxu0 0.0
  %893 = vmatpush1.msra.mxu0 0.0
  %894 = vmatprep.subr.mxu0 0.0
  %895 = vmatpush1.msra.mxu0 0.0
  %896 = vmatprep.subr.mxu0 0.0
  %897 = vmatpush1.msra.mxu0 0.0
  %898 = vmatprep.subr.mxu0 0.0
  %899 = vmatpush1.msra.mxu0 0.0
  %900 = vmatprep.mubr.f32.mxu0 0.0
  %901 = vmatmul.mubr.f32.gmra.mrb[0].mxu0 %v763
  %v902 = vpop.f32.mrb[0].mxu0
  %v903 = vadd.f32 0.0, %v902
  %v904 = vpop.f32.mrb[0].mxu0
  %v905 = vadd.f32 0.0, %v904
  %906 = vdwg.mxu0
  %907 = vmatprep.subr.mxu0 0.0
  %908 = vmatpush1.msra.mxu0 %v756
  %909 = vmatprep.subr.mxu0 0.0
  %910 = vmatpush1.msra.mxu0 0.0
  %911 = vmatprep.subr.mxu0 0.0
  %912 = vmatpush1.msra.mxu0 0.0
  %913 = vmatprep.subr.mxu0 0.0
  %914 = vmatpush1.msra.mxu0 0.0
  %915 = vmatprep.subr.mxu0 0.0
  %916 = vmatpush1.msra.mxu0 0.0
  %917 = vmatprep.subr.mxu0 0.0
  %918 = vmatpush1.msra.mxu0 0.0
  %919 = vmatprep.subr.mxu0 0.0
  %920 = vmatpush1.msra.mxu0 0.0
  %921 = vmatprep.subr.mxu0 0.0
  %922 = vmatpush1.msra.mxu0 0.0
  %923 = vmatprep.subr.mxu0 0.0
  %924 = vmatpush1.msra.mxu0 0.0
  %925 = vmatprep.subr.mxu0 0.0
  %926 = vmatpush1.msra.mxu0 0.0
  %927 = vmatprep.subr.mxu0 0.0
  %928 = vmatpush1.msra.mxu0 0.0
  %929 = vmatprep.subr.mxu0 0.0
  %930 = vmatpush1.msra.mxu0 0.0
  %931 = vmatprep.subr.mxu0 0.0
  %932 = vmatpush1.msra.mxu0 0.0
  %933 = vmatprep.subr.mxu0 0.0
  %934 = vmatpush1.msra.mxu0 0.0
  %935 = vmatprep.subr.mxu0 0.0
  %936 = vmatpush1.msra.mxu0 0.0
  %937 = vmatprep.subr.mxu0 0.0
  %938 = vmatpush1.msra.mxu0 0.0
  %939 = vmatprep.subr.mxu0 0.0
  %940 = vmatpush1.msra.mxu0 0.0
  %941 = vmatprep.subr.mxu0 0.0
  %942 = vmatpush1.msra.mxu0 0.0
  %943 = vmatprep.subr.mxu0 0.0
  %944 = vmatpush1.msra.mxu0 0.0
  %945 = vmatprep.subr.mxu0 0.0
  %946 = vmatpush1.msra.mxu0 0.0
  %947 = vmatprep.subr.mxu0 0.0
  %948 = vmatpush1.msra.mxu0 0.0
  %949 = vmatprep.subr.mxu0 0.0
  %950 = vmatpush1.msra.mxu0 0.0
  %951 = vmatprep.subr.mxu0 0.0
  %952 = vmatpush1.msra.mxu0 0.0
  %953 = vmatprep.subr.mxu0 0.0
  %954 = vmatpush1.msra.mxu0 0.0
  %955 = vmatprep.subr.mxu0 0.0
  %956 = vmatpush1.msra.mxu0 0.0
  %957 = vmatprep.subr.mxu0 0.0
  %958 = vmatpush1.msra.mxu0 0.0
  %959 = vmatprep.subr.mxu0 0.0
  %960 = vmatpush1.msra.mxu0 0.0
  %961 = vmatprep.subr.mxu0 0.0
  %962 = vmatpush1.msra.mxu0 0.0
  %963 = vmatprep.subr.mxu0 0.0
  %964 = vmatpush1.msra.mxu0 0.0
  %965 = vmatprep.subr.mxu0 0.0
  %966 = vmatpush1.msra.mxu0 0.0
  %967 = vmatprep.subr.mxu0 0.0
  %968 = vmatpush1.msra.mxu0 0.0
  %969 = vmatprep.subr.mxu0 0.0
  %970 = vmatpush1.msra.mxu0 0.0
  %971 = vmatprep.mubr.f32.mxu0 0.0
  %972 = vmatmul.mubr.f32.gmra.mrb[0].mxu0 %v763
  %v973 = vpop.f32.mrb[0].mxu0
  %v974 = vadd.f32 0.0, %v973
  %v975 = vpop.f32.mrb[0].mxu0
  %976 = vdwg.mxu0
  %v977 = vadd.f32 %v732, %v832
  %v978 = vadd.f32 %v733, %v834
  %v979 = vadd.f32 %v734, %v903
  %v980 = vadd.f32 %v735, %v905
  %v981 = vadd.f32 %v736, %v974
  %s982 = scalar_lea.vmem %s1, 32
  %v983 = vld [vmem:[%s982] sm:$0xff]
  %984 = vrot.lane.b32.xlu0 %v26, 109
  %v985 = vpop.permute.xlu0 %984
  %986 = vrot.lane.b32.xlu0 %v27, 109
  %v987 = vpop.permute.xlu0 %986
  %988 = vrot.lane.b32.xlu0 %v28, 109
  %v989 = vpop.permute.xlu0 %988
  %990 = vrot.lane.b32.xlu0 %v29, 109
  %v991 = vpop.permute.xlu0 %990
  %992 = vrot.lane.b32.xlu0 %v30, 109
  %v993 = vpop.permute.xlu0 %992
  %994 = vrot.lane.b32.xlu0 %v31, 109
  %v995 = vpop.permute.xlu0 %994
  %vm996 = vcmask 891904
  %v997 = vsel %vm996, %v985, %v987
  %v998 = vsel %vm996, %v987, %v989
  %v999 = vsel %vm996, %v989, %v991
  %v1000 = vsel %vm996, %v991, %v993
  %v1001 = vsel %vm996, %v993, %v995
  %v1008 = vsel %vm61, %v983, 0
  %1010 = vmatprep.subr.mxu0 %v998
  %1011 = vmatpush1.msra.mxu0 %v997
  %1012 = vmatprep.subr.mxu0 0.0
  %1013 = vmatpush1.msra.mxu0 0.0
  %1014 = vmatprep.subr.mxu0 0.0
  %1015 = vmatpush1.msra.mxu0 0.0
  %1016 = vmatprep.subr.mxu0 0.0
  %1017 = vmatpush1.msra.mxu0 0.0
  %1018 = vmatprep.subr.mxu0 0.0
  %1019 = vmatpush1.msra.mxu0 0.0
  %1020 = vmatprep.subr.mxu0 0.0
  %1021 = vmatpush1.msra.mxu0 0.0
  %1022 = vmatprep.subr.mxu0 0.0
  %1023 = vmatpush1.msra.mxu0 0.0
  %1024 = vmatprep.subr.mxu0 0.0
  %1025 = vmatpush1.msra.mxu0 0.0
  %1026 = vmatprep.subr.mxu0 0.0
  %1027 = vmatpush1.msra.mxu0 0.0
  %1028 = vmatprep.subr.mxu0 0.0
  %1029 = vmatpush1.msra.mxu0 0.0
  %1030 = vmatprep.subr.mxu0 0.0
  %1031 = vmatpush1.msra.mxu0 0.0
  %1032 = vmatprep.subr.mxu0 0.0
  %1033 = vmatpush1.msra.mxu0 0.0
  %1034 = vmatprep.subr.mxu0 0.0
  %1035 = vmatpush1.msra.mxu0 0.0
  %1036 = vmatprep.subr.mxu0 0.0
  %1037 = vmatpush1.msra.mxu0 0.0
  %1038 = vmatprep.subr.mxu0 0.0
  %1039 = vmatpush1.msra.mxu0 0.0
  %1040 = vmatprep.subr.mxu0 0.0
  %1041 = vmatpush1.msra.mxu0 0.0
  %1042 = vmatprep.subr.mxu0 0.0
  %1043 = vmatpush1.msra.mxu0 0.0
  %1044 = vmatprep.subr.mxu0 0.0
  %1045 = vmatpush1.msra.mxu0 0.0
  %1046 = vmatprep.subr.mxu0 0.0
  %1047 = vmatpush1.msra.mxu0 0.0
  %1048 = vmatprep.subr.mxu0 0.0
  %1049 = vmatpush1.msra.mxu0 0.0
  %1050 = vmatprep.subr.mxu0 0.0
  %1051 = vmatpush1.msra.mxu0 0.0
  %1052 = vmatprep.subr.mxu0 0.0
  %1053 = vmatpush1.msra.mxu0 0.0
  %1054 = vmatprep.subr.mxu0 0.0
  %1055 = vmatpush1.msra.mxu0 0.0
  %1056 = vmatprep.subr.mxu0 0.0
  %1057 = vmatpush1.msra.mxu0 0.0
  %1058 = vmatprep.subr.mxu0 0.0
  %1059 = vmatpush1.msra.mxu0 0.0
  %1060 = vmatprep.subr.mxu0 0.0
  %1061 = vmatpush1.msra.mxu0 0.0
  %1062 = vmatprep.subr.mxu0 0.0
  %1063 = vmatpush1.msra.mxu0 0.0
  %1064 = vmatprep.subr.mxu0 0.0
  %1065 = vmatpush1.msra.mxu0 0.0
  %1066 = vmatprep.subr.mxu0 0.0
  %1067 = vmatpush1.msra.mxu0 0.0
  %1068 = vmatprep.subr.mxu0 0.0
  %1069 = vmatpush1.msra.mxu0 0.0
  %1070 = vmatprep.subr.mxu0 0.0
  %1071 = vmatpush1.msra.mxu0 0.0
  %1072 = vmatprep.subr.mxu0 0.0
  %1073 = vmatpush1.msra.mxu0 0.0
  %1074 = vmatprep.mubr.f32.mxu0 0.0
  %1075 = vmatmul.mubr.f32.gmra.mrb[0].mxu0 %v1008
  %v1076 = vpop.f32.mrb[0].mxu0
  %v1077 = vadd.f32 0.0, %v1076
  %v1078 = vpop.f32.mrb[0].mxu0
  %v1079 = vadd.f32 0.0, %v1078
  %1080 = vdwg.mxu0
  %1081 = vmatprep.subr.mxu0 %v1000
  %1082 = vmatpush1.msra.mxu0 %v999
  %1083 = vmatprep.subr.mxu0 0.0
  %1084 = vmatpush1.msra.mxu0 0.0
  %1085 = vmatprep.subr.mxu0 0.0
  %1086 = vmatpush1.msra.mxu0 0.0
  %1087 = vmatprep.subr.mxu0 0.0
  %1088 = vmatpush1.msra.mxu0 0.0
  %1089 = vmatprep.subr.mxu0 0.0
  %1090 = vmatpush1.msra.mxu0 0.0
  %1091 = vmatprep.subr.mxu0 0.0
  %1092 = vmatpush1.msra.mxu0 0.0
  %1093 = vmatprep.subr.mxu0 0.0
  %1094 = vmatpush1.msra.mxu0 0.0
  %1095 = vmatprep.subr.mxu0 0.0
  %1096 = vmatpush1.msra.mxu0 0.0
  %1097 = vmatprep.subr.mxu0 0.0
  %1098 = vmatpush1.msra.mxu0 0.0
  %1099 = vmatprep.subr.mxu0 0.0
  %1100 = vmatpush1.msra.mxu0 0.0
  %1101 = vmatprep.subr.mxu0 0.0
  %1102 = vmatpush1.msra.mxu0 0.0
  %1103 = vmatprep.subr.mxu0 0.0
  %1104 = vmatpush1.msra.mxu0 0.0
  %1105 = vmatprep.subr.mxu0 0.0
  %1106 = vmatpush1.msra.mxu0 0.0
  %1107 = vmatprep.subr.mxu0 0.0
  %1108 = vmatpush1.msra.mxu0 0.0
  %1109 = vmatprep.subr.mxu0 0.0
  %1110 = vmatpush1.msra.mxu0 0.0
  %1111 = vmatprep.subr.mxu0 0.0
  %1112 = vmatpush1.msra.mxu0 0.0
  %1113 = vmatprep.subr.mxu0 0.0
  %1114 = vmatpush1.msra.mxu0 0.0
  %1115 = vmatprep.subr.mxu0 0.0
  %1116 = vmatpush1.msra.mxu0 0.0
  %1117 = vmatprep.subr.mxu0 0.0
  %1118 = vmatpush1.msra.mxu0 0.0
  %1119 = vmatprep.subr.mxu0 0.0
  %1120 = vmatpush1.msra.mxu0 0.0
  %1121 = vmatprep.subr.mxu0 0.0
  %1122 = vmatpush1.msra.mxu0 0.0
  %1123 = vmatprep.subr.mxu0 0.0
  %1124 = vmatpush1.msra.mxu0 0.0
  %1125 = vmatprep.subr.mxu0 0.0
  %1126 = vmatpush1.msra.mxu0 0.0
  %1127 = vmatprep.subr.mxu0 0.0
  %1128 = vmatpush1.msra.mxu0 0.0
  %1129 = vmatprep.subr.mxu0 0.0
  %1130 = vmatpush1.msra.mxu0 0.0
  %1131 = vmatprep.subr.mxu0 0.0
  %1132 = vmatpush1.msra.mxu0 0.0
  %1133 = vmatprep.subr.mxu0 0.0
  %1134 = vmatpush1.msra.mxu0 0.0
  %1135 = vmatprep.subr.mxu0 0.0
  %1136 = vmatpush1.msra.mxu0 0.0
  %1137 = vmatprep.subr.mxu0 0.0
  %1138 = vmatpush1.msra.mxu0 0.0
  %1139 = vmatprep.subr.mxu0 0.0
  %1140 = vmatpush1.msra.mxu0 0.0
  %1141 = vmatprep.subr.mxu0 0.0
  %1142 = vmatpush1.msra.mxu0 0.0
  %1143 = vmatprep.subr.mxu0 0.0
  %1144 = vmatpush1.msra.mxu0 0.0
  %1145 = vmatprep.mubr.f32.mxu0 0.0
  %1146 = vmatmul.mubr.f32.gmra.mrb[0].mxu0 %v1008
  %v1147 = vpop.f32.mrb[0].mxu0
  %v1148 = vadd.f32 0.0, %v1147
  %v1149 = vpop.f32.mrb[0].mxu0
  %v1150 = vadd.f32 0.0, %v1149
  %1151 = vdwg.mxu0
  %1152 = vmatprep.subr.mxu0 0.0
  %1153 = vmatpush1.msra.mxu0 %v1001
  %1154 = vmatprep.subr.mxu0 0.0
  %1155 = vmatpush1.msra.mxu0 0.0
  %1156 = vmatprep.subr.mxu0 0.0
  %1157 = vmatpush1.msra.mxu0 0.0
  %1158 = vmatprep.subr.mxu0 0.0
  %1159 = vmatpush1.msra.mxu0 0.0
  %1160 = vmatprep.subr.mxu0 0.0
  %1161 = vmatpush1.msra.mxu0 0.0
  %1162 = vmatprep.subr.mxu0 0.0
  %1163 = vmatpush1.msra.mxu0 0.0
  %1164 = vmatprep.subr.mxu0 0.0
  %1165 = vmatpush1.msra.mxu0 0.0
  %1166 = vmatprep.subr.mxu0 0.0
  %1167 = vmatpush1.msra.mxu0 0.0
  %1168 = vmatprep.subr.mxu0 0.0
  %1169 = vmatpush1.msra.mxu0 0.0
  %1170 = vmatprep.subr.mxu0 0.0
  %1171 = vmatpush1.msra.mxu0 0.0
  %1172 = vmatprep.subr.mxu0 0.0
  %1173 = vmatpush1.msra.mxu0 0.0
  %1174 = vmatprep.subr.mxu0 0.0
  %1175 = vmatpush1.msra.mxu0 0.0
  %1176 = vmatprep.subr.mxu0 0.0
  %1177 = vmatpush1.msra.mxu0 0.0
  %1178 = vmatprep.subr.mxu0 0.0
  %1179 = vmatpush1.msra.mxu0 0.0
  %1180 = vmatprep.subr.mxu0 0.0
  %1181 = vmatpush1.msra.mxu0 0.0
  %1182 = vmatprep.subr.mxu0 0.0
  %1183 = vmatpush1.msra.mxu0 0.0
  %1184 = vmatprep.subr.mxu0 0.0
  %1185 = vmatpush1.msra.mxu0 0.0
  %1186 = vmatprep.subr.mxu0 0.0
  %1187 = vmatpush1.msra.mxu0 0.0
  %1188 = vmatprep.subr.mxu0 0.0
  %1189 = vmatpush1.msra.mxu0 0.0
  %1190 = vmatprep.subr.mxu0 0.0
  %1191 = vmatpush1.msra.mxu0 0.0
  %1192 = vmatprep.subr.mxu0 0.0
  %1193 = vmatpush1.msra.mxu0 0.0
  %1194 = vmatprep.subr.mxu0 0.0
  %1195 = vmatpush1.msra.mxu0 0.0
  %1196 = vmatprep.subr.mxu0 0.0
  %1197 = vmatpush1.msra.mxu0 0.0
  %1198 = vmatprep.subr.mxu0 0.0
  %1199 = vmatpush1.msra.mxu0 0.0
  %1200 = vmatprep.subr.mxu0 0.0
  %1201 = vmatpush1.msra.mxu0 0.0
  %1202 = vmatprep.subr.mxu0 0.0
  %1203 = vmatpush1.msra.mxu0 0.0
  %1204 = vmatprep.subr.mxu0 0.0
  %1205 = vmatpush1.msra.mxu0 0.0
  %1206 = vmatprep.subr.mxu0 0.0
  %1207 = vmatpush1.msra.mxu0 0.0
  %1208 = vmatprep.subr.mxu0 0.0
  %1209 = vmatpush1.msra.mxu0 0.0
  %1210 = vmatprep.subr.mxu0 0.0
  %1211 = vmatpush1.msra.mxu0 0.0
  %1212 = vmatprep.subr.mxu0 0.0
  %1213 = vmatpush1.msra.mxu0 0.0
  %1214 = vmatprep.subr.mxu0 0.0
  %1215 = vmatpush1.msra.mxu0 0.0
  %1216 = vmatprep.mubr.f32.mxu0 0.0
  %1217 = vmatmul.mubr.f32.gmra.mrb[0].mxu0 %v1008
  %v1218 = vpop.f32.mrb[0].mxu0
  %v1219 = vadd.f32 0.0, %v1218
  %v1220 = vpop.f32.mrb[0].mxu0
  %1221 = vdwg.mxu0
  %v1222 = vadd.f32 %v977, %v1077
  %v1223 = vadd.f32 %v978, %v1079
  %v1224 = vadd.f32 %v979, %v1148
  %v1225 = vadd.f32 %v980, %v1150
  %v1226 = vadd.f32 %v981, %v1219
  %s1227 = scalar_lea.vmem %s1, 40
  %v1228 = vld [vmem:[%s1227] sm:$0xff]
  %1229 = vrot.lane.b32.xlu0 %v26, 108
  %v1230 = vpop.permute.xlu0 %1229
  %1231 = vrot.lane.b32.xlu0 %v27, 108
  %v1232 = vpop.permute.xlu0 %1231
  %1233 = vrot.lane.b32.xlu0 %v28, 108
  %v1234 = vpop.permute.xlu0 %1233
  %1235 = vrot.lane.b32.xlu0 %v29, 108
  %v1236 = vpop.permute.xlu0 %1235
  %1237 = vrot.lane.b32.xlu0 %v30, 108
  %v1238 = vpop.permute.xlu0 %1237
  %1239 = vrot.lane.b32.xlu0 %v31, 108
  %v1240 = vpop.permute.xlu0 %1239
  %vm1241 = vcmask 883712
  %v1242 = vsel %vm1241, %v1230, %v1232
  %v1243 = vsel %vm1241, %v1232, %v1234
  %v1244 = vsel %vm1241, %v1234, %v1236
  %v1245 = vsel %vm1241, %v1236, %v1238
  %v1246 = vsel %vm1241, %v1238, %v1240
  %v1253 = vsel %vm61, %v1228, 0
  %1255 = vmatprep.subr.mxu0 %v1243
  %1256 = vmatpush1.msra.mxu0 %v1242
  %1257 = vmatprep.subr.mxu0 0.0
  %1258 = vmatpush1.msra.mxu0 0.0
  %1259 = vmatprep.subr.mxu0 0.0
  %1260 = vmatpush1.msra.mxu0 0.0
  %1261 = vmatprep.subr.mxu0 0.0
  %1262 = vmatpush1.msra.mxu0 0.0
  %1263 = vmatprep.subr.mxu0 0.0
  %1264 = vmatpush1.msra.mxu0 0.0
  %1265 = vmatprep.subr.mxu0 0.0
  %1266 = vmatpush1.msra.mxu0 0.0
  %1267 = vmatprep.subr.mxu0 0.0
  %1268 = vmatpush1.msra.mxu0 0.0
  %1269 = vmatprep.subr.mxu0 0.0
  %1270 = vmatpush1.msra.mxu0 0.0
  %1271 = vmatprep.subr.mxu0 0.0
  %1272 = vmatpush1.msra.mxu0 0.0
  %1273 = vmatprep.subr.mxu0 0.0
  %1274 = vmatpush1.msra.mxu0 0.0
  %1275 = vmatprep.subr.mxu0 0.0
  %1276 = vmatpush1.msra.mxu0 0.0
  %1277 = vmatprep.subr.mxu0 0.0
  %1278 = vmatpush1.msra.mxu0 0.0
  %1279 = vmatprep.subr.mxu0 0.0
  %1280 = vmatpush1.msra.mxu0 0.0
  %1281 = vmatprep.subr.mxu0 0.0
  %1282 = vmatpush1.msra.mxu0 0.0
  %1283 = vmatprep.subr.mxu0 0.0
  %1284 = vmatpush1.msra.mxu0 0.0
  %1285 = vmatprep.subr.mxu0 0.0
  %1286 = vmatpush1.msra.mxu0 0.0
  %1287 = vmatprep.subr.mxu0 0.0
  %1288 = vmatpush1.msra.mxu0 0.0
  %1289 = vmatprep.subr.mxu0 0.0
  %1290 = vmatpush1.msra.mxu0 0.0
  %1291 = vmatprep.subr.mxu0 0.0
  %1292 = vmatpush1.msra.mxu0 0.0
  %1293 = vmatprep.subr.mxu0 0.0
  %1294 = vmatpush1.msra.mxu0 0.0
  %1295 = vmatprep.subr.mxu0 0.0
  %1296 = vmatpush1.msra.mxu0 0.0
  %1297 = vmatprep.subr.mxu0 0.0
  %1298 = vmatpush1.msra.mxu0 0.0
  %1299 = vmatprep.subr.mxu0 0.0
  %1300 = vmatpush1.msra.mxu0 0.0
  %1301 = vmatprep.subr.mxu0 0.0
  %1302 = vmatpush1.msra.mxu0 0.0
  %1303 = vmatprep.subr.mxu0 0.0
  %1304 = vmatpush1.msra.mxu0 0.0
  %1305 = vmatprep.subr.mxu0 0.0
  %1306 = vmatpush1.msra.mxu0 0.0
  %1307 = vmatprep.subr.mxu0 0.0
  %1308 = vmatpush1.msra.mxu0 0.0
  %1309 = vmatprep.subr.mxu0 0.0
  %1310 = vmatpush1.msra.mxu0 0.0
  %1311 = vmatprep.subr.mxu0 0.0
  %1312 = vmatpush1.msra.mxu0 0.0
  %1313 = vmatprep.subr.mxu0 0.0
  %1314 = vmatpush1.msra.mxu0 0.0
  %1315 = vmatprep.subr.mxu0 0.0
  %1316 = vmatpush1.msra.mxu0 0.0
  %1317 = vmatprep.subr.mxu0 0.0
  %1318 = vmatpush1.msra.mxu0 0.0
  %1319 = vmatprep.mubr.f32.mxu0 0.0
  %1320 = vmatmul.mubr.f32.gmra.mrb[0].mxu0 %v1253
  %v1321 = vpop.f32.mrb[0].mxu0
  %v1322 = vadd.f32 0.0, %v1321
  %v1323 = vpop.f32.mrb[0].mxu0
  %v1324 = vadd.f32 0.0, %v1323
  %1325 = vdwg.mxu0
  %1326 = vmatprep.subr.mxu0 %v1245
  %1327 = vmatpush1.msra.mxu0 %v1244
  %1328 = vmatprep.subr.mxu0 0.0
  %1329 = vmatpush1.msra.mxu0 0.0
  %1330 = vmatprep.subr.mxu0 0.0
  %1331 = vmatpush1.msra.mxu0 0.0
  %1332 = vmatprep.subr.mxu0 0.0
  %1333 = vmatpush1.msra.mxu0 0.0
  %1334 = vmatprep.subr.mxu0 0.0
  %1335 = vmatpush1.msra.mxu0 0.0
  %1336 = vmatprep.subr.mxu0 0.0
  %1337 = vmatpush1.msra.mxu0 0.0
  %1338 = vmatprep.subr.mxu0 0.0
  %1339 = vmatpush1.msra.mxu0 0.0
  %1340 = vmatprep.subr.mxu0 0.0
  %1341 = vmatpush1.msra.mxu0 0.0
  %1342 = vmatprep.subr.mxu0 0.0
  %1343 = vmatpush1.msra.mxu0 0.0
  %1344 = vmatprep.subr.mxu0 0.0
  %1345 = vmatpush1.msra.mxu0 0.0
  %1346 = vmatprep.subr.mxu0 0.0
  %1347 = vmatpush1.msra.mxu0 0.0
  %1348 = vmatprep.subr.mxu0 0.0
  %1349 = vmatpush1.msra.mxu0 0.0
  %1350 = vmatprep.subr.mxu0 0.0
  %1351 = vmatpush1.msra.mxu0 0.0
  %1352 = vmatprep.subr.mxu0 0.0
  %1353 = vmatpush1.msra.mxu0 0.0
  %1354 = vmatprep.subr.mxu0 0.0
  %1355 = vmatpush1.msra.mxu0 0.0
  %1356 = vmatprep.subr.mxu0 0.0
  %1357 = vmatpush1.msra.mxu0 0.0
  %1358 = vmatprep.subr.mxu0 0.0
  %1359 = vmatpush1.msra.mxu0 0.0
  %1360 = vmatprep.subr.mxu0 0.0
  %1361 = vmatpush1.msra.mxu0 0.0
  %1362 = vmatprep.subr.mxu0 0.0
  %1363 = vmatpush1.msra.mxu0 0.0
  %1364 = vmatprep.subr.mxu0 0.0
  %1365 = vmatpush1.msra.mxu0 0.0
  %1366 = vmatprep.subr.mxu0 0.0
  %1367 = vmatpush1.msra.mxu0 0.0
  %1368 = vmatprep.subr.mxu0 0.0
  %1369 = vmatpush1.msra.mxu0 0.0
  %1370 = vmatprep.subr.mxu0 0.0
  %1371 = vmatpush1.msra.mxu0 0.0
  %1372 = vmatprep.subr.mxu0 0.0
  %1373 = vmatpush1.msra.mxu0 0.0
  %1374 = vmatprep.subr.mxu0 0.0
  %1375 = vmatpush1.msra.mxu0 0.0
  %1376 = vmatprep.subr.mxu0 0.0
  %1377 = vmatpush1.msra.mxu0 0.0
  %1378 = vmatprep.subr.mxu0 0.0
  %1379 = vmatpush1.msra.mxu0 0.0
  %1380 = vmatprep.subr.mxu0 0.0
  %1381 = vmatpush1.msra.mxu0 0.0
  %1382 = vmatprep.subr.mxu0 0.0
  %1383 = vmatpush1.msra.mxu0 0.0
  %1384 = vmatprep.subr.mxu0 0.0
  %1385 = vmatpush1.msra.mxu0 0.0
  %1386 = vmatprep.subr.mxu0 0.0
  %1387 = vmatpush1.msra.mxu0 0.0
  %1388 = vmatprep.subr.mxu0 0.0
  %1389 = vmatpush1.msra.mxu0 0.0
  %1390 = vmatprep.mubr.f32.mxu0 0.0
  %1391 = vmatmul.mubr.f32.gmra.mrb[0].mxu0 %v1253
  %v1392 = vpop.f32.mrb[0].mxu0
  %v1393 = vadd.f32 0.0, %v1392
  %v1394 = vpop.f32.mrb[0].mxu0
  %v1395 = vadd.f32 0.0, %v1394
  %1396 = vdwg.mxu0
  %1397 = vmatprep.subr.mxu0 0.0
  %1398 = vmatpush1.msra.mxu0 %v1246
  %1399 = vmatprep.subr.mxu0 0.0
  %1400 = vmatpush1.msra.mxu0 0.0
  %1401 = vmatprep.subr.mxu0 0.0
  %1402 = vmatpush1.msra.mxu0 0.0
  %1403 = vmatprep.subr.mxu0 0.0
  %1404 = vmatpush1.msra.mxu0 0.0
  %1405 = vmatprep.subr.mxu0 0.0
  %1406 = vmatpush1.msra.mxu0 0.0
  %1407 = vmatprep.subr.mxu0 0.0
  %1408 = vmatpush1.msra.mxu0 0.0
  %1409 = vmatprep.subr.mxu0 0.0
  %1410 = vmatpush1.msra.mxu0 0.0
  %1411 = vmatprep.subr.mxu0 0.0
  %1412 = vmatpush1.msra.mxu0 0.0
  %1413 = vmatprep.subr.mxu0 0.0
  %1414 = vmatpush1.msra.mxu0 0.0
  %1415 = vmatprep.subr.mxu0 0.0
  %1416 = vmatpush1.msra.mxu0 0.0
  %1417 = vmatprep.subr.mxu0 0.0
  %1418 = vmatpush1.msra.mxu0 0.0
  %1419 = vmatprep.subr.mxu0 0.0
  %1420 = vmatpush1.msra.mxu0 0.0
  %1421 = vmatprep.subr.mxu0 0.0
  %1422 = vmatpush1.msra.mxu0 0.0
  %1423 = vmatprep.subr.mxu0 0.0
  %1424 = vmatpush1.msra.mxu0 0.0
  %1425 = vmatprep.subr.mxu0 0.0
  %1426 = vmatpush1.msra.mxu0 0.0
  %1427 = vmatprep.subr.mxu0 0.0
  %1428 = vmatpush1.msra.mxu0 0.0
  %1429 = vmatprep.subr.mxu0 0.0
  %1430 = vmatpush1.msra.mxu0 0.0
  %1431 = vmatprep.subr.mxu0 0.0
  %1432 = vmatpush1.msra.mxu0 0.0
  %1433 = vmatprep.subr.mxu0 0.0
  %1434 = vmatpush1.msra.mxu0 0.0
  %1435 = vmatprep.subr.mxu0 0.0
  %1436 = vmatpush1.msra.mxu0 0.0
  %1437 = vmatprep.subr.mxu0 0.0
  %1438 = vmatpush1.msra.mxu0 0.0
  %1439 = vmatprep.subr.mxu0 0.0
  %1440 = vmatpush1.msra.mxu0 0.0
  %1441 = vmatprep.subr.mxu0 0.0
  %1442 = vmatpush1.msra.mxu0 0.0
  %1443 = vmatprep.subr.mxu0 0.0
  %1444 = vmatpush1.msra.mxu0 0.0
  %1445 = vmatprep.subr.mxu0 0.0
  %1446 = vmatpush1.msra.mxu0 0.0
  %1447 = vmatprep.subr.mxu0 0.0
  %1448 = vmatpush1.msra.mxu0 0.0
  %1449 = vmatprep.subr.mxu0 0.0
  %1450 = vmatpush1.msra.mxu0 0.0
  %1451 = vmatprep.subr.mxu0 0.0
  %1452 = vmatpush1.msra.mxu0 0.0
  %1453 = vmatprep.subr.mxu0 0.0
  %1454 = vmatpush1.msra.mxu0 0.0
  %1455 = vmatprep.subr.mxu0 0.0
  %1456 = vmatpush1.msra.mxu0 0.0
  %1457 = vmatprep.subr.mxu0 0.0
  %1458 = vmatpush1.msra.mxu0 0.0
  %1459 = vmatprep.subr.mxu0 0.0
  %1460 = vmatpush1.msra.mxu0 0.0
  %1461 = vmatprep.mubr.f32.mxu0 0.0
  %1462 = vmatmul.mubr.f32.gmra.mrb[0].mxu0 %v1253
  %v1463 = vpop.f32.mrb[0].mxu0
  %v1464 = vadd.f32 0.0, %v1463
  %v1465 = vpop.f32.mrb[0].mxu0
  %1466 = vdwg.mxu0
  %v1467 = vadd.f32 %v1222, %v1322
  %v1468 = vadd.f32 %v1223, %v1324
  %v1469 = vadd.f32 %v1224, %v1393
  %v1470 = vadd.f32 %v1225, %v1395
  %v1471 = vadd.f32 %v1226, %v1464
  %s1472 = scalar_lea.vmem %s1, 48
  %v1473 = vld [vmem:[%s1472] sm:$0xff]
  %1474 = vrot.lane.b32.xlu0 %v26, 92
  %v1475 = vpop.permute.xlu0 %1474
  %1476 = vrot.lane.b32.xlu0 %v27, 92
  %v1477 = vpop.permute.xlu0 %1476
  %1478 = vrot.lane.b32.xlu0 %v28, 92
  %v1479 = vpop.permute.xlu0 %1478
  %1480 = vrot.lane.b32.xlu0 %v29, 92
  %v1481 = vpop.permute.xlu0 %1480
  %1482 = vrot.lane.b32.xlu0 %v30, 92
  %v1483 = vpop.permute.xlu0 %1482
  %1484 = vrot.lane.b32.xlu0 %v31, 92
  %v1485 = vpop.permute.xlu0 %1484
  %vm1486 = vcmask 752640
  %v1487 = vsel %vm1486, %v1475, %v1477
  %v1488 = vsel %vm1486, %v1477, %v1479
  %v1489 = vsel %vm1486, %v1479, %v1481
  %v1490 = vsel %vm1486, %v1481, %v1483
  %v1491 = vsel %vm1486, %v1483, %v1485
  %v1498 = vsel %vm61, %v1473, 0
  %1500 = vmatprep.subr.mxu0 %v1488
  %1501 = vmatpush1.msra.mxu0 %v1487
  %1502 = vmatprep.subr.mxu0 0.0
  %1503 = vmatpush1.msra.mxu0 0.0
  %1504 = vmatprep.subr.mxu0 0.0
  %1505 = vmatpush1.msra.mxu0 0.0
  %1506 = vmatprep.subr.mxu0 0.0
  %1507 = vmatpush1.msra.mxu0 0.0
  %1508 = vmatprep.subr.mxu0 0.0
  %1509 = vmatpush1.msra.mxu0 0.0
  %1510 = vmatprep.subr.mxu0 0.0
  %1511 = vmatpush1.msra.mxu0 0.0
  %1512 = vmatprep.subr.mxu0 0.0
  %1513 = vmatpush1.msra.mxu0 0.0
  %1514 = vmatprep.subr.mxu0 0.0
  %1515 = vmatpush1.msra.mxu0 0.0
  %1516 = vmatprep.subr.mxu0 0.0
  %1517 = vmatpush1.msra.mxu0 0.0
  %1518 = vmatprep.subr.mxu0 0.0
  %1519 = vmatpush1.msra.mxu0 0.0
  %1520 = vmatprep.subr.mxu0 0.0
  %1521 = vmatpush1.msra.mxu0 0.0
  %1522 = vmatprep.subr.mxu0 0.0
  %1523 = vmatpush1.msra.mxu0 0.0
  %1524 = vmatprep.subr.mxu0 0.0
  %1525 = vmatpush1.msra.mxu0 0.0
  %1526 = vmatprep.subr.mxu0 0.0
  %1527 = vmatpush1.msra.mxu0 0.0
  %1528 = vmatprep.subr.mxu0 0.0
  %1529 = vmatpush1.msra.mxu0 0.0
  %1530 = vmatprep.subr.mxu0 0.0
  %1531 = vmatpush1.msra.mxu0 0.0
  %1532 = vmatprep.subr.mxu0 0.0
  %1533 = vmatpush1.msra.mxu0 0.0
  %1534 = vmatprep.subr.mxu0 0.0
  %1535 = vmatpush1.msra.mxu0 0.0
  %1536 = vmatprep.subr.mxu0 0.0
  %1537 = vmatpush1.msra.mxu0 0.0
  %1538 = vmatprep.subr.mxu0 0.0
  %1539 = vmatpush1.msra.mxu0 0.0
  %1540 = vmatprep.subr.mxu0 0.0
  %1541 = vmatpush1.msra.mxu0 0.0
  %1542 = vmatprep.subr.mxu0 0.0
  %1543 = vmatpush1.msra.mxu0 0.0
  %1544 = vmatprep.subr.mxu0 0.0
  %1545 = vmatpush1.msra.mxu0 0.0
  %1546 = vmatprep.subr.mxu0 0.0
  %1547 = vmatpush1.msra.mxu0 0.0
  %1548 = vmatprep.subr.mxu0 0.0
  %1549 = vmatpush1.msra.mxu0 0.0
  %1550 = vmatprep.subr.mxu0 0.0
  %1551 = vmatpush1.msra.mxu0 0.0
  %1552 = vmatprep.subr.mxu0 0.0
  %1553 = vmatpush1.msra.mxu0 0.0
  %1554 = vmatprep.subr.mxu0 0.0
  %1555 = vmatpush1.msra.mxu0 0.0
  %1556 = vmatprep.subr.mxu0 0.0
  %1557 = vmatpush1.msra.mxu0 0.0
  %1558 = vmatprep.subr.mxu0 0.0
  %1559 = vmatpush1.msra.mxu0 0.0
  %1560 = vmatprep.subr.mxu0 0.0
  %1561 = vmatpush1.msra.mxu0 0.0
  %1562 = vmatprep.subr.mxu0 0.0
  %1563 = vmatpush1.msra.mxu0 0.0
  %1564 = vmatprep.mubr.f32.mxu0 0.0
  %1565 = vmatmul.mubr.f32.gmra.mrb[0].mxu0 %v1498
  %v1566 = vpop.f32.mrb[0].mxu0
  %v1567 = vadd.f32 0.0, %v1566
  %v1568 = vpop.f32.mrb[0].mxu0
  %v1569 = vadd.f32 0.0, %v1568
  %1570 = vdwg.mxu0
  %1571 = vmatprep.subr.mxu0 %v1490
  %1572 = vmatpush1.msra.mxu0 %v1489
  %1573 = vmatprep.subr.mxu0 0.0
  %1574 = vmatpush1.msra.mxu0 0.0
  %1575 = vmatprep.subr.mxu0 0.0
  %1576 = vmatpush1.msra.mxu0 0.0
  %1577 = vmatprep.subr.mxu0 0.0
  %1578 = vmatpush1.msra.mxu0 0.0
  %1579 = vmatprep.subr.mxu0 0.0
  %1580 = vmatpush1.msra.mxu0 0.0
  %1581 = vmatprep.subr.mxu0 0.0
  %1582 = vmatpush1.msra.mxu0 0.0
  %1583 = vmatprep.subr.mxu0 0.0
  %1584 = vmatpush1.msra.mxu0 0.0
  %1585 = vmatprep.subr.mxu0 0.0
  %1586 = vmatpush1.msra.mxu0 0.0
  %1587 = vmatprep.subr.mxu0 0.0
  %1588 = vmatpush1.msra.mxu0 0.0
  %1589 = vmatprep.subr.mxu0 0.0
  %1590 = vmatpush1.msra.mxu0 0.0
  %1591 = vmatprep.subr.mxu0 0.0
  %1592 = vmatpush1.msra.mxu0 0.0
  %1593 = vmatprep.subr.mxu0 0.0
  %1594 = vmatpush1.msra.mxu0 0.0
  %1595 = vmatprep.subr.mxu0 0.0
  %1596 = vmatpush1.msra.mxu0 0.0
  %1597 = vmatprep.subr.mxu0 0.0
  %1598 = vmatpush1.msra.mxu0 0.0
  %1599 = vmatprep.subr.mxu0 0.0
  %1600 = vmatpush1.msra.mxu0 0.0
  %1601 = vmatprep.subr.mxu0 0.0
  %1602 = vmatpush1.msra.mxu0 0.0
  %1603 = vmatprep.subr.mxu0 0.0
  %1604 = vmatpush1.msra.mxu0 0.0
  %1605 = vmatprep.subr.mxu0 0.0
  %1606 = vmatpush1.msra.mxu0 0.0
  %1607 = vmatprep.subr.mxu0 0.0
  %1608 = vmatpush1.msra.mxu0 0.0
  %1609 = vmatprep.subr.mxu0 0.0
  %1610 = vmatpush1.msra.mxu0 0.0
  %1611 = vmatprep.subr.mxu0 0.0
  %1612 = vmatpush1.msra.mxu0 0.0
  %1613 = vmatprep.subr.mxu0 0.0
  %1614 = vmatpush1.msra.mxu0 0.0
  %1615 = vmatprep.subr.mxu0 0.0
  %1616 = vmatpush1.msra.mxu0 0.0
  %1617 = vmatprep.subr.mxu0 0.0
  %1618 = vmatpush1.msra.mxu0 0.0
  %1619 = vmatprep.subr.mxu0 0.0
  %1620 = vmatpush1.msra.mxu0 0.0
  %1621 = vmatprep.subr.mxu0 0.0
  %1622 = vmatpush1.msra.mxu0 0.0
  %1623 = vmatprep.subr.mxu0 0.0
  %1624 = vmatpush1.msra.mxu0 0.0
  %1625 = vmatprep.subr.mxu0 0.0
  %1626 = vmatpush1.msra.mxu0 0.0
  %1627 = vmatprep.subr.mxu0 0.0
  %1628 = vmatpush1.msra.mxu0 0.0
  %1629 = vmatprep.subr.mxu0 0.0
  %1630 = vmatpush1.msra.mxu0 0.0
  %1631 = vmatprep.subr.mxu0 0.0
  %1632 = vmatpush1.msra.mxu0 0.0
  %1633 = vmatprep.subr.mxu0 0.0
  %1634 = vmatpush1.msra.mxu0 0.0
  %1635 = vmatprep.mubr.f32.mxu0 0.0
  %1636 = vmatmul.mubr.f32.gmra.mrb[0].mxu0 %v1498
  %v1637 = vpop.f32.mrb[0].mxu0
  %v1638 = vadd.f32 0.0, %v1637
  %v1639 = vpop.f32.mrb[0].mxu0
  %v1640 = vadd.f32 0.0, %v1639
  %1641 = vdwg.mxu0
  %1642 = vmatprep.subr.mxu0 0.0
  %1643 = vmatpush1.msra.mxu0 %v1491
  %1644 = vmatprep.subr.mxu0 0.0
  %1645 = vmatpush1.msra.mxu0 0.0
  %1646 = vmatprep.subr.mxu0 0.0
  %1647 = vmatpush1.msra.mxu0 0.0
  %1648 = vmatprep.subr.mxu0 0.0
  %1649 = vmatpush1.msra.mxu0 0.0
  %1650 = vmatprep.subr.mxu0 0.0
  %1651 = vmatpush1.msra.mxu0 0.0
  %1652 = vmatprep.subr.mxu0 0.0
  %1653 = vmatpush1.msra.mxu0 0.0
  %1654 = vmatprep.subr.mxu0 0.0
  %1655 = vmatpush1.msra.mxu0 0.0
  %1656 = vmatprep.subr.mxu0 0.0
  %1657 = vmatpush1.msra.mxu0 0.0
  %1658 = vmatprep.subr.mxu0 0.0
  %1659 = vmatpush1.msra.mxu0 0.0
  %1660 = vmatprep.subr.mxu0 0.0
  %1661 = vmatpush1.msra.mxu0 0.0
  %1662 = vmatprep.subr.mxu0 0.0
  %1663 = vmatpush1.msra.mxu0 0.0
  %1664 = vmatprep.subr.mxu0 0.0
  %1665 = vmatpush1.msra.mxu0 0.0
  %1666 = vmatprep.subr.mxu0 0.0
  %1667 = vmatpush1.msra.mxu0 0.0
  %1668 = vmatprep.subr.mxu0 0.0
  %1669 = vmatpush1.msra.mxu0 0.0
  %1670 = vmatprep.subr.mxu0 0.0
  %1671 = vmatpush1.msra.mxu0 0.0
  %1672 = vmatprep.subr.mxu0 0.0
  %1673 = vmatpush1.msra.mxu0 0.0
  %1674 = vmatprep.subr.mxu0 0.0
  %1675 = vmatpush1.msra.mxu0 0.0
  %1676 = vmatprep.subr.mxu0 0.0
  %1677 = vmatpush1.msra.mxu0 0.0
  %1678 = vmatprep.subr.mxu0 0.0
  %1679 = vmatpush1.msra.mxu0 0.0
  %1680 = vmatprep.subr.mxu0 0.0
  %1681 = vmatpush1.msra.mxu0 0.0
  %1682 = vmatprep.subr.mxu0 0.0
  %1683 = vmatpush1.msra.mxu0 0.0
  %1684 = vmatprep.subr.mxu0 0.0
  %1685 = vmatpush1.msra.mxu0 0.0
  %1686 = vmatprep.subr.mxu0 0.0
  %1687 = vmatpush1.msra.mxu0 0.0
  %1688 = vmatprep.subr.mxu0 0.0
  %1689 = vmatpush1.msra.mxu0 0.0
  %1690 = vmatprep.subr.mxu0 0.0
  %1691 = vmatpush1.msra.mxu0 0.0
  %1692 = vmatprep.subr.mxu0 0.0
  %1693 = vmatpush1.msra.mxu0 0.0
  %1694 = vmatprep.subr.mxu0 0.0
  %1695 = vmatpush1.msra.mxu0 0.0
  %1696 = vmatprep.subr.mxu0 0.0
  %1697 = vmatpush1.msra.mxu0 0.0
  %1698 = vmatprep.subr.mxu0 0.0
  %1699 = vmatpush1.msra.mxu0 0.0
  %1700 = vmatprep.subr.mxu0 0.0
  %1701 = vmatpush1.msra.mxu0 0.0
  %1702 = vmatprep.subr.mxu0 0.0
  %1703 = vmatpush1.msra.mxu0 0.0
  %1704 = vmatprep.subr.mxu0 0.0
  %1705 = vmatpush1.msra.mxu0 0.0
  %1706 = vmatprep.mubr.f32.mxu0 0.0
  %1707 = vmatmul.mubr.f32.gmra.mrb[0].mxu0 %v1498
  %v1708 = vpop.f32.mrb[0].mxu0
  %v1709 = vadd.f32 0.0, %v1708
  %v1710 = vpop.f32.mrb[0].mxu0
  %1711 = vdwg.mxu0
  %v1712 = vadd.f32 %v1467, %v1567
  %v1713 = vadd.f32 %v1468, %v1569
  %v1714 = vadd.f32 %v1469, %v1638
  %v1715 = vadd.f32 %v1470, %v1640
  %v1716 = vadd.f32 %v1471, %v1709
  %s1717 = scalar_lea.vmem %s1, 56
  %v1718 = vld [vmem:[%s1717] sm:$0xff]
  %1719 = vrot.lane.b32.xlu0 %v26, 91
  %v1720 = vpop.permute.xlu0 %1719
  %1721 = vrot.lane.b32.xlu0 %v27, 91
  %v1722 = vpop.permute.xlu0 %1721
  %1723 = vrot.lane.b32.xlu0 %v28, 91
  %v1724 = vpop.permute.xlu0 %1723
  %1725 = vrot.lane.b32.xlu0 %v29, 91
  %v1726 = vpop.permute.xlu0 %1725
  %1727 = vrot.lane.b32.xlu0 %v30, 91
  %v1728 = vpop.permute.xlu0 %1727
  %1729 = vrot.lane.b32.xlu0 %v31, 91
  %v1730 = vpop.permute.xlu0 %1729
  %vm1731 = vcmask 744448
  %v1732 = vsel %vm1731, %v1720, %v1722
  %v1733 = vsel %vm1731, %v1722, %v1724
  %v1734 = vsel %vm1731, %v1724, %v1726
  %v1735 = vsel %vm1731, %v1726, %v1728
  %v1736 = vsel %vm1731, %v1728, %v1730
  %v1743 = vsel %vm61, %v1718, 0
  %1745 = vmatprep.subr.mxu0 %v1733
  %1746 = vmatpush1.msra.mxu0 %v1732
  %1747 = vmatprep.subr.mxu0 0.0
  %1748 = vmatpush1.msra.mxu0 0.0
  %1749 = vmatprep.subr.mxu0 0.0
  %1750 = vmatpush1.msra.mxu0 0.0
  %1751 = vmatprep.subr.mxu0 0.0
  %1752 = vmatpush1.msra.mxu0 0.0
  %1753 = vmatprep.subr.mxu0 0.0
  %1754 = vmatpush1.msra.mxu0 0.0
  %1755 = vmatprep.subr.mxu0 0.0
  %1756 = vmatpush1.msra.mxu0 0.0
  %1757 = vmatprep.subr.mxu0 0.0
  %1758 = vmatpush1.msra.mxu0 0.0
  %1759 = vmatprep.subr.mxu0 0.0
  %1760 = vmatpush1.msra.mxu0 0.0
  %1761 = vmatprep.subr.mxu0 0.0
  %1762 = vmatpush1.msra.mxu0 0.0
  %1763 = vmatprep.subr.mxu0 0.0
  %1764 = vmatpush1.msra.mxu0 0.0
  %1765 = vmatprep.subr.mxu0 0.0
  %1766 = vmatpush1.msra.mxu0 0.0
  %1767 = vmatprep.subr.mxu0 0.0
  %1768 = vmatpush1.msra.mxu0 0.0
  %1769 = vmatprep.subr.mxu0 0.0
  %1770 = vmatpush1.msra.mxu0 0.0
  %1771 = vmatprep.subr.mxu0 0.0
  %1772 = vmatpush1.msra.mxu0 0.0
  %1773 = vmatprep.subr.mxu0 0.0
  %1774 = vmatpush1.msra.mxu0 0.0
  %1775 = vmatprep.subr.mxu0 0.0
  %1776 = vmatpush1.msra.mxu0 0.0
  %1777 = vmatprep.subr.mxu0 0.0
  %1778 = vmatpush1.msra.mxu0 0.0
  %1779 = vmatprep.subr.mxu0 0.0
  %1780 = vmatpush1.msra.mxu0 0.0
  %1781 = vmatprep.subr.mxu0 0.0
  %1782 = vmatpush1.msra.mxu0 0.0
  %1783 = vmatprep.subr.mxu0 0.0
  %1784 = vmatpush1.msra.mxu0 0.0
  %1785 = vmatprep.subr.mxu0 0.0
  %1786 = vmatpush1.msra.mxu0 0.0
  %1787 = vmatprep.subr.mxu0 0.0
  %1788 = vmatpush1.msra.mxu0 0.0
  %1789 = vmatprep.subr.mxu0 0.0
  %1790 = vmatpush1.msra.mxu0 0.0
  %1791 = vmatprep.subr.mxu0 0.0
  %1792 = vmatpush1.msra.mxu0 0.0
  %1793 = vmatprep.subr.mxu0 0.0
  %1794 = vmatpush1.msra.mxu0 0.0
  %1795 = vmatprep.subr.mxu0 0.0
  %1796 = vmatpush1.msra.mxu0 0.0
  %1797 = vmatprep.subr.mxu0 0.0
  %1798 = vmatpush1.msra.mxu0 0.0
  %1799 = vmatprep.subr.mxu0 0.0
  %1800 = vmatpush1.msra.mxu0 0.0
  %1801 = vmatprep.subr.mxu0 0.0
  %1802 = vmatpush1.msra.mxu0 0.0
  %1803 = vmatprep.subr.mxu0 0.0
  %1804 = vmatpush1.msra.mxu0 0.0
  %1805 = vmatprep.subr.mxu0 0.0
  %1806 = vmatpush1.msra.mxu0 0.0
  %1807 = vmatprep.subr.mxu0 0.0
  %1808 = vmatpush1.msra.mxu0 0.0
  %1809 = vmatprep.mubr.f32.mxu0 0.0
  %1810 = vmatmul.mubr.f32.gmra.mrb[0].mxu0 %v1743
  %v1811 = vpop.f32.mrb[0].mxu0
  %v1812 = vadd.f32 0.0, %v1811
  %v1813 = vpop.f32.mrb[0].mxu0
  %v1814 = vadd.f32 0.0, %v1813
  %1815 = vdwg.mxu0
  %1816 = vmatprep.subr.mxu0 %v1735
  %1817 = vmatpush1.msra.mxu0 %v1734
  %1818 = vmatprep.subr.mxu0 0.0
  %1819 = vmatpush1.msra.mxu0 0.0
  %1820 = vmatprep.subr.mxu0 0.0
  %1821 = vmatpush1.msra.mxu0 0.0
  %1822 = vmatprep.subr.mxu0 0.0
  %1823 = vmatpush1.msra.mxu0 0.0
  %1824 = vmatprep.subr.mxu0 0.0
  %1825 = vmatpush1.msra.mxu0 0.0
  %1826 = vmatprep.subr.mxu0 0.0
  %1827 = vmatpush1.msra.mxu0 0.0
  %1828 = vmatprep.subr.mxu0 0.0
  %1829 = vmatpush1.msra.mxu0 0.0
  %1830 = vmatprep.subr.mxu0 0.0
  %1831 = vmatpush1.msra.mxu0 0.0
  %1832 = vmatprep.subr.mxu0 0.0
  %1833 = vmatpush1.msra.mxu0 0.0
  %1834 = vmatprep.subr.mxu0 0.0
  %1835 = vmatpush1.msra.mxu0 0.0
  %1836 = vmatprep.subr.mxu0 0.0
  %1837 = vmatpush1.msra.mxu0 0.0
  %1838 = vmatprep.subr.mxu0 0.0
  %1839 = vmatpush1.msra.mxu0 0.0
  %1840 = vmatprep.subr.mxu0 0.0
  %1841 = vmatpush1.msra.mxu0 0.0
  %1842 = vmatprep.subr.mxu0 0.0
  %1843 = vmatpush1.msra.mxu0 0.0
  %1844 = vmatprep.subr.mxu0 0.0
  %1845 = vmatpush1.msra.mxu0 0.0
  %1846 = vmatprep.subr.mxu0 0.0
  %1847 = vmatpush1.msra.mxu0 0.0
  %1848 = vmatprep.subr.mxu0 0.0
  %1849 = vmatpush1.msra.mxu0 0.0
  %1850 = vmatprep.subr.mxu0 0.0
  %1851 = vmatpush1.msra.mxu0 0.0
  %1852 = vmatprep.subr.mxu0 0.0
  %1853 = vmatpush1.msra.mxu0 0.0
  %1854 = vmatprep.subr.mxu0 0.0
  %1855 = vmatpush1.msra.mxu0 0.0
  %1856 = vmatprep.subr.mxu0 0.0
  %1857 = vmatpush1.msra.mxu0 0.0
  %1858 = vmatprep.subr.mxu0 0.0
  %1859 = vmatpush1.msra.mxu0 0.0
  %1860 = vmatprep.subr.mxu0 0.0
  %1861 = vmatpush1.msra.mxu0 0.0
  %1862 = vmatprep.subr.mxu0 0.0
  %1863 = vmatpush1.msra.mxu0 0.0
  %1864 = vmatprep.subr.mxu0 0.0
  %1865 = vmatpush1.msra.mxu0 0.0
  %1866 = vmatprep.subr.mxu0 0.0
  %1867 = vmatpush1.msra.mxu0 0.0
  %1868 = vmatprep.subr.mxu0 0.0
  %1869 = vmatpush1.msra.mxu0 0.0
  %1870 = vmatprep.subr.mxu0 0.0
  %1871 = vmatpush1.msra.mxu0 0.0
  %1872 = vmatprep.subr.mxu0 0.0
  %1873 = vmatpush1.msra.mxu0 0.0
  %1874 = vmatprep.subr.mxu0 0.0
  %1875 = vmatpush1.msra.mxu0 0.0
  %1876 = vmatprep.subr.mxu0 0.0
  %1877 = vmatpush1.msra.mxu0 0.0
  %1878 = vmatprep.subr.mxu0 0.0
  %1879 = vmatpush1.msra.mxu0 0.0
  %1880 = vmatprep.mubr.f32.mxu0 0.0
  %1881 = vmatmul.mubr.f32.gmra.mrb[0].mxu0 %v1743
  %v1882 = vpop.f32.mrb[0].mxu0
  %v1883 = vadd.f32 0.0, %v1882
  %v1884 = vpop.f32.mrb[0].mxu0
  %v1885 = vadd.f32 0.0, %v1884
  %1886 = vdwg.mxu0
  %1887 = vmatprep.subr.mxu0 0.0
  %1888 = vmatpush1.msra.mxu0 %v1736
  %1889 = vmatprep.subr.mxu0 0.0
  %1890 = vmatpush1.msra.mxu0 0.0
  %1891 = vmatprep.subr.mxu0 0.0
  %1892 = vmatpush1.msra.mxu0 0.0
  %1893 = vmatprep.subr.mxu0 0.0
  %1894 = vmatpush1.msra.mxu0 0.0
  %1895 = vmatprep.subr.mxu0 0.0
  %1896 = vmatpush1.msra.mxu0 0.0
  %1897 = vmatprep.subr.mxu0 0.0
  %1898 = vmatpush1.msra.mxu0 0.0
  %1899 = vmatprep.subr.mxu0 0.0
  %1900 = vmatpush1.msra.mxu0 0.0
  %1901 = vmatprep.subr.mxu0 0.0
  %1902 = vmatpush1.msra.mxu0 0.0
  %1903 = vmatprep.subr.mxu0 0.0
  %1904 = vmatpush1.msra.mxu0 0.0
  %1905 = vmatprep.subr.mxu0 0.0
  %1906 = vmatpush1.msra.mxu0 0.0
  %1907 = vmatprep.subr.mxu0 0.0
  %1908 = vmatpush1.msra.mxu0 0.0
  %1909 = vmatprep.subr.mxu0 0.0
  %1910 = vmatpush1.msra.mxu0 0.0
  %1911 = vmatprep.subr.mxu0 0.0
  %1912 = vmatpush1.msra.mxu0 0.0
  %1913 = vmatprep.subr.mxu0 0.0
  %1914 = vmatpush1.msra.mxu0 0.0
  %1915 = vmatprep.subr.mxu0 0.0
  %1916 = vmatpush1.msra.mxu0 0.0
  %1917 = vmatprep.subr.mxu0 0.0
  %1918 = vmatpush1.msra.mxu0 0.0
  %1919 = vmatprep.subr.mxu0 0.0
  %1920 = vmatpush1.msra.mxu0 0.0
  %1921 = vmatprep.subr.mxu0 0.0
  %1922 = vmatpush1.msra.mxu0 0.0
  %1923 = vmatprep.subr.mxu0 0.0
  %1924 = vmatpush1.msra.mxu0 0.0
  %1925 = vmatprep.subr.mxu0 0.0
  %1926 = vmatpush1.msra.mxu0 0.0
  %1927 = vmatprep.subr.mxu0 0.0
  %1928 = vmatpush1.msra.mxu0 0.0
  %1929 = vmatprep.subr.mxu0 0.0
  %1930 = vmatpush1.msra.mxu0 0.0
  %1931 = vmatprep.subr.mxu0 0.0
  %1932 = vmatpush1.msra.mxu0 0.0
  %1933 = vmatprep.subr.mxu0 0.0
  %1934 = vmatpush1.msra.mxu0 0.0
  %1935 = vmatprep.subr.mxu0 0.0
  %1936 = vmatpush1.msra.mxu0 0.0
  %1937 = vmatprep.subr.mxu0 0.0
  %1938 = vmatpush1.msra.mxu0 0.0
  %1939 = vmatprep.subr.mxu0 0.0
  %1940 = vmatpush1.msra.mxu0 0.0
  %1941 = vmatprep.subr.mxu0 0.0
  %1942 = vmatpush1.msra.mxu0 0.0
  %1943 = vmatprep.subr.mxu0 0.0
  %1944 = vmatpush1.msra.mxu0 0.0
  %1945 = vmatprep.subr.mxu0 0.0
  %1946 = vmatpush1.msra.mxu0 0.0
  %1947 = vmatprep.subr.mxu0 0.0
  %1948 = vmatpush1.msra.mxu0 0.0
  %1949 = vmatprep.subr.mxu0 0.0
  %1950 = vmatpush1.msra.mxu0 0.0
  %1951 = vmatprep.mubr.f32.mxu0 0.0
  %1952 = vmatmul.mubr.f32.gmra.mrb[0].mxu0 %v1743
  %v1953 = vpop.f32.mrb[0].mxu0
  %v1954 = vadd.f32 0.0, %v1953
  %v1955 = vpop.f32.mrb[0].mxu0
  %1956 = vdwg.mxu0
  %v1957 = vadd.f32 %v1712, %v1812
  %v1958 = vadd.f32 %v1713, %v1814
  %v1959 = vadd.f32 %v1714, %v1883
  %v1960 = vadd.f32 %v1715, %v1885
  %v1961 = vadd.f32 %v1716, %v1954
  %s1962 = scalar_lea.vmem %s1, 64
  %v1963 = vld [vmem:[%s1962] sm:$0xff]
  %1964 = vrot.lane.b32.xlu0 %v26, 90
  %v1965 = vpop.permute.xlu0 %1964
  %1966 = vrot.lane.b32.xlu0 %v27, 90
  %v1967 = vpop.permute.xlu0 %1966
  %1968 = vrot.lane.b32.xlu0 %v28, 90
  %v1969 = vpop.permute.xlu0 %1968
  %1970 = vrot.lane.b32.xlu0 %v29, 90
  %v1971 = vpop.permute.xlu0 %1970
  %1972 = vrot.lane.b32.xlu0 %v30, 90
  %v1973 = vpop.permute.xlu0 %1972
  %1974 = vrot.lane.b32.xlu0 %v31, 90
  %v1975 = vpop.permute.xlu0 %1974
  %vm1976 = vcmask 736256
  %v1977 = vsel %vm1976, %v1965, %v1967
  %v1978 = vsel %vm1976, %v1967, %v1969
  %v1979 = vsel %vm1976, %v1969, %v1971
  %v1980 = vsel %vm1976, %v1971, %v1973
  %v1981 = vsel %vm1976, %v1973, %v1975
  %v1988 = vsel %vm61, %v1963, 0
  %1990 = vmatprep.subr.mxu0 %v1978
  %1991 = vmatpush1.msra.mxu0 %v1977
  %1992 = vmatprep.subr.mxu0 0.0
  %1993 = vmatpush1.msra.mxu0 0.0
  %1994 = vmatprep.subr.mxu0 0.0
  %1995 = vmatpush1.msra.mxu0 0.0
  %1996 = vmatprep.subr.mxu0 0.0
  %1997 = vmatpush1.msra.mxu0 0.0
  %1998 = vmatprep.subr.mxu0 0.0
  %1999 = vmatpush1.msra.mxu0 0.0
  %2000 = vmatprep.subr.mxu0 0.0
  %2001 = vmatpush1.msra.mxu0 0.0
  %2002 = vmatprep.subr.mxu0 0.0
  %2003 = vmatpush1.msra.mxu0 0.0
  %2004 = vmatprep.subr.mxu0 0.0
  %2005 = vmatpush1.msra.mxu0 0.0
  %2006 = vmatprep.subr.mxu0 0.0
  %2007 = vmatpush1.msra.mxu0 0.0
  %2008 = vmatprep.subr.mxu0 0.0
  %2009 = vmatpush1.msra.mxu0 0.0
  %2010 = vmatprep.subr.mxu0 0.0
  %2011 = vmatpush1.msra.mxu0 0.0
  %2012 = vmatprep.subr.mxu0 0.0
  %2013 = vmatpush1.msra.mxu0 0.0
  %2014 = vmatprep.subr.mxu0 0.0
  %2015 = vmatpush1.msra.mxu0 0.0
  %2016 = vmatprep.subr.mxu0 0.0
  %2017 = vmatpush1.msra.mxu0 0.0
  %2018 = vmatprep.subr.mxu0 0.0
  %2019 = vmatpush1.msra.mxu0 0.0
  %2020 = vmatprep.subr.mxu0 0.0
  %2021 = vmatpush1.msra.mxu0 0.0
  %2022 = vmatprep.subr.mxu0 0.0
  %2023 = vmatpush1.msra.mxu0 0.0
  %2024 = vmatprep.subr.mxu0 0.0
  %2025 = vmatpush1.msra.mxu0 0.0
  %2026 = vmatprep.subr.mxu0 0.0
  %2027 = vmatpush1.msra.mxu0 0.0
  %2028 = vmatprep.subr.mxu0 0.0
  %2029 = vmatpush1.msra.mxu0 0.0
  %2030 = vmatprep.subr.mxu0 0.0
  %2031 = vmatpush1.msra.mxu0 0.0
  %2032 = vmatprep.subr.mxu0 0.0
  %2033 = vmatpush1.msra.mxu0 0.0
  %2034 = vmatprep.subr.mxu0 0.0
  %2035 = vmatpush1.msra.mxu0 0.0
  %2036 = vmatprep.subr.mxu0 0.0
  %2037 = vmatpush1.msra.mxu0 0.0
  %2038 = vmatprep.subr.mxu0 0.0
  %2039 = vmatpush1.msra.mxu0 0.0
  %2040 = vmatprep.subr.mxu0 0.0
  %2041 = vmatpush1.msra.mxu0 0.0
  %2042 = vmatprep.subr.mxu0 0.0
  %2043 = vmatpush1.msra.mxu0 0.0
  %2044 = vmatprep.subr.mxu0 0.0
  %2045 = vmatpush1.msra.mxu0 0.0
  %2046 = vmatprep.subr.mxu0 0.0
  %2047 = vmatpush1.msra.mxu0 0.0
  %2048 = vmatprep.subr.mxu0 0.0
  %2049 = vmatpush1.msra.mxu0 0.0
  %2050 = vmatprep.subr.mxu0 0.0
  %2051 = vmatpush1.msra.mxu0 0.0
  %2052 = vmatprep.subr.mxu0 0.0
  %2053 = vmatpush1.msra.mxu0 0.0
  %2054 = vmatprep.mubr.f32.mxu0 0.0
  %2055 = vmatmul.mubr.f32.gmra.mrb[0].mxu0 %v1988
  %v2056 = vpop.f32.mrb[0].mxu0
  %v2057 = vadd.f32 0.0, %v2056
  %v2058 = vpop.f32.mrb[0].mxu0
  %v2059 = vadd.f32 0.0, %v2058
  %2060 = vdwg.mxu0
  %2061 = vmatprep.subr.mxu0 %v1980
  %2062 = vmatpush1.msra.mxu0 %v1979
  %2063 = vmatprep.subr.mxu0 0.0
  %2064 = vmatpush1.msra.mxu0 0.0
  %2065 = vmatprep.subr.mxu0 0.0
  %2066 = vmatpush1.msra.mxu0 0.0
  %2067 = vmatprep.subr.mxu0 0.0
  %2068 = vmatpush1.msra.mxu0 0.0
  %2069 = vmatprep.subr.mxu0 0.0
  %2070 = vmatpush1.msra.mxu0 0.0
  %2071 = vmatprep.subr.mxu0 0.0
  %2072 = vmatpush1.msra.mxu0 0.0
  %2073 = vmatprep.subr.mxu0 0.0
  %2074 = vmatpush1.msra.mxu0 0.0
  %2075 = vmatprep.subr.mxu0 0.0
  %2076 = vmatpush1.msra.mxu0 0.0
  %2077 = vmatprep.subr.mxu0 0.0
  %2078 = vmatpush1.msra.mxu0 0.0
  %2079 = vmatprep.subr.mxu0 0.0
  %2080 = vmatpush1.msra.mxu0 0.0
  %2081 = vmatprep.subr.mxu0 0.0
  %2082 = vmatpush1.msra.mxu0 0.0
  %2083 = vmatprep.subr.mxu0 0.0
  %2084 = vmatpush1.msra.mxu0 0.0
  %2085 = vmatprep.subr.mxu0 0.0
  %2086 = vmatpush1.msra.mxu0 0.0
  %2087 = vmatprep.subr.mxu0 0.0
  %2088 = vmatpush1.msra.mxu0 0.0
  %2089 = vmatprep.subr.mxu0 0.0
  %2090 = vmatpush1.msra.mxu0 0.0
  %2091 = vmatprep.subr.mxu0 0.0
  %2092 = vmatpush1.msra.mxu0 0.0
  %2093 = vmatprep.subr.mxu0 0.0
  %2094 = vmatpush1.msra.mxu0 0.0
  %2095 = vmatprep.subr.mxu0 0.0
  %2096 = vmatpush1.msra.mxu0 0.0
  %2097 = vmatprep.subr.mxu0 0.0
  %2098 = vmatpush1.msra.mxu0 0.0
  %2099 = vmatprep.subr.mxu0 0.0
  %2100 = vmatpush1.msra.mxu0 0.0
  %2101 = vmatprep.subr.mxu0 0.0
  %2102 = vmatpush1.msra.mxu0 0.0
  %2103 = vmatprep.subr.mxu0 0.0
  %2104 = vmatpush1.msra.mxu0 0.0
  %2105 = vmatprep.subr.mxu0 0.0
  %2106 = vmatpush1.msra.mxu0 0.0
  %2107 = vmatprep.subr.mxu0 0.0
  %2108 = vmatpush1.msra.mxu0 0.0
  %2109 = vmatprep.subr.mxu0 0.0
  %2110 = vmatpush1.msra.mxu0 0.0
  %2111 = vmatprep.subr.mxu0 0.0
  %2112 = vmatpush1.msra.mxu0 0.0
  %2113 = vmatprep.subr.mxu0 0.0
  %2114 = vmatpush1.msra.mxu0 0.0
  %2115 = vmatprep.subr.mxu0 0.0
  %2116 = vmatpush1.msra.mxu0 0.0
  %2117 = vmatprep.subr.mxu0 0.0
  %2118 = vmatpush1.msra.mxu0 0.0
  %2119 = vmatprep.subr.mxu0 0.0
  %2120 = vmatpush1.msra.mxu0 0.0
  %2121 = vmatprep.subr.mxu0 0.0
  %2122 = vmatpush1.msra.mxu0 0.0
  %2123 = vmatprep.subr.mxu0 0.0
  %2124 = vmatpush1.msra.mxu0 0.0
  %2125 = vmatprep.mubr.f32.mxu0 0.0
  %2126 = vmatmul.mubr.f32.gmra.mrb[0].mxu0 %v1988
  %v2127 = vpop.f32.mrb[0].mxu0
  %v2128 = vadd.f32 0.0, %v2127
  %v2129 = vpop.f32.mrb[0].mxu0
  %v2130 = vadd.f32 0.0, %v2129
  %2131 = vdwg.mxu0
  %2132 = vmatprep.subr.mxu0 0.0
  %2133 = vmatpush1.msra.mxu0 %v1981
  %2134 = vmatprep.subr.mxu0 0.0
  %2135 = vmatpush1.msra.mxu0 0.0
  %2136 = vmatprep.subr.mxu0 0.0
  %2137 = vmatpush1.msra.mxu0 0.0
  %2138 = vmatprep.subr.mxu0 0.0
  %2139 = vmatpush1.msra.mxu0 0.0
  %2140 = vmatprep.subr.mxu0 0.0
  %2141 = vmatpush1.msra.mxu0 0.0
  %2142 = vmatprep.subr.mxu0 0.0
  %2143 = vmatpush1.msra.mxu0 0.0
  %2144 = vmatprep.subr.mxu0 0.0
  %2145 = vmatpush1.msra.mxu0 0.0
  %2146 = vmatprep.subr.mxu0 0.0
  %2147 = vmatpush1.msra.mxu0 0.0
  %2148 = vmatprep.subr.mxu0 0.0
  %2149 = vmatpush1.msra.mxu0 0.0
  %2150 = vmatprep.subr.mxu0 0.0
  %2151 = vmatpush1.msra.mxu0 0.0
  %2152 = vmatprep.subr.mxu0 0.0
  %2153 = vmatpush1.msra.mxu0 0.0
  %2154 = vmatprep.subr.mxu0 0.0
  %2155 = vmatpush1.msra.mxu0 0.0
  %2156 = vmatprep.subr.mxu0 0.0
  %2157 = vmatpush1.msra.mxu0 0.0
  %2158 = vmatprep.subr.mxu0 0.0
  %2159 = vmatpush1.msra.mxu0 0.0
  %2160 = vmatprep.subr.mxu0 0.0
  %2161 = vmatpush1.msra.mxu0 0.0
  %2162 = vmatprep.subr.mxu0 0.0
  %2163 = vmatpush1.msra.mxu0 0.0
  %2164 = vmatprep.subr.mxu0 0.0
  %2165 = vmatpush1.msra.mxu0 0.0
  %2166 = vmatprep.subr.mxu0 0.0
  %2167 = vmatpush1.msra.mxu0 0.0
  %2168 = vmatprep.subr.mxu0 0.0
  %2169 = vmatpush1.msra.mxu0 0.0
  %2170 = vmatprep.subr.mxu0 0.0
  %2171 = vmatpush1.msra.mxu0 0.0
  %2172 = vmatprep.subr.mxu0 0.0
  %2173 = vmatpush1.msra.mxu0 0.0
  %2174 = vmatprep.subr.mxu0 0.0
  %2175 = vmatpush1.msra.mxu0 0.0
  %2176 = vmatprep.subr.mxu0 0.0
  %2177 = vmatpush1.msra.mxu0 0.0
  %2178 = vmatprep.subr.mxu0 0.0
  %2179 = vmatpush1.msra.mxu0 0.0
  %2180 = vmatprep.subr.mxu0 0.0
  %2181 = vmatpush1.msra.mxu0 0.0
  %2182 = vmatprep.subr.mxu0 0.0
  %2183 = vmatpush1.msra.mxu0 0.0
  %2184 = vmatprep.subr.mxu0 0.0
  %2185 = vmatpush1.msra.mxu0 0.0
  %2186 = vmatprep.subr.mxu0 0.0
  %2187 = vmatpush1.msra.mxu0 0.0
  %2188 = vmatprep.subr.mxu0 0.0
  %2189 = vmatpush1.msra.mxu0 0.0
  %2190 = vmatprep.subr.mxu0 0.0
  %2191 = vmatpush1.msra.mxu0 0.0
  %2192 = vmatprep.subr.mxu0 0.0
  %2193 = vmatpush1.msra.mxu0 0.0
  %2194 = vmatprep.subr.mxu0 0.0
  %2195 = vmatpush1.msra.mxu0 0.0
  %2196 = vmatprep.mubr.f32.mxu0 0.0
  %2197 = vmatmul.mubr.f32.gmra.mrb[0].mxu0 %v1988
  %v2198 = vpop.f32.mrb[0].mxu0
  %v2199 = vadd.f32 0.0, %v2198
  %v2200 = vpop.f32.mrb[0].mxu0
  %2201 = vdwg.mxu0
  %v2202 = vadd.f32 %v1957, %v2057
  %v2203 = vadd.f32 %v1958, %v2059
  %v2204 = vadd.f32 %v1959, %v2128
  %v2205 = vadd.f32 %v1960, %v2130
  %v2206 = vadd.f32 %v1961, %v2199
  %v2208 = vlaneseq
  %v2209 = vshrl.u32 %v2208, 7
  %v2210 = vsub.s32 0, %v2209
  %v2211 = vrot.slane %v17, %v2210
  %v2212 = vlaneseq
  %v2213 = vshrl.u32 %v2212, 7
  %v2214 = vsub.s32 1, %v2213
  %v2215 = vrot.slane %v17, %v2214
  %v2216 = vlaneseq
  %v2217 = vshrl.u32 %v2216, 7
  %v2218 = vsub.s32 2, %v2217
  %v2219 = vrot.slane %v17, %v2218
  %v2220 = vlaneseq
  %v2221 = vshrl.u32 %v2220, 7
  %v2222 = vsub.s32 3, %v2221
  %v2223 = vrot.slane %v17, %v2222
  %v2224 = vlaneseq
  %v2225 = vshrl.u32 %v2224, 7
  %v2226 = vsub.s32 4, %v2225
  %v2227 = vrot.slane %v17, %v2226
  %v2233 = vmul.f32 %v2202, %v2211
  %v2234 = vmul.f32 %v2203, %v2215
  %v2235 = vmul.f32 %v2204, %v2219
  %v2236 = vmul.f32 %v2205, %v2223
  %v2237 = vmul.f32 %v2206, %v2227
  %v2238 = vadd.f32 %v2233, %v2234
  %v2239 = vadd.f32 %v2238, %v2235
  %v2240 = vadd.f32 %v2239, %v2236
  %v2241 = vadd.f32 %v2240, %v2237
  %2242 = vadd.xlane.f32.xlu0 %v2241
  %v2243 = vpop.xlane.xlu0 %2242
  %v2244 = vmul.f32 %v2233, %v2202
  %v2245 = vmul.f32 %v2234, %v2203
  %v2246 = vmul.f32 %v2235, %v2204
  %v2247 = vmul.f32 %v2236, %v2205
  %v2248 = vmul.f32 %v2237, %v2206
  %v2249 = vadd.f32 %v2244, %v2245
  %v2250 = vadd.f32 %v2249, %v2246
  %v2251 = vadd.f32 %v2250, %v2247
  %v2252 = vadd.f32 %v2251, %v2248
  %2253 = vadd.xlane.f32.xlu0 %v2252
  %v2254 = vpop.xlane.xlu0 %2253
  %v2255 = vmul.f32 %v2243, 0.001953125
  %v2256 = vmul.f32 %v2254, 0.001953125
  %v2257 = vmul.f32 %v2255, %v2255
  %v2258 = vsub.f32 %v2256, %v2257
  %v2259 = vmax.f32 %v2258, 0.0
  %v2260 = vsub.f32 %v2202, %v2255
  %v2261 = vsub.f32 %v2203, %v2255
  %v2262 = vsub.f32 %v2204, %v2255
  %v2263 = vsub.f32 %v2205, %v2255
  %v2264 = vsub.f32 %v2206, %v2255
  %v2265 = vadd.f32 %v2259, 1e-05
  %v2266 = vrsqrt.pop %v2265
  %v2267 = vmul.f32 %v2260, %v2266
  %v2268 = vmul.f32 %v2261, %v2266
  %v2269 = vmul.f32 %v2262, %v2266
  %v2270 = vmul.f32 %v2263, %v2266
  %v2271 = vmul.f32 %v2264, %v2266
  %v2272 = vmul.f32 %v2267, 0.5
  %v2273 = vmul.f32 %v2268, 0.5
  %v2274 = vmul.f32 %v2269, 0.5
  %v2275 = vmul.f32 %v2270, 0.5
  %v2276 = vmul.f32 %v2271, 0.5
  %v2277 = vmul.f32 %v2267, 0.70710677
  %v2278 = vmul.f32 %v2268, 0.70710677
  %v2279 = vmul.f32 %v2269, 0.70710677
  %v2280 = vmul.f32 %v2270, 0.70710677
  %v2281 = vmul.f32 %v2271, 0.70710677
  %v2282 = verf.f32.pop %v2277
  %v2283 = verf.f32.pop %v2278
  %v2284 = verf.f32.pop %v2279
  %v2285 = verf.f32.pop %v2280
  %v2286 = verf.f32.pop %v2281
  %v2287 = vadd.f32 %v2282, 1.0
  %v2288 = vadd.f32 %v2283, 1.0
  %v2289 = vadd.f32 %v2284, 1.0
  %v2290 = vadd.f32 %v2285, 1.0
  %v2291 = vadd.f32 %v2286, 1.0
  %v2292 = vmul.f32 %v2272, %v2287
  %v2293 = vmul.f32 %v2273, %v2288
  %v2294 = vmul.f32 %v2274, %v2289
  %v2295 = vmul.f32 %v2275, %v2290
  %v2296 = vmul.f32 %v2276, %v2291
  %2297 = vst [vmem:[#allocation2] sm:$0xff] 0.0
  %v2298 = vmul.f32 %v2292, %v2211
  %v2299 = vmul.f32 %v2293, %v2215
  %v2300 = vmul.f32 %v2294, %v2219
  %v2301 = vmul.f32 %v2295, %v2223
  %v2302 = vmul.f32 %v2296, %v2227
  %2303 = vst [vmem:[#allocation2 + $0x8] sm:$0xff] %v2298
  %2304 = vst [vmem:[#allocation2 + $0x10] sm:$0xff] %v2299
  %2305 = vst [vmem:[#allocation2 + $0x18] sm:$0xff] %v2300
  %2306 = vst [vmem:[#allocation2 + $0x20] sm:$0xff] %v2301
  %2307 = vst [vmem:[#allocation2 + $0x28] sm:$0xff] %v2302
  %2308 = vst [vmem:[#allocation2 + $0x30] sm:$0xff] 0.0
  %v2309 = vld [vmem:[%s2] sm:$0xff]
  %v2310 = vld [vmem:[#allocation2] sm:$0xff]
  %v2311 = vld [vmem:[#allocation2 + $0x8] sm:$0xff]
  %v2312 = vld [vmem:[#allocation2 + $0x10] sm:$0xff]
  %v2313 = vld [vmem:[#allocation2 + $0x18] sm:$0xff]
  %v2314 = vld [vmem:[#allocation2 + $0x20] sm:$0xff]
  %v2315 = vld [vmem:[#allocation2 + $0x28] sm:$0xff]
  %s2316 = scalar_lea.vmem %s2, 8
  %v2317 = vld [vmem:[%s2316] sm:$0xff]
  %v2318 = vld [vmem:[#allocation2] sm:$0xff]
  %v2319 = vld [vmem:[#allocation2 + $0x8] sm:$0xff]
  %v2320 = vld [vmem:[#allocation2 + $0x10] sm:$0xff]
  %v2321 = vld [vmem:[#allocation2 + $0x18] sm:$0xff]
  %v2322 = vld [vmem:[#allocation2 + $0x20] sm:$0xff]
  %v2323 = vld [vmem:[#allocation2 + $0x28] sm:$0xff]
  %v2324 = vld [vmem:[#allocation2 + $0x30] sm:$0xff]
  %2332 = vrot.lane.b32.xlu0 %v2318, 18
  %v2333 = vpop.permute.xlu0 %2332
  %2334 = vrot.lane.b32.xlu0 %v2319, 18
  %v2335 = vpop.permute.xlu0 %2334
  %2336 = vrot.lane.b32.xlu0 %v2320, 18
  %v2337 = vpop.permute.xlu0 %2336
  %2338 = vrot.lane.b32.xlu0 %v2321, 18
  %v2339 = vpop.permute.xlu0 %2338
  %2340 = vrot.lane.b32.xlu0 %v2322, 18
  %v2341 = vpop.permute.xlu0 %2340
  %2342 = vrot.lane.b32.xlu0 %v2323, 18
  %v2343 = vpop.permute.xlu0 %2342
  %2344 = vrot.lane.b32.xlu0 %v2324, 18
  %v2345 = vpop.permute.xlu0 %2344
  %vm2346 = vcmask 146432
  %v2347 = vsel %vm2346, %v2333, %v2335
  %v2348 = vsel %vm2346, %v2335, %v2337
  %v2349 = vsel %vm2346, %v2337, %v2339
  %v2350 = vsel %vm2346, %v2339, %v2341
  %v2351 = vsel %vm2346, %v2341, %v2343
  %v2352 = vsel %vm2346, %v2343, %v2345
  %v2360 = vsel %vm61, %v2317, 0
  %2362 = vmatprep.subr.mxu0 %v2348
  %2363 = vmatpush1.msra.mxu0 %v2347
  %2364 = vmatprep.subr.mxu0 0.0
  %2365 = vmatpush1.msra.mxu0 0.0
  %2366 = vmatprep.subr.mxu0 0.0
  %2367 = vmatpush1.msra.mxu0 0.0
  %2368 = vmatprep.subr.mxu0 0.0
  %2369 = vmatpush1.msra.mxu0 0.0
  %2370 = vmatprep.subr.mxu0 0.0
  %2371 = vmatpush1.msra.mxu0 0.0
  %2372 = vmatprep.subr.mxu0 0.0
  %2373 = vmatpush1.msra.mxu0 0.0
  %2374 = vmatprep.subr.mxu0 0.0
  %2375 = vmatpush1.msra.mxu0 0.0
  %2376 = vmatprep.subr.mxu0 0.0
  %2377 = vmatpush1.msra.mxu0 0.0
  %2378 = vmatprep.subr.mxu0 0.0
  %2379 = vmatpush1.msra.mxu0 0.0
  %2380 = vmatprep.subr.mxu0 0.0
  %2381 = vmatpush1.msra.mxu0 0.0
  %2382 = vmatprep.subr.mxu0 0.0
  %2383 = vmatpush1.msra.mxu0 0.0
  %2384 = vmatprep.subr.mxu0 0.0
  %2385 = vmatpush1.msra.mxu0 0.0
  %2386 = vmatprep.subr.mxu0 0.0
  %2387 = vmatpush1.msra.mxu0 0.0
  %2388 = vmatprep.subr.mxu0 0.0
  %2389 = vmatpush1.msra.mxu0 0.0
  %2390 = vmatprep.subr.mxu0 0.0
  %2391 = vmatpush1.msra.mxu0 0.0
  %2392 = vmatprep.subr.mxu0 0.0
  %2393 = vmatpush1.msra.mxu0 0.0
  %2394 = vmatprep.subr.mxu0 0.0
  %2395 = vmatpush1.msra.mxu0 0.0
  %2396 = vmatprep.subr.mxu0 0.0
  %2397 = vmatpush1.msra.mxu0 0.0
  %2398 = vmatprep.subr.mxu0 0.0
  %2399 = vmatpush1.msra.mxu0 0.0
  %2400 = vmatprep.subr.mxu0 0.0
  %2401 = vmatpush1.msra.mxu0 0.0
  %2402 = vmatprep.subr.mxu0 0.0
  %2403 = vmatpush1.msra.mxu0 0.0
  %2404 = vmatprep.subr.mxu0 0.0
  %2405 = vmatpush1.msra.mxu0 0.0
  %2406 = vmatprep.subr.mxu0 0.0
  %2407 = vmatpush1.msra.mxu0 0.0
  %2408 = vmatprep.subr.mxu0 0.0
  %2409 = vmatpush1.msra.mxu0 0.0
  %2410 = vmatprep.subr.mxu0 0.0
  %2411 = vmatpush1.msra.mxu0 0.0
  %2412 = vmatprep.subr.mxu0 0.0
  %2413 = vmatpush1.msra.mxu0 0.0
  %2414 = vmatprep.subr.mxu0 0.0
  %2415 = vmatpush1.msra.mxu0 0.0
  %2416 = vmatprep.subr.mxu0 0.0
  %2417 = vmatpush1.msra.mxu0 0.0
  %2418 = vmatprep.subr.mxu0 0.0
  %2419 = vmatpush1.msra.mxu0 0.0
  %2420 = vmatprep.subr.mxu0 0.0
  %2421 = vmatpush1.msra.mxu0 0.0
  %2422 = vmatprep.subr.mxu0 0.0
  %2423 = vmatpush1.msra.mxu0 0.0
  %2424 = vmatprep.subr.mxu0 0.0
  %2425 = vmatpush1.msra.mxu0 0.0
  %2426 = vmatprep.mubr.f32.mxu0 0.0
  %2427 = vmatmul.mubr.f32.gmra.mrb[0].mxu0 %v2360
  %v2428 = vpop.f32.mrb[0].mxu0
  %v2429 = vadd.f32 0.0, %v2428
  %v2430 = vpop.f32.mrb[0].mxu0
  %v2431 = vadd.f32 0.0, %v2430
  %2432 = vdwg.mxu0
  %2433 = vmatprep.subr.mxu0 %v2350
  %2434 = vmatpush1.msra.mxu0 %v2349
  %2435 = vmatprep.subr.mxu0 0.0
  %2436 = vmatpush1.msra.mxu0 0.0
  %2437 = vmatprep.subr.mxu0 0.0
  %2438 = vmatpush1.msra.mxu0 0.0
  %2439 = vmatprep.subr.mxu0 0.0
  %2440 = vmatpush1.msra.mxu0 0.0
  %2441 = vmatprep.subr.mxu0 0.0
  %2442 = vmatpush1.msra.mxu0 0.0
  %2443 = vmatprep.subr.mxu0 0.0
  %2444 = vmatpush1.msra.mxu0 0.0
  %2445 = vmatprep.subr.mxu0 0.0
  %2446 = vmatpush1.msra.mxu0 0.0
  %2447 = vmatprep.subr.mxu0 0.0
  %2448 = vmatpush1.msra.mxu0 0.0
  %2449 = vmatprep.subr.mxu0 0.0
  %2450 = vmatpush1.msra.mxu0 0.0
  %2451 = vmatprep.subr.mxu0 0.0
  %2452 = vmatpush1.msra.mxu0 0.0
  %2453 = vmatprep.subr.mxu0 0.0
  %2454 = vmatpush1.msra.mxu0 0.0
  %2455 = vmatprep.subr.mxu0 0.0
  %2456 = vmatpush1.msra.mxu0 0.0
  %2457 = vmatprep.subr.mxu0 0.0
  %2458 = vmatpush1.msra.mxu0 0.0
  %2459 = vmatprep.subr.mxu0 0.0
  %2460 = vmatpush1.msra.mxu0 0.0
  %2461 = vmatprep.subr.mxu0 0.0
  %2462 = vmatpush1.msra.mxu0 0.0
  %2463 = vmatprep.subr.mxu0 0.0
  %2464 = vmatpush1.msra.mxu0 0.0
  %2465 = vmatprep.subr.mxu0 0.0
  %2466 = vmatpush1.msra.mxu0 0.0
  %2467 = vmatprep.subr.mxu0 0.0
  %2468 = vmatpush1.msra.mxu0 0.0
  %2469 = vmatprep.subr.mxu0 0.0
  %2470 = vmatpush1.msra.mxu0 0.0
  %2471 = vmatprep.subr.mxu0 0.0
  %2472 = vmatpush1.msra.mxu0 0.0
  %2473 = vmatprep.subr.mxu0 0.0
  %2474 = vmatpush1.msra.mxu0 0.0
  %2475 = vmatprep.subr.mxu0 0.0
  %2476 = vmatpush1.msra.mxu0 0.0
  %2477 = vmatprep.subr.mxu0 0.0
  %2478 = vmatpush1.msra.mxu0 0.0
  %2479 = vmatprep.subr.mxu0 0.0
  %2480 = vmatpush1.msra.mxu0 0.0
  %2481 = vmatprep.subr.mxu0 0.0
  %2482 = vmatpush1.msra.mxu0 0.0
  %2483 = vmatprep.subr.mxu0 0.0
  %2484 = vmatpush1.msra.mxu0 0.0
  %2485 = vmatprep.subr.mxu0 0.0
  %2486 = vmatpush1.msra.mxu0 0.0
  %2487 = vmatprep.subr.mxu0 0.0
  %2488 = vmatpush1.msra.mxu0 0.0
  %2489 = vmatprep.subr.mxu0 0.0
  %2490 = vmatpush1.msra.mxu0 0.0
  %2491 = vmatprep.subr.mxu0 0.0
  %2492 = vmatpush1.msra.mxu0 0.0
  %2493 = vmatprep.subr.mxu0 0.0
  %2494 = vmatpush1.msra.mxu0 0.0
  %2495 = vmatprep.subr.mxu0 0.0
  %2496 = vmatpush1.msra.mxu0 0.0
  %2497 = vmatprep.mubr.f32.mxu0 0.0
  %2498 = vmatmul.mubr.f32.gmra.mrb[0].mxu0 %v2360
  %v2499 = vpop.f32.mrb[0].mxu0
  %v2500 = vadd.f32 0.0, %v2499
  %v2501 = vpop.f32.mrb[0].mxu0
  %v2502 = vadd.f32 0.0, %v2501
  %2503 = vdwg.mxu0
  %2504 = vmatprep.subr.mxu0 %v2352
  %2505 = vmatpush1.msra.mxu0 %v2351
  %2506 = vmatprep.subr.mxu0 0.0
  %2507 = vmatpush1.msra.mxu0 0.0
  %2508 = vmatprep.subr.mxu0 0.0
  %2509 = vmatpush1.msra.mxu0 0.0
  %2510 = vmatprep.subr.mxu0 0.0
  %2511 = vmatpush1.msra.mxu0 0.0
  %2512 = vmatprep.subr.mxu0 0.0
  %2513 = vmatpush1.msra.mxu0 0.0
  %2514 = vmatprep.subr.mxu0 0.0
  %2515 = vmatpush1.msra.mxu0 0.0
  %2516 = vmatprep.subr.mxu0 0.0
  %2517 = vmatpush1.msra.mxu0 0.0
  %2518 = vmatprep.subr.mxu0 0.0
  %2519 = vmatpush1.msra.mxu0 0.0
  %2520 = vmatprep.subr.mxu0 0.0
  %2521 = vmatpush1.msra.mxu0 0.0
  %2522 = vmatprep.subr.mxu0 0.0
  %2523 = vmatpush1.msra.mxu0 0.0
  %2524 = vmatprep.subr.mxu0 0.0
  %2525 = vmatpush1.msra.mxu0 0.0
  %2526 = vmatprep.subr.mxu0 0.0
  %2527 = vmatpush1.msra.mxu0 0.0
  %2528 = vmatprep.subr.mxu0 0.0
  %2529 = vmatpush1.msra.mxu0 0.0
  %2530 = vmatprep.subr.mxu0 0.0
  %2531 = vmatpush1.msra.mxu0 0.0
  %2532 = vmatprep.subr.mxu0 0.0
  %2533 = vmatpush1.msra.mxu0 0.0
  %2534 = vmatprep.subr.mxu0 0.0
  %2535 = vmatpush1.msra.mxu0 0.0
  %2536 = vmatprep.subr.mxu0 0.0
  %2537 = vmatpush1.msra.mxu0 0.0
  %2538 = vmatprep.subr.mxu0 0.0
  %2539 = vmatpush1.msra.mxu0 0.0
  %2540 = vmatprep.subr.mxu0 0.0
  %2541 = vmatpush1.msra.mxu0 0.0
  %2542 = vmatprep.subr.mxu0 0.0
  %2543 = vmatpush1.msra.mxu0 0.0
  %2544 = vmatprep.subr.mxu0 0.0
  %2545 = vmatpush1.msra.mxu0 0.0
  %2546 = vmatprep.subr.mxu0 0.0
  %2547 = vmatpush1.msra.mxu0 0.0
  %2548 = vmatprep.subr.mxu0 0.0
  %2549 = vmatpush1.msra.mxu0 0.0
  %2550 = vmatprep.subr.mxu0 0.0
  %2551 = vmatpush1.msra.mxu0 0.0
  %2552 = vmatprep.subr.mxu0 0.0
  %2553 = vmatpush1.msra.mxu0 0.0
  %2554 = vmatprep.subr.mxu0 0.0
  %2555 = vmatpush1.msra.mxu0 0.0
  %2556 = vmatprep.subr.mxu0 0.0
  %2557 = vmatpush1.msra.mxu0 0.0
  %2558 = vmatprep.subr.mxu0 0.0
  %2559 = vmatpush1.msra.mxu0 0.0
  %2560 = vmatprep.subr.mxu0 0.0
  %2561 = vmatpush1.msra.mxu0 0.0
  %2562 = vmatprep.subr.mxu0 0.0
  %2563 = vmatpush1.msra.mxu0 0.0
  %2564 = vmatprep.subr.mxu0 0.0
  %2565 = vmatpush1.msra.mxu0 0.0
  %2566 = vmatprep.subr.mxu0 0.0
  %2567 = vmatpush1.msra.mxu0 0.0
  %2568 = vmatprep.mubr.f32.mxu0 0.0
  %2569 = vmatmul.mubr.f32.gmra.mrb[0].mxu0 %v2360
  %v2570 = vpop.f32.mrb[0].mxu0
  %v2571 = vadd.f32 0.0, %v2570
  %v2572 = vpop.f32.mrb[0].mxu0
  %v2573 = vadd.f32 0.0, %v2572
  %2574 = vdwg.mxu0
  %2581 = vrot.lane.b32.xlu0 %v2310, 19
  %v2582 = vpop.permute.xlu0 %2581
  %2583 = vrot.lane.b32.xlu0 %v2311, 19
  %v2584 = vpop.permute.xlu0 %2583
  %2585 = vrot.lane.b32.xlu0 %v2312, 19
  %v2586 = vpop.permute.xlu0 %2585
  %2587 = vrot.lane.b32.xlu0 %v2313, 19
  %v2588 = vpop.permute.xlu0 %2587
  %2589 = vrot.lane.b32.xlu0 %v2314, 19
  %v2590 = vpop.permute.xlu0 %2589
  %2591 = vrot.lane.b32.xlu0 %v2315, 19
  %v2592 = vpop.permute.xlu0 %2591
  %vm2593 = vcmask 154624
  %v2594 = vsel %vm2593, %v2582, %v2584
  %v2595 = vsel %vm2593, %v2584, %v2586
  %v2596 = vsel %vm2593, %v2586, %v2588
  %v2597 = vsel %vm2593, %v2588, %v2590
  %v2598 = vsel %vm2593, %v2590, %v2592
  %v2606 = vsel %vm61, %v2309, 0
  %2608 = vmatprep.subr.mxu0 %v2595
  %2609 = vmatpush1.msra.mxu0 %v2594
  %2610 = vmatprep.subr.mxu0 0.0
  %2611 = vmatpush1.msra.mxu0 0.0
  %2612 = vmatprep.subr.mxu0 0.0
  %2613 = vmatpush1.msra.mxu0 0.0
  %2614 = vmatprep.subr.mxu0 0.0
  %2615 = vmatpush1.msra.mxu0 0.0
  %2616 = vmatprep.subr.mxu0 0.0
  %2617 = vmatpush1.msra.mxu0 0.0
  %2618 = vmatprep.subr.mxu0 0.0
  %2619 = vmatpush1.msra.mxu0 0.0
  %2620 = vmatprep.subr.mxu0 0.0
  %2621 = vmatpush1.msra.mxu0 0.0
  %2622 = vmatprep.subr.mxu0 0.0
  %2623 = vmatpush1.msra.mxu0 0.0
  %2624 = vmatprep.subr.mxu0 0.0
  %2625 = vmatpush1.msra.mxu0 0.0
  %2626 = vmatprep.subr.mxu0 0.0
  %2627 = vmatpush1.msra.mxu0 0.0
  %2628 = vmatprep.subr.mxu0 0.0
  %2629 = vmatpush1.msra.mxu0 0.0
  %2630 = vmatprep.subr.mxu0 0.0
  %2631 = vmatpush1.msra.mxu0 0.0
  %2632 = vmatprep.subr.mxu0 0.0
  %2633 = vmatpush1.msra.mxu0 0.0
  %2634 = vmatprep.subr.mxu0 0.0
  %2635 = vmatpush1.msra.mxu0 0.0
  %2636 = vmatprep.subr.mxu0 0.0
  %2637 = vmatpush1.msra.mxu0 0.0
  %2638 = vmatprep.subr.mxu0 0.0
  %2639 = vmatpush1.msra.mxu0 0.0
  %2640 = vmatprep.subr.mxu0 0.0
  %2641 = vmatpush1.msra.mxu0 0.0
  %2642 = vmatprep.subr.mxu0 0.0
  %2643 = vmatpush1.msra.mxu0 0.0
  %2644 = vmatprep.subr.mxu0 0.0
  %2645 = vmatpush1.msra.mxu0 0.0
  %2646 = vmatprep.subr.mxu0 0.0
  %2647 = vmatpush1.msra.mxu0 0.0
  %2648 = vmatprep.subr.mxu0 0.0
  %2649 = vmatpush1.msra.mxu0 0.0
  %2650 = vmatprep.subr.mxu0 0.0
  %2651 = vmatpush1.msra.mxu0 0.0
  %2652 = vmatprep.subr.mxu0 0.0
  %2653 = vmatpush1.msra.mxu0 0.0
  %2654 = vmatprep.subr.mxu0 0.0
  %2655 = vmatpush1.msra.mxu0 0.0
  %2656 = vmatprep.subr.mxu0 0.0
  %2657 = vmatpush1.msra.mxu0 0.0
  %2658 = vmatprep.subr.mxu0 0.0
  %2659 = vmatpush1.msra.mxu0 0.0
  %2660 = vmatprep.subr.mxu0 0.0
  %2661 = vmatpush1.msra.mxu0 0.0
  %2662 = vmatprep.subr.mxu0 0.0
  %2663 = vmatpush1.msra.mxu0 0.0
  %2664 = vmatprep.subr.mxu0 0.0
  %2665 = vmatpush1.msra.mxu0 0.0
  %2666 = vmatprep.subr.mxu0 0.0
  %2667 = vmatpush1.msra.mxu0 0.0
  %2668 = vmatprep.subr.mxu0 0.0
  %2669 = vmatpush1.msra.mxu0 0.0
  %2670 = vmatprep.subr.mxu0 0.0
  %2671 = vmatpush1.msra.mxu0 0.0
  %2672 = vmatprep.mubr.f32.mxu0 0.0
  %2673 = vmatmul.mubr.f32.gmra.mrb[0].mxu0 %v2606
  %v2674 = vpop.f32.mrb[0].mxu0
  %v2675 = vadd.f32 %v2429, %v2674
  %v2676 = vpop.f32.mrb[0].mxu0
  %v2677 = vadd.f32 %v2431, %v2676
  %2678 = vdwg.mxu0
  %2679 = vmatprep.subr.mxu0 %v2597
  %2680 = vmatpush1.msra.mxu0 %v2596
  %2681 = vmatprep.subr.mxu0 0.0
  %2682 = vmatpush1.msra.mxu0 0.0
  %2683 = vmatprep.subr.mxu0 0.0
  %2684 = vmatpush1.msra.mxu0 0.0
  %2685 = vmatprep.subr.mxu0 0.0
  %2686 = vmatpush1.msra.mxu0 0.0
  %2687 = vmatprep.subr.mxu0 0.0
  %2688 = vmatpush1.msra.mxu0 0.0
  %2689 = vmatprep.subr.mxu0 0.0
  %2690 = vmatpush1.msra.mxu0 0.0
  %2691 = vmatprep.subr.mxu0 0.0
  %2692 = vmatpush1.msra.mxu0 0.0
  %2693 = vmatprep.subr.mxu0 0.0
  %2694 = vmatpush1.msra.mxu0 0.0
  %2695 = vmatprep.subr.mxu0 0.0
  %2696 = vmatpush1.msra.mxu0 0.0
  %2697 = vmatprep.subr.mxu0 0.0
  %2698 = vmatpush1.msra.mxu0 0.0
  %2699 = vmatprep.subr.mxu0 0.0
  %2700 = vmatpush1.msra.mxu0 0.0
  %2701 = vmatprep.subr.mxu0 0.0
  %2702 = vmatpush1.msra.mxu0 0.0
  %2703 = vmatprep.subr.mxu0 0.0
  %2704 = vmatpush1.msra.mxu0 0.0
  %2705 = vmatprep.subr.mxu0 0.0
  %2706 = vmatpush1.msra.mxu0 0.0
  %2707 = vmatprep.subr.mxu0 0.0
  %2708 = vmatpush1.msra.mxu0 0.0
  %2709 = vmatprep.subr.mxu0 0.0
  %2710 = vmatpush1.msra.mxu0 0.0
  %2711 = vmatprep.subr.mxu0 0.0
  %2712 = vmatpush1.msra.mxu0 0.0
  %2713 = vmatprep.subr.mxu0 0.0
  %2714 = vmatpush1.msra.mxu0 0.0
  %2715 = vmatprep.subr.mxu0 0.0
  %2716 = vmatpush1.msra.mxu0 0.0
  %2717 = vmatprep.subr.mxu0 0.0
  %2718 = vmatpush1.msra.mxu0 0.0
  %2719 = vmatprep.subr.mxu0 0.0
  %2720 = vmatpush1.msra.mxu0 0.0
  %2721 = vmatprep.subr.mxu0 0.0
  %2722 = vmatpush1.msra.mxu0 0.0
  %2723 = vmatprep.subr.mxu0 0.0
  %2724 = vmatpush1.msra.mxu0 0.0
  %2725 = vmatprep.subr.mxu0 0.0
  %2726 = vmatpush1.msra.mxu0 0.0
  %2727 = vmatprep.subr.mxu0 0.0
  %2728 = vmatpush1.msra.mxu0 0.0
  %2729 = vmatprep.subr.mxu0 0.0
  %2730 = vmatpush1.msra.mxu0 0.0
  %2731 = vmatprep.subr.mxu0 0.0
  %2732 = vmatpush1.msra.mxu0 0.0
  %2733 = vmatprep.subr.mxu0 0.0
  %2734 = vmatpush1.msra.mxu0 0.0
  %2735 = vmatprep.subr.mxu0 0.0
  %2736 = vmatpush1.msra.mxu0 0.0
  %2737 = vmatprep.subr.mxu0 0.0
  %2738 = vmatpush1.msra.mxu0 0.0
  %2739 = vmatprep.subr.mxu0 0.0
  %2740 = vmatpush1.msra.mxu0 0.0
  %2741 = vmatprep.subr.mxu0 0.0
  %2742 = vmatpush1.msra.mxu0 0.0
  %2743 = vmatprep.mubr.f32.mxu0 0.0
  %2744 = vmatmul.mubr.f32.gmra.mrb[0].mxu0 %v2606
  %v2745 = vpop.f32.mrb[0].mxu0
  %v2746 = vadd.f32 %v2500, %v2745
  %v2747 = vpop.f32.mrb[0].mxu0
  %v2748 = vadd.f32 %v2502, %v2747
  %2749 = vdwg.mxu0
  %2750 = vmatprep.subr.mxu0 %v2592
  %2751 = vmatpush1.msra.mxu0 %v2598
  %2752 = vmatprep.subr.mxu0 0.0
  %2753 = vmatpush1.msra.mxu0 0.0
  %2754 = vmatprep.subr.mxu0 0.0
  %2755 = vmatpush1.msra.mxu0 0.0
  %2756 = vmatprep.subr.mxu0 0.0
  %2757 = vmatpush1.msra.mxu0 0.0
  %2758 = vmatprep.subr.mxu0 0.0
  %2759 = vmatpush1.msra.mxu0 0.0
  %2760 = vmatprep.subr.mxu0 0.0
  %2761 = vmatpush1.msra.mxu0 0.0
  %2762 = vmatprep.subr.mxu0 0.0
  %2763 = vmatpush1.msra.mxu0 0.0
  %2764 = vmatprep.subr.mxu0 0.0
  %2765 = vmatpush1.msra.mxu0 0.0
  %2766 = vmatprep.subr.mxu0 0.0
  %2767 = vmatpush1.msra.mxu0 0.0
  %2768 = vmatprep.subr.mxu0 0.0
  %2769 = vmatpush1.msra.mxu0 0.0
  %2770 = vmatprep.subr.mxu0 0.0
  %2771 = vmatpush1.msra.mxu0 0.0
  %2772 = vmatprep.subr.mxu0 0.0
  %2773 = vmatpush1.msra.mxu0 0.0
  %2774 = vmatprep.subr.mxu0 0.0
  %2775 = vmatpush1.msra.mxu0 0.0
  %2776 = vmatprep.subr.mxu0 0.0
  %2777 = vmatpush1.msra.mxu0 0.0
  %2778 = vmatprep.subr.mxu0 0.0
  %2779 = vmatpush1.msra.mxu0 0.0
  %2780 = vmatprep.subr.mxu0 0.0
  %2781 = vmatpush1.msra.mxu0 0.0
  %2782 = vmatprep.subr.mxu0 0.0
  %2783 = vmatpush1.msra.mxu0 0.0
  %2784 = vmatprep.subr.mxu0 0.0
  %2785 = vmatpush1.msra.mxu0 0.0
  %2786 = vmatprep.subr.mxu0 0.0
  %2787 = vmatpush1.msra.mxu0 0.0
  %2788 = vmatprep.subr.mxu0 0.0
  %2789 = vmatpush1.msra.mxu0 0.0
  %2790 = vmatprep.subr.mxu0 0.0
  %2791 = vmatpush1.msra.mxu0 0.0
  %2792 = vmatprep.subr.mxu0 0.0
  %2793 = vmatpush1.msra.mxu0 0.0
  %2794 = vmatprep.subr.mxu0 0.0
  %2795 = vmatpush1.msra.mxu0 0.0
  %2796 = vmatprep.subr.mxu0 0.0
  %2797 = vmatpush1.msra.mxu0 0.0
  %2798 = vmatprep.subr.mxu0 0.0
  %2799 = vmatpush1.msra.mxu0 0.0
  %2800 = vmatprep.subr.mxu0 0.0
  %2801 = vmatpush1.msra.mxu0 0.0
  %2802 = vmatprep.subr.mxu0 0.0
  %2803 = vmatpush1.msra.mxu0 0.0
  %2804 = vmatprep.subr.mxu0 0.0
  %2805 = vmatpush1.msra.mxu0 0.0
  %2806 = vmatprep.subr.mxu0 0.0
  %2807 = vmatpush1.msra.mxu0 0.0
  %2808 = vmatprep.subr.mxu0 0.0
  %2809 = vmatpush1.msra.mxu0 0.0
  %2810 = vmatprep.subr.mxu0 0.0
  %2811 = vmatpush1.msra.mxu0 0.0
  %2812 = vmatprep.subr.mxu0 0.0
  %2813 = vmatpush1.msra.mxu0 0.0
  %2814 = vmatprep.mubr.f32.mxu0 0.0
  %2815 = vmatmul.mubr.f32.gmra.mrb[0].mxu0 %v2606
  %v2816 = vpop.f32.mrb[0].mxu0
  %v2817 = vadd.f32 %v2571, %v2816
  %v2818 = vpop.f32.mrb[0].mxu0
  %v2819 = vadd.f32 %v2573, %v2818
  %2820 = vdwg.mxu0
  %s2821 = scalar_lea.vmem %s2, 16
  %v2822 = vld [vmem:[%s2821] sm:$0xff]
  %2823 = vrot.lane.b32.xlu0 %v2318, 17
  %v2824 = vpop.permute.xlu0 %2823
  %2825 = vrot.lane.b32.xlu0 %v2319, 17
  %v2826 = vpop.permute.xlu0 %2825
  %2827 = vrot.lane.b32.xlu0 %v2320, 17
  %v2828 = vpop.permute.xlu0 %2827
  %2829 = vrot.lane.b32.xlu0 %v2321, 17
  %v2830 = vpop.permute.xlu0 %2829
  %2831 = vrot.lane.b32.xlu0 %v2322, 17
  %v2832 = vpop.permute.xlu0 %2831
  %2833 = vrot.lane.b32.xlu0 %v2323, 17
  %v2834 = vpop.permute.xlu0 %2833
  %2835 = vrot.lane.b32.xlu0 %v2324, 17
  %v2836 = vpop.permute.xlu0 %2835
  %vm2837 = vcmask 138240
  %v2838 = vsel %vm2837, %v2824, %v2826
  %v2839 = vsel %vm2837, %v2826, %v2828
  %v2840 = vsel %vm2837, %v2828, %v2830
  %v2841 = vsel %vm2837, %v2830, %v2832
  %v2842 = vsel %vm2837, %v2832, %v2834
  %v2843 = vsel %vm2837, %v2834, %v2836
  %v2851 = vsel %vm61, %v2822, 0
  %2853 = vmatprep.subr.mxu0 %v2839
  %2854 = vmatpush1.msra.mxu0 %v2838
  %2855 = vmatprep.subr.mxu0 0.0
  %2856 = vmatpush1.msra.mxu0 0.0
  %2857 = vmatprep.subr.mxu0 0.0
  %2858 = vmatpush1.msra.mxu0 0.0
  %2859 = vmatprep.subr.mxu0 0.0
  %2860 = vmatpush1.msra.mxu0 0.0
  %2861 = vmatprep.subr.mxu0 0.0
  %2862 = vmatpush1.msra.mxu0 0.0
  %2863 = vmatprep.subr.mxu0 0.0
  %2864 = vmatpush1.msra.mxu0 0.0
  %2865 = vmatprep.subr.mxu0 0.0
  %2866 = vmatpush1.msra.mxu0 0.0
  %2867 = vmatprep.subr.mxu0 0.0
  %2868 = vmatpush1.msra.mxu0 0.0
  %2869 = vmatprep.subr.mxu0 0.0
  %2870 = vmatpush1.msra.mxu0 0.0
  %2871 = vmatprep.subr.mxu0 0.0
  %2872 = vmatpush1.msra.mxu0 0.0
  %2873 = vmatprep.subr.mxu0 0.0
  %2874 = vmatpush1.msra.mxu0 0.0
  %2875 = vmatprep.subr.mxu0 0.0
  %2876 = vmatpush1.msra.mxu0 0.0
  %2877 = vmatprep.subr.mxu0 0.0
  %2878 = vmatpush1.msra.mxu0 0.0
  %2879 = vmatprep.subr.mxu0 0.0
  %2880 = vmatpush1.msra.mxu0 0.0
  %2881 = vmatprep.subr.mxu0 0.0
  %2882 = vmatpush1.msra.mxu0 0.0
  %2883 = vmatprep.subr.mxu0 0.0
  %2884 = vmatpush1.msra.mxu0 0.0
  %2885 = vmatprep.subr.mxu0 0.0
  %2886 = vmatpush1.msra.mxu0 0.0
  %2887 = vmatprep.subr.mxu0 0.0
  %2888 = vmatpush1.msra.mxu0 0.0
  %2889 = vmatprep.subr.mxu0 0.0
  %2890 = vmatpush1.msra.mxu0 0.0
  %2891 = vmatprep.subr.mxu0 0.0
  %2892 = vmatpush1.msra.mxu0 0.0
  %2893 = vmatprep.subr.mxu0 0.0
  %2894 = vmatpush1.msra.mxu0 0.0
  %2895 = vmatprep.subr.mxu0 0.0
  %2896 = vmatpush1.msra.mxu0 0.0
  %2897 = vmatprep.subr.mxu0 0.0
  %2898 = vmatpush1.msra.mxu0 0.0
  %2899 = vmatprep.subr.mxu0 0.0
  %2900 = vmatpush1.msra.mxu0 0.0
  %2901 = vmatprep.subr.mxu0 0.0
  %2902 = vmatpush1.msra.mxu0 0.0
  %2903 = vmatprep.subr.mxu0 0.0
  %2904 = vmatpush1.msra.mxu0 0.0
  %2905 = vmatprep.subr.mxu0 0.0
  %2906 = vmatpush1.msra.mxu0 0.0
  %2907 = vmatprep.subr.mxu0 0.0
  %2908 = vmatpush1.msra.mxu0 0.0
  %2909 = vmatprep.subr.mxu0 0.0
  %2910 = vmatpush1.msra.mxu0 0.0
  %2911 = vmatprep.subr.mxu0 0.0
  %2912 = vmatpush1.msra.mxu0 0.0
  %2913 = vmatprep.subr.mxu0 0.0
  %2914 = vmatpush1.msra.mxu0 0.0
  %2915 = vmatprep.subr.mxu0 0.0
  %2916 = vmatpush1.msra.mxu0 0.0
  %2917 = vmatprep.mubr.f32.mxu0 0.0
  %2918 = vmatmul.mubr.f32.gmra.mrb[0].mxu0 %v2851
  %v2919 = vpop.f32.mrb[0].mxu0
  %v2920 = vadd.f32 0.0, %v2919
  %v2921 = vpop.f32.mrb[0].mxu0
  %v2922 = vadd.f32 0.0, %v2921
  %2923 = vdwg.mxu0
  %2924 = vmatprep.subr.mxu0 %v2841
  %2925 = vmatpush1.msra.mxu0 %v2840
  %2926 = vmatprep.subr.mxu0 0.0
  %2927 = vmatpush1.msra.mxu0 0.0
  %2928 = vmatprep.subr.mxu0 0.0
  %2929 = vmatpush1.msra.mxu0 0.0
  %2930 = vmatprep.subr.mxu0 0.0
  %2931 = vmatpush1.msra.mxu0 0.0
  %2932 = vmatprep.subr.mxu0 0.0
  %2933 = vmatpush1.msra.mxu0 0.0
  %2934 = vmatprep.subr.mxu0 0.0
  %2935 = vmatpush1.msra.mxu0 0.0
  %2936 = vmatprep.subr.mxu0 0.0
  %2937 = vmatpush1.msra.mxu0 0.0
  %2938 = vmatprep.subr.mxu0 0.0
  %2939 = vmatpush1.msra.mxu0 0.0
  %2940 = vmatprep.subr.mxu0 0.0
  %2941 = vmatpush1.msra.mxu0 0.0
  %2942 = vmatprep.subr.mxu0 0.0
  %2943 = vmatpush1.msra.mxu0 0.0
  %2944 = vmatprep.subr.mxu0 0.0
  %2945 = vmatpush1.msra.mxu0 0.0
  %2946 = vmatprep.subr.mxu0 0.0
  %2947 = vmatpush1.msra.mxu0 0.0
  %2948 = vmatprep.subr.mxu0 0.0
  %2949 = vmatpush1.msra.mxu0 0.0
  %2950 = vmatprep.subr.mxu0 0.0
  %2951 = vmatpush1.msra.mxu0 0.0
  %2952 = vmatprep.subr.mxu0 0.0
  %2953 = vmatpush1.msra.mxu0 0.0
  %2954 = vmatprep.subr.mxu0 0.0
  %2955 = vmatpush1.msra.mxu0 0.0
  %2956 = vmatprep.subr.mxu0 0.0
  %2957 = vmatpush1.msra.mxu0 0.0
  %2958 = vmatprep.subr.mxu0 0.0
  %2959 = vmatpush1.msra.mxu0 0.0
  %2960 = vmatprep.subr.mxu0 0.0
  %2961 = vmatpush1.msra.mxu0 0.0
  %2962 = vmatprep.subr.mxu0 0.0
  %2963 = vmatpush1.msra.mxu0 0.0
  %2964 = vmatprep.subr.mxu0 0.0
  %2965 = vmatpush1.msra.mxu0 0.0
  %2966 = vmatprep.subr.mxu0 0.0
  %2967 = vmatpush1.msra.mxu0 0.0
  %2968 = vmatprep.subr.mxu0 0.0
  %2969 = vmatpush1.msra.mxu0 0.0
  %2970 = vmatprep.subr.mxu0 0.0
  %2971 = vmatpush1.msra.mxu0 0.0
  %2972 = vmatprep.subr.mxu0 0.0
  %2973 = vmatpush1.msra.mxu0 0.0
  %2974 = vmatprep.subr.mxu0 0.0
  %2975 = vmatpush1.msra.mxu0 0.0
  %2976 = vmatprep.subr.mxu0 0.0
  %2977 = vmatpush1.msra.mxu0 0.0
  %2978 = vmatprep.subr.mxu0 0.0
  %2979 = vmatpush1.msra.mxu0 0.0
  %2980 = vmatprep.subr.mxu0 0.0
  %2981 = vmatpush1.msra.mxu0 0.0
  %2982 = vmatprep.subr.mxu0 0.0
  %2983 = vmatpush1.msra.mxu0 0.0
  %2984 = vmatprep.subr.mxu0 0.0
  %2985 = vmatpush1.msra.mxu0 0.0
  %2986 = vmatprep.subr.mxu0 0.0
  %2987 = vmatpush1.msra.mxu0 0.0
  %2988 = vmatprep.mubr.f32.mxu0 0.0
  %2989 = vmatmul.mubr.f32.gmra.mrb[0].mxu0 %v2851
  %v2990 = vpop.f32.mrb[0].mxu0
  %v2991 = vadd.f32 0.0, %v2990
  %v2992 = vpop.f32.mrb[0].mxu0
  %v2993 = vadd.f32 0.0, %v2992
  %2994 = vdwg.mxu0
  %2995 = vmatprep.subr.mxu0 %v2843
  %2996 = vmatpush1.msra.mxu0 %v2842
  %2997 = vmatprep.subr.mxu0 0.0
  %2998 = vmatpush1.msra.mxu0 0.0
  %2999 = vmatprep.subr.mxu0 0.0
  %3000 = vmatpush1.msra.mxu0 0.0
  %3001 = vmatprep.subr.mxu0 0.0
  %3002 = vmatpush1.msra.mxu0 0.0
  %3003 = vmatprep.subr.mxu0 0.0
  %3004 = vmatpush1.msra.mxu0 0.0
  %3005 = vmatprep.subr.mxu0 0.0
  %3006 = vmatpush1.msra.mxu0 0.0
  %3007 = vmatprep.subr.mxu0 0.0
  %3008 = vmatpush1.msra.mxu0 0.0
  %3009 = vmatprep.subr.mxu0 0.0
  %3010 = vmatpush1.msra.mxu0 0.0
  %3011 = vmatprep.subr.mxu0 0.0
  %3012 = vmatpush1.msra.mxu0 0.0
  %3013 = vmatprep.subr.mxu0 0.0
  %3014 = vmatpush1.msra.mxu0 0.0
  %3015 = vmatprep.subr.mxu0 0.0
  %3016 = vmatpush1.msra.mxu0 0.0
  %3017 = vmatprep.subr.mxu0 0.0
  %3018 = vmatpush1.msra.mxu0 0.0
  %3019 = vmatprep.subr.mxu0 0.0
  %3020 = vmatpush1.msra.mxu0 0.0
  %3021 = vmatprep.subr.mxu0 0.0
  %3022 = vmatpush1.msra.mxu0 0.0
  %3023 = vmatprep.subr.mxu0 0.0
  %3024 = vmatpush1.msra.mxu0 0.0
  %3025 = vmatprep.subr.mxu0 0.0
  %3026 = vmatpush1.msra.mxu0 0.0
  %3027 = vmatprep.subr.mxu0 0.0
  %3028 = vmatpush1.msra.mxu0 0.0
  %3029 = vmatprep.subr.mxu0 0.0
  %3030 = vmatpush1.msra.mxu0 0.0
  %3031 = vmatprep.subr.mxu0 0.0
  %3032 = vmatpush1.msra.mxu0 0.0
  %3033 = vmatprep.subr.mxu0 0.0
  %3034 = vmatpush1.msra.mxu0 0.0
  %3035 = vmatprep.subr.mxu0 0.0
  %3036 = vmatpush1.msra.mxu0 0.0
  %3037 = vmatprep.subr.mxu0 0.0
  %3038 = vmatpush1.msra.mxu0 0.0
  %3039 = vmatprep.subr.mxu0 0.0
  %3040 = vmatpush1.msra.mxu0 0.0
  %3041 = vmatprep.subr.mxu0 0.0
  %3042 = vmatpush1.msra.mxu0 0.0
  %3043 = vmatprep.subr.mxu0 0.0
  %3044 = vmatpush1.msra.mxu0 0.0
  %3045 = vmatprep.subr.mxu0 0.0
  %3046 = vmatpush1.msra.mxu0 0.0
  %3047 = vmatprep.subr.mxu0 0.0
  %3048 = vmatpush1.msra.mxu0 0.0
  %3049 = vmatprep.subr.mxu0 0.0
  %3050 = vmatpush1.msra.mxu0 0.0
  %3051 = vmatprep.subr.mxu0 0.0
  %3052 = vmatpush1.msra.mxu0 0.0
  %3053 = vmatprep.subr.mxu0 0.0
  %3054 = vmatpush1.msra.mxu0 0.0
  %3055 = vmatprep.subr.mxu0 0.0
  %3056 = vmatpush1.msra.mxu0 0.0
  %3057 = vmatprep.subr.mxu0 0.0
  %3058 = vmatpush1.msra.mxu0 0.0
  %3059 = vmatprep.mubr.f32.mxu0 0.0
  %3060 = vmatmul.mubr.f32.gmra.mrb[0].mxu0 %v2851
  %v3061 = vpop.f32.mrb[0].mxu0
  %v3062 = vadd.f32 0.0, %v3061
  %v3063 = vpop.f32.mrb[0].mxu0
  %v3064 = vadd.f32 0.0, %v3063
  %3065 = vdwg.mxu0
  %v3066 = vadd.f32 %v2675, %v2920
  %v3067 = vadd.f32 %v2677, %v2922
  %v3068 = vadd.f32 %v2746, %v2991
  %v3069 = vadd.f32 %v2748, %v2993
  %v3070 = vadd.f32 %v2817, %v3062
  %v3071 = vadd.f32 %v2819, %v3064
  %s3072 = scalar_lea.vmem %s2, 24
  %v3073 = vld [vmem:[%s3072] sm:$0xff]
  %3074 = vrot.lane.b32.xlu0 %v2318, 1
  %v3075 = vpop.permute.xlu0 %3074
  %3076 = vrot.lane.b32.xlu0 %v2319, 1
  %v3077 = vpop.permute.xlu0 %3076
  %3078 = vrot.lane.b32.xlu0 %v2320, 1
  %v3079 = vpop.permute.xlu0 %3078
  %3080 = vrot.lane.b32.xlu0 %v2321, 1
  %v3081 = vpop.permute.xlu0 %3080
  %3082 = vrot.lane.b32.xlu0 %v2322, 1
  %v3083 = vpop.permute.xlu0 %3082
  %3084 = vrot.lane.b32.xlu0 %v2323, 1
  %v3085 = vpop.permute.xlu0 %3084
  %3086 = vrot.lane.b32.xlu0 %v2324, 1
  %v3087 = vpop.permute.xlu0 %3086
  %vm3088 = vcmask 7168
  %v3089 = vsel %vm3088, %v3075, %v3077
  %v3090 = vsel %vm3088, %v3077, %v3079
  %v3091 = vsel %vm3088, %v3079, %v3081
  %v3092 = vsel %vm3088, %v3081, %v3083
  %v3093 = vsel %vm3088, %v3083, %v3085
  %v3094 = vsel %vm3088, %v3085, %v3087
  %v3102 = vsel %vm61, %v3073, 0
  %3104 = vmatprep.subr.mxu0 %v3090
  %3105 = vmatpush1.msra.mxu0 %v3089
  %3106 = vmatprep.subr.mxu0 0.0
  %3107 = vmatpush1.msra.mxu0 0.0
  %3108 = vmatprep.subr.mxu0 0.0
  %3109 = vmatpush1.msra.mxu0 0.0
  %3110 = vmatprep.subr.mxu0 0.0
  %3111 = vmatpush1.msra.mxu0 0.0
  %3112 = vmatprep.subr.mxu0 0.0
  %3113 = vmatpush1.msra.mxu0 0.0
  %3114 = vmatprep.subr.mxu0 0.0
  %3115 = vmatpush1.msra.mxu0 0.0
  %3116 = vmatprep.subr.mxu0 0.0
  %3117 = vmatpush1.msra.mxu0 0.0
  %3118 = vmatprep.subr.mxu0 0.0
  %3119 = vmatpush1.msra.mxu0 0.0
  %3120 = vmatprep.subr.mxu0 0.0
  %3121 = vmatpush1.msra.mxu0 0.0
  %3122 = vmatprep.subr.mxu0 0.0
  %3123 = vmatpush1.msra.mxu0 0.0
  %3124 = vmatprep.subr.mxu0 0.0
  %3125 = vmatpush1.msra.mxu0 0.0
  %3126 = vmatprep.subr.mxu0 0.0
  %3127 = vmatpush1.msra.mxu0 0.0
  %3128 = vmatprep.subr.mxu0 0.0
  %3129 = vmatpush1.msra.mxu0 0.0
  %3130 = vmatprep.subr.mxu0 0.0
  %3131 = vmatpush1.msra.mxu0 0.0
  %3132 = vmatprep.subr.mxu0 0.0
  %3133 = vmatpush1.msra.mxu0 0.0
  %3134 = vmatprep.subr.mxu0 0.0
  %3135 = vmatpush1.msra.mxu0 0.0
  %3136 = vmatprep.subr.mxu0 0.0
  %3137 = vmatpush1.msra.mxu0 0.0
  %3138 = vmatprep.subr.mxu0 0.0
  %3139 = vmatpush1.msra.mxu0 0.0
  %3140 = vmatprep.subr.mxu0 0.0
  %3141 = vmatpush1.msra.mxu0 0.0
  %3142 = vmatprep.subr.mxu0 0.0
  %3143 = vmatpush1.msra.mxu0 0.0
  %3144 = vmatprep.subr.mxu0 0.0
  %3145 = vmatpush1.msra.mxu0 0.0
  %3146 = vmatprep.subr.mxu0 0.0
  %3147 = vmatpush1.msra.mxu0 0.0
  %3148 = vmatprep.subr.mxu0 0.0
  %3149 = vmatpush1.msra.mxu0 0.0
  %3150 = vmatprep.subr.mxu0 0.0
  %3151 = vmatpush1.msra.mxu0 0.0
  %3152 = vmatprep.subr.mxu0 0.0
  %3153 = vmatpush1.msra.mxu0 0.0
  %3154 = vmatprep.subr.mxu0 0.0
  %3155 = vmatpush1.msra.mxu0 0.0
  %3156 = vmatprep.subr.mxu0 0.0
  %3157 = vmatpush1.msra.mxu0 0.0
  %3158 = vmatprep.subr.mxu0 0.0
  %3159 = vmatpush1.msra.mxu0 0.0
  %3160 = vmatprep.subr.mxu0 0.0
  %3161 = vmatpush1.msra.mxu0 0.0
  %3162 = vmatprep.subr.mxu0 0.0
  %3163 = vmatpush1.msra.mxu0 0.0
  %3164 = vmatprep.subr.mxu0 0.0
  %3165 = vmatpush1.msra.mxu0 0.0
  %3166 = vmatprep.subr.mxu0 0.0
  %3167 = vmatpush1.msra.mxu0 0.0
  %3168 = vmatprep.mubr.f32.mxu0 0.0
  %3169 = vmatmul.mubr.f32.gmra.mrb[0].mxu0 %v3102
  %v3170 = vpop.f32.mrb[0].mxu0
  %v3171 = vadd.f32 0.0, %v3170
  %v3172 = vpop.f32.mrb[0].mxu0
  %v3173 = vadd.f32 0.0, %v3172
  %3174 = vdwg.mxu0
  %3175 = vmatprep.subr.mxu0 %v3092
  %3176 = vmatpush1.msra.mxu0 %v3091
  %3177 = vmatprep.subr.mxu0 0.0
  %3178 = vmatpush1.msra.mxu0 0.0
  %3179 = vmatprep.subr.mxu0 0.0
  %3180 = vmatpush1.msra.mxu0 0.0
  %3181 = vmatprep.subr.mxu0 0.0
  %3182 = vmatpush1.msra.mxu0 0.0
  %3183 = vmatprep.subr.mxu0 0.0
  %3184 = vmatpush1.msra.mxu0 0.0
  %3185 = vmatprep.subr.mxu0 0.0
  %3186 = vmatpush1.msra.mxu0 0.0
  %3187 = vmatprep.subr.mxu0 0.0
  %3188 = vmatpush1.msra.mxu0 0.0
  %3189 = vmatprep.subr.mxu0 0.0
  %3190 = vmatpush1.msra.mxu0 0.0
  %3191 = vmatprep.subr.mxu0 0.0
  %3192 = vmatpush1.msra.mxu0 0.0
  %3193 = vmatprep.subr.mxu0 0.0
  %3194 = vmatpush1.msra.mxu0 0.0
  %3195 = vmatprep.subr.mxu0 0.0
  %3196 = vmatpush1.msra.mxu0 0.0
  %3197 = vmatprep.subr.mxu0 0.0
  %3198 = vmatpush1.msra.mxu0 0.0
  %3199 = vmatprep.subr.mxu0 0.0
  %3200 = vmatpush1.msra.mxu0 0.0
  %3201 = vmatprep.subr.mxu0 0.0
  %3202 = vmatpush1.msra.mxu0 0.0
  %3203 = vmatprep.subr.mxu0 0.0
  %3204 = vmatpush1.msra.mxu0 0.0
  %3205 = vmatprep.subr.mxu0 0.0
  %3206 = vmatpush1.msra.mxu0 0.0
  %3207 = vmatprep.subr.mxu0 0.0
  %3208 = vmatpush1.msra.mxu0 0.0
  %3209 = vmatprep.subr.mxu0 0.0
  %3210 = vmatpush1.msra.mxu0 0.0
  %3211 = vmatprep.subr.mxu0 0.0
  %3212 = vmatpush1.msra.mxu0 0.0
  %3213 = vmatprep.subr.mxu0 0.0
  %3214 = vmatpush1.msra.mxu0 0.0
  %3215 = vmatprep.subr.mxu0 0.0
  %3216 = vmatpush1.msra.mxu0 0.0
  %3217 = vmatprep.subr.mxu0 0.0
  %3218 = vmatpush1.msra.mxu0 0.0
  %3219 = vmatprep.subr.mxu0 0.0
  %3220 = vmatpush1.msra.mxu0 0.0
  %3221 = vmatprep.subr.mxu0 0.0
  %3222 = vmatpush1.msra.mxu0 0.0
  %3223 = vmatprep.subr.mxu0 0.0
  %3224 = vmatpush1.msra.mxu0 0.0
  %3225 = vmatprep.subr.mxu0 0.0
  %3226 = vmatpush1.msra.mxu0 0.0
  %3227 = vmatprep.subr.mxu0 0.0
  %3228 = vmatpush1.msra.mxu0 0.0
  %3229 = vmatprep.subr.mxu0 0.0
  %3230 = vmatpush1.msra.mxu0 0.0
  %3231 = vmatprep.subr.mxu0 0.0
  %3232 = vmatpush1.msra.mxu0 0.0
  %3233 = vmatprep.subr.mxu0 0.0
  %3234 = vmatpush1.msra.mxu0 0.0
  %3235 = vmatprep.subr.mxu0 0.0
  %3236 = vmatpush1.msra.mxu0 0.0
  %3237 = vmatprep.subr.mxu0 0.0
  %3238 = vmatpush1.msra.mxu0 0.0
  %3239 = vmatprep.mubr.f32.mxu0 0.0
  %3240 = vmatmul.mubr.f32.gmra.mrb[0].mxu0 %v3102
  %v3241 = vpop.f32.mrb[0].mxu0
  %v3242 = vadd.f32 0.0, %v3241
  %v3243 = vpop.f32.mrb[0].mxu0
  %v3244 = vadd.f32 0.0, %v3243
  %3245 = vdwg.mxu0
  %3246 = vmatprep.subr.mxu0 %v3094
  %3247 = vmatpush1.msra.mxu0 %v3093
  %3248 = vmatprep.subr.mxu0 0.0
  %3249 = vmatpush1.msra.mxu0 0.0
  %3250 = vmatprep.subr.mxu0 0.0
  %3251 = vmatpush1.msra.mxu0 0.0
  %3252 = vmatprep.subr.mxu0 0.0
  %3253 = vmatpush1.msra.mxu0 0.0
  %3254 = vmatprep.subr.mxu0 0.0
  %3255 = vmatpush1.msra.mxu0 0.0
  %3256 = vmatprep.subr.mxu0 0.0
  %3257 = vmatpush1.msra.mxu0 0.0
  %3258 = vmatprep.subr.mxu0 0.0
  %3259 = vmatpush1.msra.mxu0 0.0
  %3260 = vmatprep.subr.mxu0 0.0
  %3261 = vmatpush1.msra.mxu0 0.0
  %3262 = vmatprep.subr.mxu0 0.0
  %3263 = vmatpush1.msra.mxu0 0.0
  %3264 = vmatprep.subr.mxu0 0.0
  %3265 = vmatpush1.msra.mxu0 0.0
  %3266 = vmatprep.subr.mxu0 0.0
  %3267 = vmatpush1.msra.mxu0 0.0
  %3268 = vmatprep.subr.mxu0 0.0
  %3269 = vmatpush1.msra.mxu0 0.0
  %3270 = vmatprep.subr.mxu0 0.0
  %3271 = vmatpush1.msra.mxu0 0.0
  %3272 = vmatprep.subr.mxu0 0.0
  %3273 = vmatpush1.msra.mxu0 0.0
  %3274 = vmatprep.subr.mxu0 0.0
  %3275 = vmatpush1.msra.mxu0 0.0
  %3276 = vmatprep.subr.mxu0 0.0
  %3277 = vmatpush1.msra.mxu0 0.0
  %3278 = vmatprep.subr.mxu0 0.0
  %3279 = vmatpush1.msra.mxu0 0.0
  %3280 = vmatprep.subr.mxu0 0.0
  %3281 = vmatpush1.msra.mxu0 0.0
  %3282 = vmatprep.subr.mxu0 0.0
  %3283 = vmatpush1.msra.mxu0 0.0
  %3284 = vmatprep.subr.mxu0 0.0
  %3285 = vmatpush1.msra.mxu0 0.0
  %3286 = vmatprep.subr.mxu0 0.0
  %3287 = vmatpush1.msra.mxu0 0.0
  %3288 = vmatprep.subr.mxu0 0.0
  %3289 = vmatpush1.msra.mxu0 0.0
  %3290 = vmatprep.subr.mxu0 0.0
  %3291 = vmatpush1.msra.mxu0 0.0
  %3292 = vmatprep.subr.mxu0 0.0
  %3293 = vmatpush1.msra.mxu0 0.0
  %3294 = vmatprep.subr.mxu0 0.0
  %3295 = vmatpush1.msra.mxu0 0.0
  %3296 = vmatprep.subr.mxu0 0.0
  %3297 = vmatpush1.msra.mxu0 0.0
  %3298 = vmatprep.subr.mxu0 0.0
  %3299 = vmatpush1.msra.mxu0 0.0
  %3300 = vmatprep.subr.mxu0 0.0
  %3301 = vmatpush1.msra.mxu0 0.0
  %3302 = vmatprep.subr.mxu0 0.0
  %3303 = vmatpush1.msra.mxu0 0.0
  %3304 = vmatprep.subr.mxu0 0.0
  %3305 = vmatpush1.msra.mxu0 0.0
  %3306 = vmatprep.subr.mxu0 0.0
  %3307 = vmatpush1.msra.mxu0 0.0
  %3308 = vmatprep.subr.mxu0 0.0
  %3309 = vmatpush1.msra.mxu0 0.0
  %3310 = vmatprep.mubr.f32.mxu0 0.0
  %3311 = vmatmul.mubr.f32.gmra.mrb[0].mxu0 %v3102
  %v3312 = vpop.f32.mrb[0].mxu0
  %v3313 = vadd.f32 0.0, %v3312
  %v3314 = vpop.f32.mrb[0].mxu0
  %v3315 = vadd.f32 0.0, %v3314
  %3316 = vdwg.mxu0
  %v3317 = vadd.f32 %v3066, %v3171
  %v3318 = vadd.f32 %v3067, %v3173
  %v3319 = vadd.f32 %v3068, %v3242
  %v3320 = vadd.f32 %v3069, %v3244
  %v3321 = vadd.f32 %v3070, %v3313
  %v3322 = vadd.f32 %v3071, %v3315
  %s3323 = scalar_lea.vmem %s2, 32
  %v3324 = vld [vmem:[%s3323] sm:$0xff]
  %v3326 = vsel %vm61, %v3324, 0
  %3328 = vmatprep.subr.mxu0 %v2320
  %3329 = vmatpush1.msra.mxu0 %v2319
  %3330 = vmatprep.subr.mxu0 0.0
  %3331 = vmatpush1.msra.mxu0 0.0
  %3332 = vmatprep.subr.mxu0 0.0
  %3333 = vmatpush1.msra.mxu0 0.0
  %3334 = vmatprep.subr.mxu0 0.0
  %3335 = vmatpush1.msra.mxu0 0.0
  %3336 = vmatprep.subr.mxu0 0.0
  %3337 = vmatpush1.msra.mxu0 0.0
  %3338 = vmatprep.subr.mxu0 0.0
  %3339 = vmatpush1.msra.mxu0 0.0
  %3340 = vmatprep.subr.mxu0 0.0
  %3341 = vmatpush1.msra.mxu0 0.0
  %3342 = vmatprep.subr.mxu0 0.0
  %3343 = vmatpush1.msra.mxu0 0.0
  %3344 = vmatprep.subr.mxu0 0.0
  %3345 = vmatpush1.msra.mxu0 0.0
  %3346 = vmatprep.subr.mxu0 0.0
  %3347 = vmatpush1.msra.mxu0 0.0
  %3348 = vmatprep.subr.mxu0 0.0
  %3349 = vmatpush1.msra.mxu0 0.0
  %3350 = vmatprep.subr.mxu0 0.0
  %3351 = vmatpush1.msra.mxu0 0.0
  %3352 = vmatprep.subr.mxu0 0.0
  %3353 = vmatpush1.msra.mxu0 0.0
  %3354 = vmatprep.subr.mxu0 0.0
  %3355 = vmatpush1.msra.mxu0 0.0
  %3356 = vmatprep.subr.mxu0 0.0
  %3357 = vmatpush1.msra.mxu0 0.0
  %3358 = vmatprep.subr.mxu0 0.0
  %3359 = vmatpush1.msra.mxu0 0.0
  %3360 = vmatprep.subr.mxu0 0.0
  %3361 = vmatpush1.msra.mxu0 0.0
  %3362 = vmatprep.subr.mxu0 0.0
  %3363 = vmatpush1.msra.mxu0 0.0
  %3364 = vmatprep.subr.mxu0 0.0
  %3365 = vmatpush1.msra.mxu0 0.0
  %3366 = vmatprep.subr.mxu0 0.0
  %3367 = vmatpush1.msra.mxu0 0.0
  %3368 = vmatprep.subr.mxu0 0.0
  %3369 = vmatpush1.msra.mxu0 0.0
  %3370 = vmatprep.subr.mxu0 0.0
  %3371 = vmatpush1.msra.mxu0 0.0
  %3372 = vmatprep.subr.mxu0 0.0
  %3373 = vmatpush1.msra.mxu0 0.0
  %3374 = vmatprep.subr.mxu0 0.0
  %3375 = vmatpush1.msra.mxu0 0.0
  %3376 = vmatprep.subr.mxu0 0.0
  %3377 = vmatpush1.msra.mxu0 0.0
  %3378 = vmatprep.subr.mxu0 0.0
  %3379 = vmatpush1.msra.mxu0 0.0
  %3380 = vmatprep.subr.mxu0 0.0
  %3381 = vmatpush1.msra.mxu0 0.0
  %3382 = vmatprep.subr.mxu0 0.0
  %3383 = vmatpush1.msra.mxu0 0.0
  %3384 = vmatprep.subr.mxu0 0.0
  %3385 = vmatpush1.msra.mxu0 0.0
  %3386 = vmatprep.subr.mxu0 0.0
  %3387 = vmatpush1.msra.mxu0 0.0
  %3388 = vmatprep.subr.mxu0 0.0
  %3389 = vmatpush1.msra.mxu0 0.0
  %3390 = vmatprep.subr.mxu0 0.0
  %3391 = vmatpush1.msra.mxu0 0.0
  %3392 = vmatprep.mubr.f32.mxu0 0.0
  %3393 = vmatmul.mubr.f32.gmra.mrb[0].mxu0 %v3326
  %v3394 = vpop.f32.mrb[0].mxu0
  %v3395 = vadd.f32 0.0, %v3394
  %v3396 = vpop.f32.mrb[0].mxu0
  %v3397 = vadd.f32 0.0, %v3396
  %3398 = vdwg.mxu0
  %3399 = vmatprep.subr.mxu0 %v2322
  %3400 = vmatpush1.msra.mxu0 %v2321
  %3401 = vmatprep.subr.mxu0 0.0
  %3402 = vmatpush1.msra.mxu0 0.0
  %3403 = vmatprep.subr.mxu0 0.0
  %3404 = vmatpush1.msra.mxu0 0.0
  %3405 = vmatprep.subr.mxu0 0.0
  %3406 = vmatpush1.msra.mxu0 0.0
  %3407 = vmatprep.subr.mxu0 0.0
  %3408 = vmatpush1.msra.mxu0 0.0
  %3409 = vmatprep.subr.mxu0 0.0
  %3410 = vmatpush1.msra.mxu0 0.0
  %3411 = vmatprep.subr.mxu0 0.0
  %3412 = vmatpush1.msra.mxu0 0.0
  %3413 = vmatprep.subr.mxu0 0.0
  %3414 = vmatpush1.msra.mxu0 0.0
  %3415 = vmatprep.subr.mxu0 0.0
  %3416 = vmatpush1.msra.mxu0 0.0
  %3417 = vmatprep.subr.mxu0 0.0
  %3418 = vmatpush1.msra.mxu0 0.0
  %3419 = vmatprep.subr.mxu0 0.0
  %3420 = vmatpush1.msra.mxu0 0.0
  %3421 = vmatprep.subr.mxu0 0.0
  %3422 = vmatpush1.msra.mxu0 0.0
  %3423 = vmatprep.subr.mxu0 0.0
  %3424 = vmatpush1.msra.mxu0 0.0
  %3425 = vmatprep.subr.mxu0 0.0
  %3426 = vmatpush1.msra.mxu0 0.0
  %3427 = vmatprep.subr.mxu0 0.0
  %3428 = vmatpush1.msra.mxu0 0.0
  %3429 = vmatprep.subr.mxu0 0.0
  %3430 = vmatpush1.msra.mxu0 0.0
  %3431 = vmatprep.subr.mxu0 0.0
  %3432 = vmatpush1.msra.mxu0 0.0
  %3433 = vmatprep.subr.mxu0 0.0
  %3434 = vmatpush1.msra.mxu0 0.0
  %3435 = vmatprep.subr.mxu0 0.0
  %3436 = vmatpush1.msra.mxu0 0.0
  %3437 = vmatprep.subr.mxu0 0.0
  %3438 = vmatpush1.msra.mxu0 0.0
  %3439 = vmatprep.subr.mxu0 0.0
  %3440 = vmatpush1.msra.mxu0 0.0
  %3441 = vmatprep.subr.mxu0 0.0
  %3442 = vmatpush1.msra.mxu0 0.0
  %3443 = vmatprep.subr.mxu0 0.0
  %3444 = vmatpush1.msra.mxu0 0.0
  %3445 = vmatprep.subr.mxu0 0.0
  %3446 = vmatpush1.msra.mxu0 0.0
  %3447 = vmatprep.subr.mxu0 0.0
  %3448 = vmatpush1.msra.mxu0 0.0
  %3449 = vmatprep.subr.mxu0 0.0
  %3450 = vmatpush1.msra.mxu0 0.0
  %3451 = vmatprep.subr.mxu0 0.0
  %3452 = vmatpush1.msra.mxu0 0.0
  %3453 = vmatprep.subr.mxu0 0.0
  %3454 = vmatpush1.msra.mxu0 0.0
  %3455 = vmatprep.subr.mxu0 0.0
  %3456 = vmatpush1.msra.mxu0 0.0
  %3457 = vmatprep.subr.mxu0 0.0
  %3458 = vmatpush1.msra.mxu0 0.0
  %3459 = vmatprep.subr.mxu0 0.0
  %3460 = vmatpush1.msra.mxu0 0.0
  %3461 = vmatprep.subr.mxu0 0.0
  %3462 = vmatpush1.msra.mxu0 0.0
  %3463 = vmatprep.mubr.f32.mxu0 0.0
  %3464 = vmatmul.mubr.f32.gmra.mrb[0].mxu0 %v3326
  %v3465 = vpop.f32.mrb[0].mxu0
  %v3466 = vadd.f32 0.0, %v3465
  %v3467 = vpop.f32.mrb[0].mxu0
  %v3468 = vadd.f32 0.0, %v3467
  %3469 = vdwg.mxu0
  %3470 = vmatprep.subr.mxu0 %v2324
  %3471 = vmatpush1.msra.mxu0 %v2323
  %3472 = vmatprep.subr.mxu0 0.0
  %3473 = vmatpush1.msra.mxu0 0.0
  %3474 = vmatprep.subr.mxu0 0.0
  %3475 = vmatpush1.msra.mxu0 0.0
  %3476 = vmatprep.subr.mxu0 0.0
  %3477 = vmatpush1.msra.mxu0 0.0
  %3478 = vmatprep.subr.mxu0 0.0
  %3479 = vmatpush1.msra.mxu0 0.0
  %3480 = vmatprep.subr.mxu0 0.0
  %3481 = vmatpush1.msra.mxu0 0.0
  %3482 = vmatprep.subr.mxu0 0.0
  %3483 = vmatpush1.msra.mxu0 0.0
  %3484 = vmatprep.subr.mxu0 0.0
  %3485 = vmatpush1.msra.mxu0 0.0
  %3486 = vmatprep.subr.mxu0 0.0
  %3487 = vmatpush1.msra.mxu0 0.0
  %3488 = vmatprep.subr.mxu0 0.0
  %3489 = vmatpush1.msra.mxu0 0.0
  %3490 = vmatprep.subr.mxu0 0.0
  %3491 = vmatpush1.msra.mxu0 0.0
  %3492 = vmatprep.subr.mxu0 0.0
  %3493 = vmatpush1.msra.mxu0 0.0
  %3494 = vmatprep.subr.mxu0 0.0
  %3495 = vmatpush1.msra.mxu0 0.0
  %3496 = vmatprep.subr.mxu0 0.0
  %3497 = vmatpush1.msra.mxu0 0.0
  %3498 = vmatprep.subr.mxu0 0.0
  %3499 = vmatpush1.msra.mxu0 0.0
  %3500 = vmatprep.subr.mxu0 0.0
  %3501 = vmatpush1.msra.mxu0 0.0
  %3502 = vmatprep.subr.mxu0 0.0
  %3503 = vmatpush1.msra.mxu0 0.0
  %3504 = vmatprep.subr.mxu0 0.0
  %3505 = vmatpush1.msra.mxu0 0.0
  %3506 = vmatprep.subr.mxu0 0.0
  %3507 = vmatpush1.msra.mxu0 0.0
  %3508 = vmatprep.subr.mxu0 0.0
  %3509 = vmatpush1.msra.mxu0 0.0
  %3510 = vmatprep.subr.mxu0 0.0
  %3511 = vmatpush1.msra.mxu0 0.0
  %3512 = vmatprep.subr.mxu0 0.0
  %3513 = vmatpush1.msra.mxu0 0.0
  %3514 = vmatprep.subr.mxu0 0.0
  %3515 = vmatpush1.msra.mxu0 0.0
  %3516 = vmatprep.subr.mxu0 0.0
  %3517 = vmatpush1.msra.mxu0 0.0
  %3518 = vmatprep.subr.mxu0 0.0
  %3519 = vmatpush1.msra.mxu0 0.0
  %3520 = vmatprep.subr.mxu0 0.0
  %3521 = vmatpush1.msra.mxu0 0.0
  %3522 = vmatprep.subr.mxu0 0.0
  %3523 = vmatpush1.msra.mxu0 0.0
  %3524 = vmatprep.subr.mxu0 0.0
  %3525 = vmatpush1.msra.mxu0 0.0
  %3526 = vmatprep.subr.mxu0 0.0
  %3527 = vmatpush1.msra.mxu0 0.0
  %3528 = vmatprep.subr.mxu0 0.0
  %3529 = vmatpush1.msra.mxu0 0.0
  %3530 = vmatprep.subr.mxu0 0.0
  %3531 = vmatpush1.msra.mxu0 0.0
  %3532 = vmatprep.subr.mxu0 0.0
  %3533 = vmatpush1.msra.mxu0 0.0
  %3534 = vmatprep.mubr.f32.mxu0 0.0
  %3535 = vmatmul.mubr.f32.gmra.mrb[0].mxu0 %v3326
  %v3536 = vpop.f32.mrb[0].mxu0
  %v3537 = vadd.f32 0.0, %v3536
  %v3538 = vpop.f32.mrb[0].mxu0
  %v3539 = vadd.f32 0.0, %v3538
  %3540 = vdwg.mxu0
  %v3541 = vadd.f32 %v3317, %v3395
  %v3542 = vadd.f32 %v3318, %v3397
  %v3543 = vadd.f32 %v3319, %v3466
  %v3544 = vadd.f32 %v3320, %v3468
  %v3545 = vadd.f32 %v3321, %v3537
  %v3546 = vadd.f32 %v3322, %v3539
  %s3547 = scalar_lea.vmem %s2, 40
  %v3548 = vld [vmem:[%s3547] sm:$0xff]
  %3549 = vrot.lane.b32.xlu0 %v2319, 127
  %v3550 = vpop.permute.xlu0 %3549
  %3551 = vrot.lane.b32.xlu0 %v2320, 127
  %v3552 = vpop.permute.xlu0 %3551
  %3553 = vrot.lane.b32.xlu0 %v2321, 127
  %v3554 = vpop.permute.xlu0 %3553
  %3555 = vrot.lane.b32.xlu0 %v2322, 127
  %v3556 = vpop.permute.xlu0 %3555
  %3557 = vrot.lane.b32.xlu0 %v2323, 127
  %v3558 = vpop.permute.xlu0 %3557
  %3559 = vrot.lane.b32.xlu0 %v2324, 127
  %v3560 = vpop.permute.xlu0 %3559
  %v3561 = vsel %vm50, %v3550, %v3552
  %v3562 = vsel %vm50, %v3552, %v3554
  %v3563 = vsel %vm50, %v3554, %v3556
  %v3564 = vsel %vm50, %v3556, %v3558
  %v3565 = vsel %vm50, %v3558, %v3560
  %v3573 = vsel %vm61, %v3548, 0
  %3575 = vmatprep.subr.mxu0 %v3562
  %3576 = vmatpush1.msra.mxu0 %v3561
  %3577 = vmatprep.subr.mxu0 0.0
  %3578 = vmatpush1.msra.mxu0 0.0
  %3579 = vmatprep.subr.mxu0 0.0
  %3580 = vmatpush1.msra.mxu0 0.0
  %3581 = vmatprep.subr.mxu0 0.0
  %3582 = vmatpush1.msra.mxu0 0.0
  %3583 = vmatprep.subr.mxu0 0.0
  %3584 = vmatpush1.msra.mxu0 0.0
  %3585 = vmatprep.subr.mxu0 0.0
  %3586 = vmatpush1.msra.mxu0 0.0
  %3587 = vmatprep.subr.mxu0 0.0
  %3588 = vmatpush1.msra.mxu0 0.0
  %3589 = vmatprep.subr.mxu0 0.0
  %3590 = vmatpush1.msra.mxu0 0.0
  %3591 = vmatprep.subr.mxu0 0.0
  %3592 = vmatpush1.msra.mxu0 0.0
  %3593 = vmatprep.subr.mxu0 0.0
  %3594 = vmatpush1.msra.mxu0 0.0
  %3595 = vmatprep.subr.mxu0 0.0
  %3596 = vmatpush1.msra.mxu0 0.0
  %3597 = vmatprep.subr.mxu0 0.0
  %3598 = vmatpush1.msra.mxu0 0.0
  %3599 = vmatprep.subr.mxu0 0.0
  %3600 = vmatpush1.msra.mxu0 0.0
  %3601 = vmatprep.subr.mxu0 0.0
  %3602 = vmatpush1.msra.mxu0 0.0
  %3603 = vmatprep.subr.mxu0 0.0
  %3604 = vmatpush1.msra.mxu0 0.0
  %3605 = vmatprep.subr.mxu0 0.0
  %3606 = vmatpush1.msra.mxu0 0.0
  %3607 = vmatprep.subr.mxu0 0.0
  %3608 = vmatpush1.msra.mxu0 0.0
  %3609 = vmatprep.subr.mxu0 0.0
  %3610 = vmatpush1.msra.mxu0 0.0
  %3611 = vmatprep.subr.mxu0 0.0
  %3612 = vmatpush1.msra.mxu0 0.0
  %3613 = vmatprep.subr.mxu0 0.0
  %3614 = vmatpush1.msra.mxu0 0.0
  %3615 = vmatprep.subr.mxu0 0.0
  %3616 = vmatpush1.msra.mxu0 0.0
  %3617 = vmatprep.subr.mxu0 0.0
  %3618 = vmatpush1.msra.mxu0 0.0
  %3619 = vmatprep.subr.mxu0 0.0
  %3620 = vmatpush1.msra.mxu0 0.0
  %3621 = vmatprep.subr.mxu0 0.0
  %3622 = vmatpush1.msra.mxu0 0.0
  %3623 = vmatprep.subr.mxu0 0.0
  %3624 = vmatpush1.msra.mxu0 0.0
  %3625 = vmatprep.subr.mxu0 0.0
  %3626 = vmatpush1.msra.mxu0 0.0
  %3627 = vmatprep.subr.mxu0 0.0
  %3628 = vmatpush1.msra.mxu0 0.0
  %3629 = vmatprep.subr.mxu0 0.0
  %3630 = vmatpush1.msra.mxu0 0.0
  %3631 = vmatprep.subr.mxu0 0.0
  %3632 = vmatpush1.msra.mxu0 0.0
  %3633 = vmatprep.subr.mxu0 0.0
  %3634 = vmatpush1.msra.mxu0 0.0
  %3635 = vmatprep.subr.mxu0 0.0
  %3636 = vmatpush1.msra.mxu0 0.0
  %3637 = vmatprep.subr.mxu0 0.0
  %3638 = vmatpush1.msra.mxu0 0.0
  %3639 = vmatprep.mubr.f32.mxu0 0.0
  %3640 = vmatmul.mubr.f32.gmra.mrb[0].mxu0 %v3573
  %v3641 = vpop.f32.mrb[0].mxu0
  %v3642 = vadd.f32 0.0, %v3641
  %v3643 = vpop.f32.mrb[0].mxu0
  %v3644 = vadd.f32 0.0, %v3643
  %3645 = vdwg.mxu0
  %3646 = vmatprep.subr.mxu0 %v3564
  %3647 = vmatpush1.msra.mxu0 %v3563
  %3648 = vmatprep.subr.mxu0 0.0
  %3649 = vmatpush1.msra.mxu0 0.0
  %3650 = vmatprep.subr.mxu0 0.0
  %3651 = vmatpush1.msra.mxu0 0.0
  %3652 = vmatprep.subr.mxu0 0.0
  %3653 = vmatpush1.msra.mxu0 0.0
  %3654 = vmatprep.subr.mxu0 0.0
  %3655 = vmatpush1.msra.mxu0 0.0
  %3656 = vmatprep.subr.mxu0 0.0
  %3657 = vmatpush1.msra.mxu0 0.0
  %3658 = vmatprep.subr.mxu0 0.0
  %3659 = vmatpush1.msra.mxu0 0.0
  %3660 = vmatprep.subr.mxu0 0.0
  %3661 = vmatpush1.msra.mxu0 0.0
  %3662 = vmatprep.subr.mxu0 0.0
  %3663 = vmatpush1.msra.mxu0 0.0
  %3664 = vmatprep.subr.mxu0 0.0
  %3665 = vmatpush1.msra.mxu0 0.0
  %3666 = vmatprep.subr.mxu0 0.0
  %3667 = vmatpush1.msra.mxu0 0.0
  %3668 = vmatprep.subr.mxu0 0.0
  %3669 = vmatpush1.msra.mxu0 0.0
  %3670 = vmatprep.subr.mxu0 0.0
  %3671 = vmatpush1.msra.mxu0 0.0
  %3672 = vmatprep.subr.mxu0 0.0
  %3673 = vmatpush1.msra.mxu0 0.0
  %3674 = vmatprep.subr.mxu0 0.0
  %3675 = vmatpush1.msra.mxu0 0.0
  %3676 = vmatprep.subr.mxu0 0.0
  %3677 = vmatpush1.msra.mxu0 0.0
  %3678 = vmatprep.subr.mxu0 0.0
  %3679 = vmatpush1.msra.mxu0 0.0
  %3680 = vmatprep.subr.mxu0 0.0
  %3681 = vmatpush1.msra.mxu0 0.0
  %3682 = vmatprep.subr.mxu0 0.0
  %3683 = vmatpush1.msra.mxu0 0.0
  %3684 = vmatprep.subr.mxu0 0.0
  %3685 = vmatpush1.msra.mxu0 0.0
  %3686 = vmatprep.subr.mxu0 0.0
  %3687 = vmatpush1.msra.mxu0 0.0
  %3688 = vmatprep.subr.mxu0 0.0
  %3689 = vmatpush1.msra.mxu0 0.0
  %3690 = vmatprep.subr.mxu0 0.0
  %3691 = vmatpush1.msra.mxu0 0.0
  %3692 = vmatprep.subr.mxu0 0.0
  %3693 = vmatpush1.msra.mxu0 0.0
  %3694 = vmatprep.subr.mxu0 0.0
  %3695 = vmatpush1.msra.mxu0 0.0
  %3696 = vmatprep.subr.mxu0 0.0
  %3697 = vmatpush1.msra.mxu0 0.0
  %3698 = vmatprep.subr.mxu0 0.0
  %3699 = vmatpush1.msra.mxu0 0.0
  %3700 = vmatprep.subr.mxu0 0.0
  %3701 = vmatpush1.msra.mxu0 0.0
  %3702 = vmatprep.subr.mxu0 0.0
  %3703 = vmatpush1.msra.mxu0 0.0
  %3704 = vmatprep.subr.mxu0 0.0
  %3705 = vmatpush1.msra.mxu0 0.0
  %3706 = vmatprep.subr.mxu0 0.0
  %3707 = vmatpush1.msra.mxu0 0.0
  %3708 = vmatprep.subr.mxu0 0.0
  %3709 = vmatpush1.msra.mxu0 0.0
  %3710 = vmatprep.mubr.f32.mxu0 0.0
  %3711 = vmatmul.mubr.f32.gmra.mrb[0].mxu0 %v3573
  %v3712 = vpop.f32.mrb[0].mxu0
  %v3713 = vadd.f32 0.0, %v3712
  %v3714 = vpop.f32.mrb[0].mxu0
  %v3715 = vadd.f32 0.0, %v3714
  %3716 = vdwg.mxu0
  %3717 = vmatprep.subr.mxu0 %v3560
  %3718 = vmatpush1.msra.mxu0 %v3565
  %3719 = vmatprep.subr.mxu0 0.0
  %3720 = vmatpush1.msra.mxu0 0.0
  %3721 = vmatprep.subr.mxu0 0.0
  %3722 = vmatpush1.msra.mxu0 0.0
  %3723 = vmatprep.subr.mxu0 0.0
  %3724 = vmatpush1.msra.mxu0 0.0
  %3725 = vmatprep.subr.mxu0 0.0
  %3726 = vmatpush1.msra.mxu0 0.0
  %3727 = vmatprep.subr.mxu0 0.0
  %3728 = vmatpush1.msra.mxu0 0.0
  %3729 = vmatprep.subr.mxu0 0.0
  %3730 = vmatpush1.msra.mxu0 0.0
  %3731 = vmatprep.subr.mxu0 0.0
  %3732 = vmatpush1.msra.mxu0 0.0
  %3733 = vmatprep.subr.mxu0 0.0
  %3734 = vmatpush1.msra.mxu0 0.0
  %3735 = vmatprep.subr.mxu0 0.0
  %3736 = vmatpush1.msra.mxu0 0.0
  %3737 = vmatprep.subr.mxu0 0.0
  %3738 = vmatpush1.msra.mxu0 0.0
  %3739 = vmatprep.subr.mxu0 0.0
  %3740 = vmatpush1.msra.mxu0 0.0
  %3741 = vmatprep.subr.mxu0 0.0
  %3742 = vmatpush1.msra.mxu0 0.0
  %3743 = vmatprep.subr.mxu0 0.0
  %3744 = vmatpush1.msra.mxu0 0.0
  %3745 = vmatprep.subr.mxu0 0.0
  %3746 = vmatpush1.msra.mxu0 0.0
  %3747 = vmatprep.subr.mxu0 0.0
  %3748 = vmatpush1.msra.mxu0 0.0
  %3749 = vmatprep.subr.mxu0 0.0
  %3750 = vmatpush1.msra.mxu0 0.0
  %3751 = vmatprep.subr.mxu0 0.0
  %3752 = vmatpush1.msra.mxu0 0.0
  %3753 = vmatprep.subr.mxu0 0.0
  %3754 = vmatpush1.msra.mxu0 0.0
  %3755 = vmatprep.subr.mxu0 0.0
  %3756 = vmatpush1.msra.mxu0 0.0
  %3757 = vmatprep.subr.mxu0 0.0
  %3758 = vmatpush1.msra.mxu0 0.0
  %3759 = vmatprep.subr.mxu0 0.0
  %3760 = vmatpush1.msra.mxu0 0.0
  %3761 = vmatprep.subr.mxu0 0.0
  %3762 = vmatpush1.msra.mxu0 0.0
  %3763 = vmatprep.subr.mxu0 0.0
  %3764 = vmatpush1.msra.mxu0 0.0
  %3765 = vmatprep.subr.mxu0 0.0
  %3766 = vmatpush1.msra.mxu0 0.0
  %3767 = vmatprep.subr.mxu0 0.0
  %3768 = vmatpush1.msra.mxu0 0.0
  %3769 = vmatprep.subr.mxu0 0.0
  %3770 = vmatpush1.msra.mxu0 0.0
  %3771 = vmatprep.subr.mxu0 0.0
  %3772 = vmatpush1.msra.mxu0 0.0
  %3773 = vmatprep.subr.mxu0 0.0
  %3774 = vmatpush1.msra.mxu0 0.0
  %3775 = vmatprep.subr.mxu0 0.0
  %3776 = vmatpush1.msra.mxu0 0.0
  %3777 = vmatprep.subr.mxu0 0.0
  %3778 = vmatpush1.msra.mxu0 0.0
  %3779 = vmatprep.subr.mxu0 0.0
  %3780 = vmatpush1.msra.mxu0 0.0
  %3781 = vmatprep.mubr.f32.mxu0 0.0
  %3782 = vmatmul.mubr.f32.gmra.mrb[0].mxu0 %v3573
  %v3783 = vpop.f32.mrb[0].mxu0
  %v3784 = vadd.f32 0.0, %v3783
  %v3785 = vpop.f32.mrb[0].mxu0
  %v3786 = vadd.f32 0.0, %v3785
  %3787 = vdwg.mxu0
  %v3788 = vadd.f32 %v3541, %v3642
  %v3789 = vadd.f32 %v3542, %v3644
  %v3790 = vadd.f32 %v3543, %v3713
  %v3791 = vadd.f32 %v3544, %v3715
  %v3792 = vadd.f32 %v3545, %v3784
  %v3793 = vadd.f32 %v3546, %v3786
  %s3794 = scalar_lea.vmem %s2, 48
  %v3795 = vld [vmem:[%s3794] sm:$0xff]
  %3796 = vrot.lane.b32.xlu0 %v2319, 111
  %v3797 = vpop.permute.xlu0 %3796
  %3798 = vrot.lane.b32.xlu0 %v2320, 111
  %v3799 = vpop.permute.xlu0 %3798
  %3800 = vrot.lane.b32.xlu0 %v2321, 111
  %v3801 = vpop.permute.xlu0 %3800
  %3802 = vrot.lane.b32.xlu0 %v2322, 111
  %v3803 = vpop.permute.xlu0 %3802
  %3804 = vrot.lane.b32.xlu0 %v2323, 111
  %v3805 = vpop.permute.xlu0 %3804
  %3806 = vrot.lane.b32.xlu0 %v2324, 111
  %v3807 = vpop.permute.xlu0 %3806
  %vm3808 = vcmask 908288
  %v3809 = vsel %vm3808, %v3797, %v3799
  %v3810 = vsel %vm3808, %v3799, %v3801
  %v3811 = vsel %vm3808, %v3801, %v3803
  %v3812 = vsel %vm3808, %v3803, %v3805
  %v3813 = vsel %vm3808, %v3805, %v3807
  %v3821 = vsel %vm61, %v3795, 0
  %3823 = vmatprep.subr.mxu0 %v3810
  %3824 = vmatpush1.msra.mxu0 %v3809
  %3825 = vmatprep.subr.mxu0 0.0
  %3826 = vmatpush1.msra.mxu0 0.0
  %3827 = vmatprep.subr.mxu0 0.0
  %3828 = vmatpush1.msra.mxu0 0.0
  %3829 = vmatprep.subr.mxu0 0.0
  %3830 = vmatpush1.msra.mxu0 0.0
  %3831 = vmatprep.subr.mxu0 0.0
  %3832 = vmatpush1.msra.mxu0 0.0
  %3833 = vmatprep.subr.mxu0 0.0
  %3834 = vmatpush1.msra.mxu0 0.0
  %3835 = vmatprep.subr.mxu0 0.0
  %3836 = vmatpush1.msra.mxu0 0.0
  %3837 = vmatprep.subr.mxu0 0.0
  %3838 = vmatpush1.msra.mxu0 0.0
  %3839 = vmatprep.subr.mxu0 0.0
  %3840 = vmatpush1.msra.mxu0 0.0
  %3841 = vmatprep.subr.mxu0 0.0
  %3842 = vmatpush1.msra.mxu0 0.0
  %3843 = vmatprep.subr.mxu0 0.0
  %3844 = vmatpush1.msra.mxu0 0.0
  %3845 = vmatprep.subr.mxu0 0.0
  %3846 = vmatpush1.msra.mxu0 0.0
  %3847 = vmatprep.subr.mxu0 0.0
  %3848 = vmatpush1.msra.mxu0 0.0
  %3849 = vmatprep.subr.mxu0 0.0
  %3850 = vmatpush1.msra.mxu0 0.0
  %3851 = vmatprep.subr.mxu0 0.0
  %3852 = vmatpush1.msra.mxu0 0.0
  %3853 = vmatprep.subr.mxu0 0.0
  %3854 = vmatpush1.msra.mxu0 0.0
  %3855 = vmatprep.subr.mxu0 0.0
  %3856 = vmatpush1.msra.mxu0 0.0
  %3857 = vmatprep.subr.mxu0 0.0
  %3858 = vmatpush1.msra.mxu0 0.0
  %3859 = vmatprep.subr.mxu0 0.0
  %3860 = vmatpush1.msra.mxu0 0.0
  %3861 = vmatprep.subr.mxu0 0.0
  %3862 = vmatpush1.msra.mxu0 0.0
  %3863 = vmatprep.subr.mxu0 0.0
  %3864 = vmatpush1.msra.mxu0 0.0
  %3865 = vmatprep.subr.mxu0 0.0
  %3866 = vmatpush1.msra.mxu0 0.0
  %3867 = vmatprep.subr.mxu0 0.0
  %3868 = vmatpush1.msra.mxu0 0.0
  %3869 = vmatprep.subr.mxu0 0.0
  %3870 = vmatpush1.msra.mxu0 0.0
  %3871 = vmatprep.subr.mxu0 0.0
  %3872 = vmatpush1.msra.mxu0 0.0
  %3873 = vmatprep.subr.mxu0 0.0
  %3874 = vmatpush1.msra.mxu0 0.0
  %3875 = vmatprep.subr.mxu0 0.0
  %3876 = vmatpush1.msra.mxu0 0.0
  %3877 = vmatprep.subr.mxu0 0.0
  %3878 = vmatpush1.msra.mxu0 0.0
  %3879 = vmatprep.subr.mxu0 0.0
  %3880 = vmatpush1.msra.mxu0 0.0
  %3881 = vmatprep.subr.mxu0 0.0
  %3882 = vmatpush1.msra.mxu0 0.0
  %3883 = vmatprep.subr.mxu0 0.0
  %3884 = vmatpush1.msra.mxu0 0.0
  %3885 = vmatprep.subr.mxu0 0.0
  %3886 = vmatpush1.msra.mxu0 0.0
  %3887 = vmatprep.mubr.f32.mxu0 0.0
  %3888 = vmatmul.mubr.f32.gmra.mrb[0].mxu0 %v3821
  %v3889 = vpop.f32.mrb[0].mxu0
  %v3890 = vadd.f32 0.0, %v3889
  %v3891 = vpop.f32.mrb[0].mxu0
  %v3892 = vadd.f32 0.0, %v3891
  %3893 = vdwg.mxu0
  %3894 = vmatprep.subr.mxu0 %v3812
  %3895 = vmatpush1.msra.mxu0 %v3811
  %3896 = vmatprep.subr.mxu0 0.0
  %3897 = vmatpush1.msra.mxu0 0.0
  %3898 = vmatprep.subr.mxu0 0.0
  %3899 = vmatpush1.msra.mxu0 0.0
  %3900 = vmatprep.subr.mxu0 0.0
  %3901 = vmatpush1.msra.mxu0 0.0
  %3902 = vmatprep.subr.mxu0 0.0
  %3903 = vmatpush1.msra.mxu0 0.0
  %3904 = vmatprep.subr.mxu0 0.0
  %3905 = vmatpush1.msra.mxu0 0.0
  %3906 = vmatprep.subr.mxu0 0.0
  %3907 = vmatpush1.msra.mxu0 0.0
  %3908 = vmatprep.subr.mxu0 0.0
  %3909 = vmatpush1.msra.mxu0 0.0
  %3910 = vmatprep.subr.mxu0 0.0
  %3911 = vmatpush1.msra.mxu0 0.0
  %3912 = vmatprep.subr.mxu0 0.0
  %3913 = vmatpush1.msra.mxu0 0.0
  %3914 = vmatprep.subr.mxu0 0.0
  %3915 = vmatpush1.msra.mxu0 0.0
  %3916 = vmatprep.subr.mxu0 0.0
  %3917 = vmatpush1.msra.mxu0 0.0
  %3918 = vmatprep.subr.mxu0 0.0
  %3919 = vmatpush1.msra.mxu0 0.0
  %3920 = vmatprep.subr.mxu0 0.0
  %3921 = vmatpush1.msra.mxu0 0.0
  %3922 = vmatprep.subr.mxu0 0.0
  %3923 = vmatpush1.msra.mxu0 0.0
  %3924 = vmatprep.subr.mxu0 0.0
  %3925 = vmatpush1.msra.mxu0 0.0
  %3926 = vmatprep.subr.mxu0 0.0
  %3927 = vmatpush1.msra.mxu0 0.0
  %3928 = vmatprep.subr.mxu0 0.0
  %3929 = vmatpush1.msra.mxu0 0.0
  %3930 = vmatprep.subr.mxu0 0.0
  %3931 = vmatpush1.msra.mxu0 0.0
  %3932 = vmatprep.subr.mxu0 0.0
  %3933 = vmatpush1.msra.mxu0 0.0
  %3934 = vmatprep.subr.mxu0 0.0
  %3935 = vmatpush1.msra.mxu0 0.0
  %3936 = vmatprep.subr.mxu0 0.0
  %3937 = vmatpush1.msra.mxu0 0.0
  %3938 = vmatprep.subr.mxu0 0.0
  %3939 = vmatpush1.msra.mxu0 0.0
  %3940 = vmatprep.subr.mxu0 0.0
  %3941 = vmatpush1.msra.mxu0 0.0
  %3942 = vmatprep.subr.mxu0 0.0
  %3943 = vmatpush1.msra.mxu0 0.0
  %3944 = vmatprep.subr.mxu0 0.0
  %3945 = vmatpush1.msra.mxu0 0.0
  %3946 = vmatprep.subr.mxu0 0.0
  %3947 = vmatpush1.msra.mxu0 0.0
  %3948 = vmatprep.subr.mxu0 0.0
  %3949 = vmatpush1.msra.mxu0 0.0
  %3950 = vmatprep.subr.mxu0 0.0
  %3951 = vmatpush1.msra.mxu0 0.0
  %3952 = vmatprep.subr.mxu0 0.0
  %3953 = vmatpush1.msra.mxu0 0.0
  %3954 = vmatprep.subr.mxu0 0.0
  %3955 = vmatpush1.msra.mxu0 0.0
  %3956 = vmatprep.subr.mxu0 0.0
  %3957 = vmatpush1.msra.mxu0 0.0
  %3958 = vmatprep.mubr.f32.mxu0 0.0
  %3959 = vmatmul.mubr.f32.gmra.mrb[0].mxu0 %v3821
  %v3960 = vpop.f32.mrb[0].mxu0
  %v3961 = vadd.f32 0.0, %v3960
  %v3962 = vpop.f32.mrb[0].mxu0
  %v3963 = vadd.f32 0.0, %v3962
  %3964 = vdwg.mxu0
  %3965 = vmatprep.subr.mxu0 %v3807
  %3966 = vmatpush1.msra.mxu0 %v3813
  %3967 = vmatprep.subr.mxu0 0.0
  %3968 = vmatpush1.msra.mxu0 0.0
  %3969 = vmatprep.subr.mxu0 0.0
  %3970 = vmatpush1.msra.mxu0 0.0
  %3971 = vmatprep.subr.mxu0 0.0
  %3972 = vmatpush1.msra.mxu0 0.0
  %3973 = vmatprep.subr.mxu0 0.0
  %3974 = vmatpush1.msra.mxu0 0.0
  %3975 = vmatprep.subr.mxu0 0.0
  %3976 = vmatpush1.msra.mxu0 0.0
  %3977 = vmatprep.subr.mxu0 0.0
  %3978 = vmatpush1.msra.mxu0 0.0
  %3979 = vmatprep.subr.mxu0 0.0
  %3980 = vmatpush1.msra.mxu0 0.0
  %3981 = vmatprep.subr.mxu0 0.0
  %3982 = vmatpush1.msra.mxu0 0.0
  %3983 = vmatprep.subr.mxu0 0.0
  %3984 = vmatpush1.msra.mxu0 0.0
  %3985 = vmatprep.subr.mxu0 0.0
  %3986 = vmatpush1.msra.mxu0 0.0
  %3987 = vmatprep.subr.mxu0 0.0
  %3988 = vmatpush1.msra.mxu0 0.0
  %3989 = vmatprep.subr.mxu0 0.0
  %3990 = vmatpush1.msra.mxu0 0.0
  %3991 = vmatprep.subr.mxu0 0.0
  %3992 = vmatpush1.msra.mxu0 0.0
  %3993 = vmatprep.subr.mxu0 0.0
  %3994 = vmatpush1.msra.mxu0 0.0
  %3995 = vmatprep.subr.mxu0 0.0
  %3996 = vmatpush1.msra.mxu0 0.0
  %3997 = vmatprep.subr.mxu0 0.0
  %3998 = vmatpush1.msra.mxu0 0.0
  %3999 = vmatprep.subr.mxu0 0.0
  %4000 = vmatpush1.msra.mxu0 0.0
  %4001 = vmatprep.subr.mxu0 0.0
  %4002 = vmatpush1.msra.mxu0 0.0
  %4003 = vmatprep.subr.mxu0 0.0
  %4004 = vmatpush1.msra.mxu0 0.0
  %4005 = vmatprep.subr.mxu0 0.0
  %4006 = vmatpush1.msra.mxu0 0.0
  %4007 = vmatprep.subr.mxu0 0.0
  %4008 = vmatpush1.msra.mxu0 0.0
  %4009 = vmatprep.subr.mxu0 0.0
  %4010 = vmatpush1.msra.mxu0 0.0
  %4011 = vmatprep.subr.mxu0 0.0
  %4012 = vmatpush1.msra.mxu0 0.0
  %4013 = vmatprep.subr.mxu0 0.0
  %4014 = vmatpush1.msra.mxu0 0.0
  %4015 = vmatprep.subr.mxu0 0.0
  %4016 = vmatpush1.msra.mxu0 0.0
  %4017 = vmatprep.subr.mxu0 0.0
  %4018 = vmatpush1.msra.mxu0 0.0
  %4019 = vmatprep.subr.mxu0 0.0
  %4020 = vmatpush1.msra.mxu0 0.0
  %4021 = vmatprep.subr.mxu0 0.0
  %4022 = vmatpush1.msra.mxu0 0.0
  %4023 = vmatprep.subr.mxu0 0.0
  %4024 = vmatpush1.msra.mxu0 0.0
  %4025 = vmatprep.subr.mxu0 0.0
  %4026 = vmatpush1.msra.mxu0 0.0
  %4027 = vmatprep.subr.mxu0 0.0
  %4028 = vmatpush1.msra.mxu0 0.0
  %4029 = vmatprep.mubr.f32.mxu0 0.0
  %4030 = vmatmul.mubr.f32.gmra.mrb[0].mxu0 %v3821
  %v4031 = vpop.f32.mrb[0].mxu0
  %v4032 = vadd.f32 0.0, %v4031
  %v4033 = vpop.f32.mrb[0].mxu0
  %v4034 = vadd.f32 0.0, %v4033
  %4035 = vdwg.mxu0
  %v4036 = vadd.f32 %v3788, %v3890
  %v4037 = vadd.f32 %v3789, %v3892
  %v4038 = vadd.f32 %v3790, %v3961
  %v4039 = vadd.f32 %v3791, %v3963
  %v4040 = vadd.f32 %v3792, %v4032
  %v4041 = vadd.f32 %v3793, %v4034
  %s4042 = scalar_lea.vmem %s2, 56
  %v4043 = vld [vmem:[%s4042] sm:$0xff]
  %4044 = vrot.lane.b32.xlu0 %v2319, 110
  %v4045 = vpop.permute.xlu0 %4044
  %4046 = vrot.lane.b32.xlu0 %v2320, 110
  %v4047 = vpop.permute.xlu0 %4046
  %4048 = vrot.lane.b32.xlu0 %v2321, 110
  %v4049 = vpop.permute.xlu0 %4048
  %4050 = vrot.lane.b32.xlu0 %v2322, 110
  %v4051 = vpop.permute.xlu0 %4050
  %4052 = vrot.lane.b32.xlu0 %v2323, 110
  %v4053 = vpop.permute.xlu0 %4052
  %4054 = vrot.lane.b32.xlu0 %v2324, 110
  %v4055 = vpop.permute.xlu0 %4054
  %v4056 = vsel %vm751, %v4045, %v4047
  %v4057 = vsel %vm751, %v4047, %v4049
  %v4058 = vsel %vm751, %v4049, %v4051
  %v4059 = vsel %vm751, %v4051, %v4053
  %v4060 = vsel %vm751, %v4053, %v4055
  %v4068 = vsel %vm61, %v4043, 0
  %4070 = vmatprep.subr.mxu0 %v4057
  %4071 = vmatpush1.msra.mxu0 %v4056
  %4072 = vmatprep.subr.mxu0 0.0
  %4073 = vmatpush1.msra.mxu0 0.0
  %4074 = vmatprep.subr.mxu0 0.0
  %4075 = vmatpush1.msra.mxu0 0.0
  %4076 = vmatprep.subr.mxu0 0.0
  %4077 = vmatpush1.msra.mxu0 0.0
  %4078 = vmatprep.subr.mxu0 0.0
  %4079 = vmatpush1.msra.mxu0 0.0
  %4080 = vmatprep.subr.mxu0 0.0
  %4081 = vmatpush1.msra.mxu0 0.0
  %4082 = vmatprep.subr.mxu0 0.0
  %4083 = vmatpush1.msra.mxu0 0.0
  %4084 = vmatprep.subr.mxu0 0.0
  %4085 = vmatpush1.msra.mxu0 0.0
  %4086 = vmatprep.subr.mxu0 0.0
  %4087 = vmatpush1.msra.mxu0 0.0
  %4088 = vmatprep.subr.mxu0 0.0
  %4089 = vmatpush1.msra.mxu0 0.0
  %4090 = vmatprep.subr.mxu0 0.0
  %4091 = vmatpush1.msra.mxu0 0.0
  %4092 = vmatprep.subr.mxu0 0.0
  %4093 = vmatpush1.msra.mxu0 0.0
  %4094 = vmatprep.subr.mxu0 0.0
  %4095 = vmatpush1.msra.mxu0 0.0
  %4096 = vmatprep.subr.mxu0 0.0
  %4097 = vmatpush1.msra.mxu0 0.0
  %4098 = vmatprep.subr.mxu0 0.0
  %4099 = vmatpush1.msra.mxu0 0.0
  %4100 = vmatprep.subr.mxu0 0.0
  %4101 = vmatpush1.msra.mxu0 0.0
  %4102 = vmatprep.subr.mxu0 0.0
  %4103 = vmatpush1.msra.mxu0 0.0
  %4104 = vmatprep.subr.mxu0 0.0
  %4105 = vmatpush1.msra.mxu0 0.0
  %4106 = vmatprep.subr.mxu0 0.0
  %4107 = vmatpush1.msra.mxu0 0.0
  %4108 = vmatprep.subr.mxu0 0.0
  %4109 = vmatpush1.msra.mxu0 0.0
  %4110 = vmatprep.subr.mxu0 0.0
  %4111 = vmatpush1.msra.mxu0 0.0
  %4112 = vmatprep.subr.mxu0 0.0
  %4113 = vmatpush1.msra.mxu0 0.0
  %4114 = vmatprep.subr.mxu0 0.0
  %4115 = vmatpush1.msra.mxu0 0.0
  %4116 = vmatprep.subr.mxu0 0.0
  %4117 = vmatpush1.msra.mxu0 0.0
  %4118 = vmatprep.subr.mxu0 0.0
  %4119 = vmatpush1.msra.mxu0 0.0
  %4120 = vmatprep.subr.mxu0 0.0
  %4121 = vmatpush1.msra.mxu0 0.0
  %4122 = vmatprep.subr.mxu0 0.0
  %4123 = vmatpush1.msra.mxu0 0.0
  %4124 = vmatprep.subr.mxu0 0.0
  %4125 = vmatpush1.msra.mxu0 0.0
  %4126 = vmatprep.subr.mxu0 0.0
  %4127 = vmatpush1.msra.mxu0 0.0
  %4128 = vmatprep.subr.mxu0 0.0
  %4129 = vmatpush1.msra.mxu0 0.0
  %4130 = vmatprep.subr.mxu0 0.0
  %4131 = vmatpush1.msra.mxu0 0.0
  %4132 = vmatprep.subr.mxu0 0.0
  %4133 = vmatpush1.msra.mxu0 0.0
  %4134 = vmatprep.mubr.f32.mxu0 0.0
  %4135 = vmatmul.mubr.f32.gmra.mrb[0].mxu0 %v4068
  %v4136 = vpop.f32.mrb[0].mxu0
  %v4137 = vadd.f32 0.0, %v4136
  %v4138 = vpop.f32.mrb[0].mxu0
  %v4139 = vadd.f32 0.0, %v4138
  %4140 = vdwg.mxu0
  %4141 = vmatprep.subr.mxu0 %v4059
  %4142 = vmatpush1.msra.mxu0 %v4058
  %4143 = vmatprep.subr.mxu0 0.0
  %4144 = vmatpush1.msra.mxu0 0.0
  %4145 = vmatprep.subr.mxu0 0.0
  %4146 = vmatpush1.msra.mxu0 0.0
  %4147 = vmatprep.subr.mxu0 0.0
  %4148 = vmatpush1.msra.mxu0 0.0
  %4149 = vmatprep.subr.mxu0 0.0
  %4150 = vmatpush1.msra.mxu0 0.0
  %4151 = vmatprep.subr.mxu0 0.0
  %4152 = vmatpush1.msra.mxu0 0.0
  %4153 = vmatprep.subr.mxu0 0.0
  %4154 = vmatpush1.msra.mxu0 0.0
  %4155 = vmatprep.subr.mxu0 0.0
  %4156 = vmatpush1.msra.mxu0 0.0
  %4157 = vmatprep.subr.mxu0 0.0
  %4158 = vmatpush1.msra.mxu0 0.0
  %4159 = vmatprep.subr.mxu0 0.0
  %4160 = vmatpush1.msra.mxu0 0.0
  %4161 = vmatprep.subr.mxu0 0.0
  %4162 = vmatpush1.msra.mxu0 0.0
  %4163 = vmatprep.subr.mxu0 0.0
  %4164 = vmatpush1.msra.mxu0 0.0
  %4165 = vmatprep.subr.mxu0 0.0
  %4166 = vmatpush1.msra.mxu0 0.0
  %4167 = vmatprep.subr.mxu0 0.0
  %4168 = vmatpush1.msra.mxu0 0.0
  %4169 = vmatprep.subr.mxu0 0.0
  %4170 = vmatpush1.msra.mxu0 0.0
  %4171 = vmatprep.subr.mxu0 0.0
  %4172 = vmatpush1.msra.mxu0 0.0
  %4173 = vmatprep.subr.mxu0 0.0
  %4174 = vmatpush1.msra.mxu0 0.0
  %4175 = vmatprep.subr.mxu0 0.0
  %4176 = vmatpush1.msra.mxu0 0.0
  %4177 = vmatprep.subr.mxu0 0.0
  %4178 = vmatpush1.msra.mxu0 0.0
  %4179 = vmatprep.subr.mxu0 0.0
  %4180 = vmatpush1.msra.mxu0 0.0
  %4181 = vmatprep.subr.mxu0 0.0
  %4182 = vmatpush1.msra.mxu0 0.0
  %4183 = vmatprep.subr.mxu0 0.0
  %4184 = vmatpush1.msra.mxu0 0.0
  %4185 = vmatprep.subr.mxu0 0.0
  %4186 = vmatpush1.msra.mxu0 0.0
  %4187 = vmatprep.subr.mxu0 0.0
  %4188 = vmatpush1.msra.mxu0 0.0
  %4189 = vmatprep.subr.mxu0 0.0
  %4190 = vmatpush1.msra.mxu0 0.0
  %4191 = vmatprep.subr.mxu0 0.0
  %4192 = vmatpush1.msra.mxu0 0.0
  %4193 = vmatprep.subr.mxu0 0.0
  %4194 = vmatpush1.msra.mxu0 0.0
  %4195 = vmatprep.subr.mxu0 0.0
  %4196 = vmatpush1.msra.mxu0 0.0
  %4197 = vmatprep.subr.mxu0 0.0
  %4198 = vmatpush1.msra.mxu0 0.0
  %4199 = vmatprep.subr.mxu0 0.0
  %4200 = vmatpush1.msra.mxu0 0.0
  %4201 = vmatprep.subr.mxu0 0.0
  %4202 = vmatpush1.msra.mxu0 0.0
  %4203 = vmatprep.subr.mxu0 0.0
  %4204 = vmatpush1.msra.mxu0 0.0
  %4205 = vmatprep.mubr.f32.mxu0 0.0
  %4206 = vmatmul.mubr.f32.gmra.mrb[0].mxu0 %v4068
  %v4207 = vpop.f32.mrb[0].mxu0
  %v4208 = vadd.f32 0.0, %v4207
  %v4209 = vpop.f32.mrb[0].mxu0
  %v4210 = vadd.f32 0.0, %v4209
  %4211 = vdwg.mxu0
  %4212 = vmatprep.subr.mxu0 %v4055
  %4213 = vmatpush1.msra.mxu0 %v4060
  %4214 = vmatprep.subr.mxu0 0.0
  %4215 = vmatpush1.msra.mxu0 0.0
  %4216 = vmatprep.subr.mxu0 0.0
  %4217 = vmatpush1.msra.mxu0 0.0
  %4218 = vmatprep.subr.mxu0 0.0
  %4219 = vmatpush1.msra.mxu0 0.0
  %4220 = vmatprep.subr.mxu0 0.0
  %4221 = vmatpush1.msra.mxu0 0.0
  %4222 = vmatprep.subr.mxu0 0.0
  %4223 = vmatpush1.msra.mxu0 0.0
  %4224 = vmatprep.subr.mxu0 0.0
  %4225 = vmatpush1.msra.mxu0 0.0
  %4226 = vmatprep.subr.mxu0 0.0
  %4227 = vmatpush1.msra.mxu0 0.0
  %4228 = vmatprep.subr.mxu0 0.0
  %4229 = vmatpush1.msra.mxu0 0.0
  %4230 = vmatprep.subr.mxu0 0.0
  %4231 = vmatpush1.msra.mxu0 0.0
  %4232 = vmatprep.subr.mxu0 0.0
  %4233 = vmatpush1.msra.mxu0 0.0
  %4234 = vmatprep.subr.mxu0 0.0
  %4235 = vmatpush1.msra.mxu0 0.0
  %4236 = vmatprep.subr.mxu0 0.0
  %4237 = vmatpush1.msra.mxu0 0.0
  %4238 = vmatprep.subr.mxu0 0.0
  %4239 = vmatpush1.msra.mxu0 0.0
  %4240 = vmatprep.subr.mxu0 0.0
  %4241 = vmatpush1.msra.mxu0 0.0
  %4242 = vmatprep.subr.mxu0 0.0
  %4243 = vmatpush1.msra.mxu0 0.0
  %4244 = vmatprep.subr.mxu0 0.0
  %4245 = vmatpush1.msra.mxu0 0.0
  %4246 = vmatprep.subr.mxu0 0.0
  %4247 = vmatpush1.msra.mxu0 0.0
  %4248 = vmatprep.subr.mxu0 0.0
  %4249 = vmatpush1.msra.mxu0 0.0
  %4250 = vmatprep.subr.mxu0 0.0
  %4251 = vmatpush1.msra.mxu0 0.0
  %4252 = vmatprep.subr.mxu0 0.0
  %4253 = vmatpush1.msra.mxu0 0.0
  %4254 = vmatprep.subr.mxu0 0.0
  %4255 = vmatpush1.msra.mxu0 0.0
  %4256 = vmatprep.subr.mxu0 0.0
  %4257 = vmatpush1.msra.mxu0 0.0
  %4258 = vmatprep.subr.mxu0 0.0
  %4259 = vmatpush1.msra.mxu0 0.0
  %4260 = vmatprep.subr.mxu0 0.0
  %4261 = vmatpush1.msra.mxu0 0.0
  %4262 = vmatprep.subr.mxu0 0.0
  %4263 = vmatpush1.msra.mxu0 0.0
  %4264 = vmatprep.subr.mxu0 0.0
  %4265 = vmatpush1.msra.mxu0 0.0
  %4266 = vmatprep.subr.mxu0 0.0
  %4267 = vmatpush1.msra.mxu0 0.0
  %4268 = vmatprep.subr.mxu0 0.0
  %4269 = vmatpush1.msra.mxu0 0.0
  %4270 = vmatprep.subr.mxu0 0.0
  %4271 = vmatpush1.msra.mxu0 0.0
  %4272 = vmatprep.subr.mxu0 0.0
  %4273 = vmatpush1.msra.mxu0 0.0
  %4274 = vmatprep.subr.mxu0 0.0
  %4275 = vmatpush1.msra.mxu0 0.0
  %4276 = vmatprep.mubr.f32.mxu0 0.0
  %4277 = vmatmul.mubr.f32.gmra.mrb[0].mxu0 %v4068
  %v4278 = vpop.f32.mrb[0].mxu0
  %v4279 = vadd.f32 0.0, %v4278
  %v4280 = vpop.f32.mrb[0].mxu0
  %v4281 = vadd.f32 0.0, %v4280
  %4282 = vdwg.mxu0
  %v4283 = vadd.f32 %v4036, %v4137
  %v4284 = vadd.f32 %v4037, %v4139
  %v4285 = vadd.f32 %v4038, %v4208
  %v4286 = vadd.f32 %v4039, %v4210
  %v4287 = vadd.f32 %v4040, %v4279
  %v4288 = vadd.f32 %v4041, %v4281
  %s4289 = scalar_lea.vmem %s2, 64
  %v4290 = vld [vmem:[%s4289] sm:$0xff]
  %4291 = vrot.lane.b32.xlu0 %v2319, 109
  %v4292 = vpop.permute.xlu0 %4291
  %4293 = vrot.lane.b32.xlu0 %v2320, 109
  %v4294 = vpop.permute.xlu0 %4293
  %4295 = vrot.lane.b32.xlu0 %v2321, 109
  %v4296 = vpop.permute.xlu0 %4295
  %4297 = vrot.lane.b32.xlu0 %v2322, 109
  %v4298 = vpop.permute.xlu0 %4297
  %4299 = vrot.lane.b32.xlu0 %v2323, 109
  %v4300 = vpop.permute.xlu0 %4299
  %4301 = vrot.lane.b32.xlu0 %v2324, 109
  %v4302 = vpop.permute.xlu0 %4301
  %v4303 = vsel %vm996, %v4292, %v4294
  %v4304 = vsel %vm996, %v4294, %v4296
  %v4305 = vsel %vm996, %v4296, %v4298
  %v4306 = vsel %vm996, %v4298, %v4300
  %v4307 = vsel %vm996, %v4300, %v4302
  %v4315 = vsel %vm61, %v4290, 0
  %4317 = vmatprep.subr.mxu0 %v4304
  %4318 = vmatpush1.msra.mxu0 %v4303
  %4319 = vmatprep.subr.mxu0 0.0
  %4320 = vmatpush1.msra.mxu0 0.0
  %4321 = vmatprep.subr.mxu0 0.0
  %4322 = vmatpush1.msra.mxu0 0.0
  %4323 = vmatprep.subr.mxu0 0.0
  %4324 = vmatpush1.msra.mxu0 0.0
  %4325 = vmatprep.subr.mxu0 0.0
  %4326 = vmatpush1.msra.mxu0 0.0
  %4327 = vmatprep.subr.mxu0 0.0
  %4328 = vmatpush1.msra.mxu0 0.0
  %4329 = vmatprep.subr.mxu0 0.0
  %4330 = vmatpush1.msra.mxu0 0.0
  %4331 = vmatprep.subr.mxu0 0.0
  %4332 = vmatpush1.msra.mxu0 0.0
  %4333 = vmatprep.subr.mxu0 0.0
  %4334 = vmatpush1.msra.mxu0 0.0
  %4335 = vmatprep.subr.mxu0 0.0
  %4336 = vmatpush1.msra.mxu0 0.0
  %4337 = vmatprep.subr.mxu0 0.0
  %4338 = vmatpush1.msra.mxu0 0.0
  %4339 = vmatprep.subr.mxu0 0.0
  %4340 = vmatpush1.msra.mxu0 0.0
  %4341 = vmatprep.subr.mxu0 0.0
  %4342 = vmatpush1.msra.mxu0 0.0
  %4343 = vmatprep.subr.mxu0 0.0
  %4344 = vmatpush1.msra.mxu0 0.0
  %4345 = vmatprep.subr.mxu0 0.0
  %4346 = vmatpush1.msra.mxu0 0.0
  %4347 = vmatprep.subr.mxu0 0.0
  %4348 = vmatpush1.msra.mxu0 0.0
  %4349 = vmatprep.subr.mxu0 0.0
  %4350 = vmatpush1.msra.mxu0 0.0
  %4351 = vmatprep.subr.mxu0 0.0
  %4352 = vmatpush1.msra.mxu0 0.0
  %4353 = vmatprep.subr.mxu0 0.0
  %4354 = vmatpush1.msra.mxu0 0.0
  %4355 = vmatprep.subr.mxu0 0.0
  %4356 = vmatpush1.msra.mxu0 0.0
  %4357 = vmatprep.subr.mxu0 0.0
  %4358 = vmatpush1.msra.mxu0 0.0
  %4359 = vmatprep.subr.mxu0 0.0
  %4360 = vmatpush1.msra.mxu0 0.0
  %4361 = vmatprep.subr.mxu0 0.0
  %4362 = vmatpush1.msra.mxu0 0.0
  %4363 = vmatprep.subr.mxu0 0.0
  %4364 = vmatpush1.msra.mxu0 0.0
  %4365 = vmatprep.subr.mxu0 0.0
  %4366 = vmatpush1.msra.mxu0 0.0
  %4367 = vmatprep.subr.mxu0 0.0
  %4368 = vmatpush1.msra.mxu0 0.0
  %4369 = vmatprep.subr.mxu0 0.0
  %4370 = vmatpush1.msra.mxu0 0.0
  %4371 = vmatprep.subr.mxu0 0.0
  %4372 = vmatpush1.msra.mxu0 0.0
  %4373 = vmatprep.subr.mxu0 0.0
  %4374 = vmatpush1.msra.mxu0 0.0
  %4375 = vmatprep.subr.mxu0 0.0
  %4376 = vmatpush1.msra.mxu0 0.0
  %4377 = vmatprep.subr.mxu0 0.0
  %4378 = vmatpush1.msra.mxu0 0.0
  %4379 = vmatprep.subr.mxu0 0.0
  %4380 = vmatpush1.msra.mxu0 0.0
  %4381 = vmatprep.mubr.f32.mxu0 0.0
  %4382 = vmatmul.mubr.f32.gmra.mrb[0].mxu0 %v4315
  %v4383 = vpop.f32.mrb[0].mxu0
  %v4384 = vadd.f32 0.0, %v4383
  %v4385 = vpop.f32.mrb[0].mxu0
  %v4386 = vadd.f32 0.0, %v4385
  %4387 = vdwg.mxu0
  %4388 = vmatprep.subr.mxu0 %v4306
  %4389 = vmatpush1.msra.mxu0 %v4305
  %4390 = vmatprep.subr.mxu0 0.0
  %4391 = vmatpush1.msra.mxu0 0.0
  %4392 = vmatprep.subr.mxu0 0.0
  %4393 = vmatpush1.msra.mxu0 0.0
  %4394 = vmatprep.subr.mxu0 0.0
  %4395 = vmatpush1.msra.mxu0 0.0
  %4396 = vmatprep.subr.mxu0 0.0
  %4397 = vmatpush1.msra.mxu0 0.0
  %4398 = vmatprep.subr.mxu0 0.0
  %4399 = vmatpush1.msra.mxu0 0.0
  %4400 = vmatprep.subr.mxu0 0.0
  %4401 = vmatpush1.msra.mxu0 0.0
  %4402 = vmatprep.subr.mxu0 0.0
  %4403 = vmatpush1.msra.mxu0 0.0
  %4404 = vmatprep.subr.mxu0 0.0
  %4405 = vmatpush1.msra.mxu0 0.0
  %4406 = vmatprep.subr.mxu0 0.0
  %4407 = vmatpush1.msra.mxu0 0.0
  %4408 = vmatprep.subr.mxu0 0.0
  %4409 = vmatpush1.msra.mxu0 0.0
  %4410 = vmatprep.subr.mxu0 0.0
  %4411 = vmatpush1.msra.mxu0 0.0
  %4412 = vmatprep.subr.mxu0 0.0
  %4413 = vmatpush1.msra.mxu0 0.0
  %4414 = vmatprep.subr.mxu0 0.0
  %4415 = vmatpush1.msra.mxu0 0.0
  %4416 = vmatprep.subr.mxu0 0.0
  %4417 = vmatpush1.msra.mxu0 0.0
  %4418 = vmatprep.subr.mxu0 0.0
  %4419 = vmatpush1.msra.mxu0 0.0
  %4420 = vmatprep.subr.mxu0 0.0
  %4421 = vmatpush1.msra.mxu0 0.0
  %4422 = vmatprep.subr.mxu0 0.0
  %4423 = vmatpush1.msra.mxu0 0.0
  %4424 = vmatprep.subr.mxu0 0.0
  %4425 = vmatpush1.msra.mxu0 0.0
  %4426 = vmatprep.subr.mxu0 0.0
  %4427 = vmatpush1.msra.mxu0 0.0
  %4428 = vmatprep.subr.mxu0 0.0
  %4429 = vmatpush1.msra.mxu0 0.0
  %4430 = vmatprep.subr.mxu0 0.0
  %4431 = vmatpush1.msra.mxu0 0.0
  %4432 = vmatprep.subr.mxu0 0.0
  %4433 = vmatpush1.msra.mxu0 0.0
  %4434 = vmatprep.subr.mxu0 0.0
  %4435 = vmatpush1.msra.mxu0 0.0
  %4436 = vmatprep.subr.mxu0 0.0
  %4437 = vmatpush1.msra.mxu0 0.0
  %4438 = vmatprep.subr.mxu0 0.0
  %4439 = vmatpush1.msra.mxu0 0.0
  %4440 = vmatprep.subr.mxu0 0.0
  %4441 = vmatpush1.msra.mxu0 0.0
  %4442 = vmatprep.subr.mxu0 0.0
  %4443 = vmatpush1.msra.mxu0 0.0
  %4444 = vmatprep.subr.mxu0 0.0
  %4445 = vmatpush1.msra.mxu0 0.0
  %4446 = vmatprep.subr.mxu0 0.0
  %4447 = vmatpush1.msra.mxu0 0.0
  %4448 = vmatprep.subr.mxu0 0.0
  %4449 = vmatpush1.msra.mxu0 0.0
  %4450 = vmatprep.subr.mxu0 0.0
  %4451 = vmatpush1.msra.mxu0 0.0
  %4452 = vmatprep.mubr.f32.mxu0 0.0
  %4453 = vmatmul.mubr.f32.gmra.mrb[0].mxu0 %v4315
  %v4454 = vpop.f32.mrb[0].mxu0
  %v4455 = vadd.f32 0.0, %v4454
  %v4456 = vpop.f32.mrb[0].mxu0
  %v4457 = vadd.f32 0.0, %v4456
  %4458 = vdwg.mxu0
  %4459 = vmatprep.subr.mxu0 %v4302
  %4460 = vmatpush1.msra.mxu0 %v4307
  %4461 = vmatprep.subr.mxu0 0.0
  %4462 = vmatpush1.msra.mxu0 0.0
  %4463 = vmatprep.subr.mxu0 0.0
  %4464 = vmatpush1.msra.mxu0 0.0
  %4465 = vmatprep.subr.mxu0 0.0
  %4466 = vmatpush1.msra.mxu0 0.0
  %4467 = vmatprep.subr.mxu0 0.0
  %4468 = vmatpush1.msra.mxu0 0.0
  %4469 = vmatprep.subr.mxu0 0.0
  %4470 = vmatpush1.msra.mxu0 0.0
  %4471 = vmatprep.subr.mxu0 0.0
  %4472 = vmatpush1.msra.mxu0 0.0
  %4473 = vmatprep.subr.mxu0 0.0
  %4474 = vmatpush1.msra.mxu0 0.0
  %4475 = vmatprep.subr.mxu0 0.0
  %4476 = vmatpush1.msra.mxu0 0.0
  %4477 = vmatprep.subr.mxu0 0.0
  %4478 = vmatpush1.msra.mxu0 0.0
  %4479 = vmatprep.subr.mxu0 0.0
  %4480 = vmatpush1.msra.mxu0 0.0
  %4481 = vmatprep.subr.mxu0 0.0
  %4482 = vmatpush1.msra.mxu0 0.0
  %4483 = vmatprep.subr.mxu0 0.0
  %4484 = vmatpush1.msra.mxu0 0.0
  %4485 = vmatprep.subr.mxu0 0.0
  %4486 = vmatpush1.msra.mxu0 0.0
  %4487 = vmatprep.subr.mxu0 0.0
  %4488 = vmatpush1.msra.mxu0 0.0
  %4489 = vmatprep.subr.mxu0 0.0
  %4490 = vmatpush1.msra.mxu0 0.0
  %4491 = vmatprep.subr.mxu0 0.0
  %4492 = vmatpush1.msra.mxu0 0.0
  %4493 = vmatprep.subr.mxu0 0.0
  %4494 = vmatpush1.msra.mxu0 0.0
  %4495 = vmatprep.subr.mxu0 0.0
  %4496 = vmatpush1.msra.mxu0 0.0
  %4497 = vmatprep.subr.mxu0 0.0
  %4498 = vmatpush1.msra.mxu0 0.0
  %4499 = vmatprep.subr.mxu0 0.0
  %4500 = vmatpush1.msra.mxu0 0.0
  %4501 = vmatprep.subr.mxu0 0.0
  %4502 = vmatpush1.msra.mxu0 0.0
  %4503 = vmatprep.subr.mxu0 0.0
  %4504 = vmatpush1.msra.mxu0 0.0
  %4505 = vmatprep.subr.mxu0 0.0
  %4506 = vmatpush1.msra.mxu0 0.0
  %4507 = vmatprep.subr.mxu0 0.0
  %4508 = vmatpush1.msra.mxu0 0.0
  %4509 = vmatprep.subr.mxu0 0.0
  %4510 = vmatpush1.msra.mxu0 0.0
  %4511 = vmatprep.subr.mxu0 0.0
  %4512 = vmatpush1.msra.mxu0 0.0
  %4513 = vmatprep.subr.mxu0 0.0
  %4514 = vmatpush1.msra.mxu0 0.0
  %4515 = vmatprep.subr.mxu0 0.0
  %4516 = vmatpush1.msra.mxu0 0.0
  %4517 = vmatprep.subr.mxu0 0.0
  %4518 = vmatpush1.msra.mxu0 0.0
  %4519 = vmatprep.subr.mxu0 0.0
  %4520 = vmatpush1.msra.mxu0 0.0
  %4521 = vmatprep.subr.mxu0 0.0
  %4522 = vmatpush1.msra.mxu0 0.0
  %4523 = vmatprep.mubr.f32.mxu0 0.0
  %4524 = vmatmul.mubr.f32.gmra.mrb[0].mxu0 %v4315
  %v4525 = vpop.f32.mrb[0].mxu0
  %v4526 = vadd.f32 0.0, %v4525
  %v4527 = vpop.f32.mrb[0].mxu0
  %v4528 = vadd.f32 0.0, %v4527
  %4529 = vdwg.mxu0
  %v4530 = vadd.f32 %v4283, %v4384
  %v4531 = vadd.f32 %v4284, %v4386
  %v4532 = vadd.f32 %v4285, %v4455
  %v4533 = vadd.f32 %v4286, %v4457
  %v4534 = vadd.f32 %v4287, %v4526
  %v4535 = vadd.f32 %v4288, %v4528
  %v4536 = vlaneseq
  %v4537 = vshrl.u32 %v4536, 7
  %v4538 = vsub.s32 5, %v4537
  %v4539 = vrot.slane %v17, %v4538
  %v4541 = vmul.f32 %v4530, %v2211
  %v4542 = vmul.f32 %v4531, %v2215
  %v4543 = vmul.f32 %v4532, %v2219
  %v4544 = vmul.f32 %v4533, %v2223
  %v4545 = vmul.f32 %v4534, %v2227
  %v4546 = vmul.f32 %v4535, %v4539
  %v4547 = vadd.f32 %v4541, %v4542
  %v4548 = vadd.f32 %v4547, %v4543
  %v4549 = vadd.f32 %v4548, %v4544
  %v4550 = vadd.f32 %v4549, %v4545
  %v4551 = vsel %vm2593, %v4546, 0.0
  %v4552 = vadd.f32 %v4550, %v4551
  %4553 = vadd.xlane.f32.xlu0 %v4552
  %v4554 = vpop.xlane.xlu0 %4553
  %v4555 = vmul.f32 %v4541, %v4530
  %v4556 = vmul.f32 %v4542, %v4531
  %v4557 = vmul.f32 %v4543, %v4532
  %v4558 = vmul.f32 %v4544, %v4533
  %v4559 = vmul.f32 %v4545, %v4534
  %v4560 = vmul.f32 %v4546, %v4535
  %v4561 = vadd.f32 %v4555, %v4556
  %v4562 = vadd.f32 %v4561, %v4557
  %v4563 = vadd.f32 %v4562, %v4558
  %v4564 = vadd.f32 %v4563, %v4559
  %v4565 = vsel %vm2593, %v4560, 0.0
  %v4566 = vadd.f32 %v4564, %v4565
  %4567 = vadd.xlane.f32.xlu0 %v4566
  %v4568 = vpop.xlane.xlu0 %4567
  %v4569 = vmul.f32 %v4554, 0.001953125
  %v4570 = vmul.f32 %v4568, 0.001953125
  %v4571 = vmul.f32 %v4569, %v4569
  %v4572 = vsub.f32 %v4570, %v4571
  %v4573 = vmax.f32 %v4572, 0.0
  %v4574 = vsub.f32 %v4530, %v4569
  %v4575 = vsub.f32 %v4531, %v4569
  %v4576 = vsub.f32 %v4532, %v4569
  %v4577 = vsub.f32 %v4533, %v4569
  %v4578 = vsub.f32 %v4534, %v4569
  %v4579 = vsub.f32 %v4535, %v4569
  %v4580 = vadd.f32 %v4573, 1e-05
  %v4581 = vrsqrt.pop %v4580
  %v4582 = vmul.f32 %v4574, %v4581
  %v4583 = vmul.f32 %v4575, %v4581
  %v4584 = vmul.f32 %v4576, %v4581
  %v4585 = vmul.f32 %v4577, %v4581
  %v4586 = vmul.f32 %v4578, %v4581
  %v4587 = vmul.f32 %v4579, %v4581
  %v4588 = vmul.f32 %v4582, 0.5
  %v4589 = vmul.f32 %v4583, 0.5
  %v4590 = vmul.f32 %v4584, 0.5
  %v4591 = vmul.f32 %v4585, 0.5
  %v4592 = vmul.f32 %v4586, 0.5
  %v4593 = vmul.f32 %v4587, 0.5
  %v4594 = vmul.f32 %v4582, 0.70710677
  %v4595 = vmul.f32 %v4583, 0.70710677
  %v4596 = vmul.f32 %v4584, 0.70710677
  %v4597 = vmul.f32 %v4585, 0.70710677
  %v4598 = vmul.f32 %v4586, 0.70710677
  %v4599 = vmul.f32 %v4587, 0.70710677
  %v4600 = verf.f32.pop %v4594
  %v4601 = verf.f32.pop %v4595
  %v4602 = verf.f32.pop %v4596
  %v4603 = verf.f32.pop %v4597
  %v4604 = verf.f32.pop %v4598
  %v4605 = verf.f32.pop %v4599
  %v4606 = vadd.f32 %v4600, 1.0
  %v4607 = vadd.f32 %v4601, 1.0
  %v4608 = vadd.f32 %v4602, 1.0
  %v4609 = vadd.f32 %v4603, 1.0
  %v4610 = vadd.f32 %v4604, 1.0
  %v4611 = vadd.f32 %v4605, 1.0
  %v4612 = vmul.f32 %v4588, %v4606
  %v4613 = vmul.f32 %v4589, %v4607
  %v4614 = vmul.f32 %v4590, %v4608
  %v4615 = vmul.f32 %v4591, %v4609
  %v4616 = vmul.f32 %v4592, %v4610
  %v4617 = vmul.f32 %v4593, %v4611
  %4624 = vrot.lane.b32.xlu0 %v4612, 127
  %v4625 = vpop.permute.xlu0 %4624
  %4626 = vrot.lane.b32.xlu0 %v4613, 127
  %v4627 = vpop.permute.xlu0 %4626
  %4628 = vrot.lane.b32.xlu0 %v4614, 127
  %v4629 = vpop.permute.xlu0 %4628
  %4630 = vrot.lane.b32.xlu0 %v4615, 127
  %v4631 = vpop.permute.xlu0 %4630
  %4632 = vrot.lane.b32.xlu0 %v4616, 127
  %v4633 = vpop.permute.xlu0 %4632
  %4634 = vrot.lane.b32.xlu0 %v4617, 127
  %v4635 = vpop.permute.xlu0 %4634
  %v4636 = vsel %vm50, %v4625, %v4627
  %v4637 = vsel %vm50, %v4627, %v4629
  %v4638 = vsel %vm50, %v4629, %v4631
  %v4639 = vsel %vm50, %v4631, %v4633
  %v4640 = vsel %vm50, %v4633, %v4635
  %v4646 = vmax.f32 %v4612, %v4636
  %v4647 = vmax.f32 %v4613, %v4637
  %v4648 = vmax.f32 %v4614, %v4638
  %v4649 = vmax.f32 %v4615, %v4639
  %v4650 = vmax.f32 %v4616, %v4640
  %v4652 = vmax.f32 %v4617, %v4635
  %4659 = vrot.lane.b32.xlu0 %v4646, 110
  %v4660 = vpop.permute.xlu0 %4659
  %4661 = vrot.lane.b32.xlu0 %v4647, 110
  %v4662 = vpop.permute.xlu0 %4661
  %4663 = vrot.lane.b32.xlu0 %v4648, 110
  %v4664 = vpop.permute.xlu0 %4663
  %4665 = vrot.lane.b32.xlu0 %v4649, 110
  %v4666 = vpop.permute.xlu0 %4665
  %4667 = vrot.lane.b32.xlu0 %v4650, 110
  %v4668 = vpop.permute.xlu0 %4667
  %4669 = vrot.lane.b32.xlu0 %v4652, 110
  %v4670 = vpop.permute.xlu0 %4669
  %v4671 = vsel %vm751, %v4660, %v4662
  %v4672 = vsel %vm751, %v4662, %v4664
  %v4673 = vsel %vm751, %v4664, %v4666
  %v4674 = vsel %vm751, %v4666, %v4668
  %v4675 = vsel %vm751, %v4668, %v4670
  %v4681 = vmax.f32 %v4646, %v4671
  %v4682 = vmax.f32 %v4647, %v4672
  %v4683 = vmax.f32 %v4648, %v4673
  %v4684 = vmax.f32 %v4649, %v4674
  %v4685 = vmax.f32 %v4650, %v4675
  %4686 = vst [vmem:[%s4] sm:$0xff] %v4681
  %4687 = vst [vmem:[%s4 + $0x8] sm:$0xff] %v4682
  %4688 = vst [vmem:[%s4 + $0x10] sm:$0xff] %v4683
  %4689 = vst [vmem:[%s4 + $0x18] sm:$0xff] %v4684
  %4690 = vst [vmem:[%s4 + $0x20] sm:$0xff] %v4685
  // Predicated region
  $region18: #{student_unet_down.1} parent=0 // pred_check
    _
  $region19: #{student_unet_down.1} parent=0 // pred_check_branch
    %4692 = sbr.rel (0) target = $region21
  $region20: #{student_unet_down.1} parent=0 // pred_region
    _
  $region21: #{student_unet_down.1} parent=0 // pred_fallthru
    _
  // Predicated region
  $region22: #{student_unet_down.1} parent=0 // pred_check
    _
  $region23: #{student_unet_down.1} parent=0 // pred_check_branch
    %4694 = sbr.rel (0) target = $region25
  $region24: #{student_unet_down.1} parent=0 // pred_region
    _
  $region25: #{student_unet_down.1} parent=0 // pred_fallthru
    _

</llo_original>
